<compile_context>
chip_gen: v5e
topology: v5e:2x2
jax: 0.10.0
libtpu: 0.0.40
codegen_flags: <defaults>
</compile_context>

<pallas_src>
import functools

import jax
import jax.numpy as jnp
from jax import lax
from jax.experimental import pallas as pl
from jax.experimental.pallas import tpu as pltpu


# -----------------------------------------------------------------------------
# Kernel 1: basis projection on nodes  P = node_embs @ [W_basis_0 | W_basis_1 | ...]
# -----------------------------------------------------------------------------
def _basis_project_kernel(node_ref, wb_ref, out_ref):
    out_ref[...] = jnp.dot(node_ref[...], wb_ref[...],
                           preferred_element_type=jnp.float32).astype(out_ref.dtype)


def basis_project(node_bf16, w_basis_flat, *, tn):
    n, d = node_bf16.shape
    bd = w_basis_flat.shape[1]
    assert n % tn == 0
    return pl.pallas_call(
        _basis_project_kernel,
        out_shape=jax.ShapeDtypeStruct((n, bd), jnp.bfloat16),
        grid=(n // tn,),
        in_specs=[pl.BlockSpec((tn, d), lambda i: (i, 0)),
                  pl.BlockSpec((d, bd), lambda i: (0, 0))],
        out_specs=pl.BlockSpec((tn, bd), lambda i: (i, 0)),
        compiler_params=pltpu.CompilerParams(
            dimension_semantics=("parallel",)),
    )(node_bf16, w_basis_flat)


# -----------------------------------------------------------------------------
# Kernel 2: fused message + mean-aggregation (fwd & rev) + self term + ReLU.
#   grid = (node_tiles [parallel], edge_tiles [arbitrary/reduction])
# -----------------------------------------------------------------------------
def _rgcn_fused_kernel(edge_ref, psrc_ref, pdst_ref, dst_ids_ref, src_ids_ref,
                       node_ref, wrb_ref, wself_ref, bself_ref,
                       invdeg_in_ref, invdeg_out_ref,
                       out_ref, acc_f_ref, acc_r_ref):
    i = pl.program_id(0)                      # node-tile index (parallel)
    k = pl.program_id(1)                      # edge-tile index (reduction)
    tn = out_ref.shape[0]
    te = edge_ref.shape[0]
    d_out = wself_ref.shape[1]
    num_basis = wrb_ref.shape[1] // 2

    @pl.when(k == 0)
    def _():
        acc_f_ref[...] = jnp.zeros_like(acc_f_ref)
        acc_r_ref[...] = jnp.zeros_like(acc_r_ref)

    # Per-edge basis coefficients for forward AND reverse directions in a single
    # MXU push; the narrow (TE, 2B) result stays on-chip (never stored to HBM).
    a_all = jnp.dot(edge_ref[...], wrb_ref[...],
                    preferred_element_type=jnp.float32)            # (TE, 2B)

    # Per-edge messages from the pre-projected node table (gathered rows).
    psrc = psrc_ref[...].astype(jnp.float32)                       # (TE, B*D)
    pdst = pdst_ref[...].astype(jnp.float32)
    msg_f = jnp.zeros((te, d_out), jnp.float32)
    msg_r = jnp.zeros((te, d_out), jnp.float32)
    for b in range(num_basis):                                     # B small & static
        lo, hi = b * d_out, (b + 1) * d_out
        msg_f = msg_f + a_all[:, b:b + 1] * psrc[:, lo:hi]
        msg_r = msg_r + a_all[:, num_basis + b:num_basis + b + 1] * pdst[:, lo:hi]

    # Scatter-add via one-hot tiles built on the fly from int32 endpoint rows;
    # the dense (N, E) scatter matrix never exists in HBM.
    node_ids = i * tn + lax.broadcasted_iota(jnp.int32, (tn, te), 0)
    s_fwd = jnp.where(dst_ids_ref[...] == node_ids, 1.0, 0.0).astype(jnp.bfloat16)
    s_rev = jnp.where(src_ids_ref[...] == node_ids, 1.0, 0.0).astype(jnp.bfloat16)
    acc_f_ref[...] += jnp.dot(s_fwd, msg_f.astype(jnp.bfloat16),
                              preferred_element_type=jnp.float32)
    acc_r_ref[...] += jnp.dot(s_rev, msg_r.astype(jnp.bfloat16),
                              preferred_element_type=jnp.float32)

    # Finalize once per node tile: mean normalization + self term + ReLU.
    @pl.when(k == pl.num_programs(1) - 1)
    def _():
        self_term = jnp.dot(node_ref[...], wself_ref[...],
                            preferred_element_type=jnp.float32) + bself_ref[...]
        h = (acc_f_ref[...] * invdeg_in_ref[...]
             + acc_r_ref[...] * invdeg_out_ref[...]
             + self_term)
        out_ref[...] = jnp.maximum(h, 0.0)


def rgcn_fused_layer_call(edge_bf16, p_src, p_dst, dst_row, src_row, node_bf16,
                          w_rb_all, w_self, b_self, inv_deg_in, inv_deg_out,
                          *, tn, te):
    n, d = node_bf16.shape
    e = edge_bf16.shape[0]
    bd = p_src.shape[1]
    assert n % tn == 0 and e % te == 0
    gn, ge = n // tn, e // te

    flops = (gn * ge * (2 * te * d * w_rb_all.shape[1] + 2 * 2 * tn * te * d)
             + gn * 2 * tn * d * d)
    bytes_accessed = (gn * e * (2 * d + 2 * 2 * bd + 2 * 4)   # edge-side streams
                      + n * (2 * d + 4 * d + 2 * 4)           # node in / out / deg
                      + 2 * (d * w_rb_all.shape[1] + d * d + d))

    return pl.pallas_call(
        _rgcn_fused_kernel,
        out_shape=jax.ShapeDtypeStruct((n, d), jnp.float32),
        grid=(gn, ge),
        in_specs=[
            pl.BlockSpec((te, d), lambda i, k: (k, 0)),              # edge_embs tile
            pl.BlockSpec((te, bd), lambda i, k: (k, 0)),             # P[src] tile
            pl.BlockSpec((te, bd), lambda i, k: (k, 0)),             # P[dst] tile
            pl.BlockSpec((1, te), lambda i, k: (0, k)),              # dst indices row
            pl.BlockSpec((1, te), lambda i, k: (0, k)),              # src indices row
            pl.BlockSpec((tn, d), lambda i, k: (i, 0)),              # node_embs tile
            pl.BlockSpec((d, w_rb_all.shape[1]), lambda i, k: (0, 0)),  # [W_rb|W_rb_inv]
            pl.BlockSpec((d, d), lambda i, k: (0, 0)),               # W_self
            pl.BlockSpec((1, d), lambda i, k: (0, 0)),               # b_self
            pl.BlockSpec((tn, 1), lambda i, k: (i, 0)),              # 1/deg_in tile
            pl.BlockSpec((tn, 1), lambda i, k: (i, 0)),              # 1/deg_out tile
        ],
        out_specs=pl.BlockSpec((tn, d), lambda i, k: (i, 0)),
        scratch_shapes=[pltpu.VMEM((tn, d), jnp.float32),
                        pltpu.VMEM((tn, d), jnp.float32)],
        compiler_params=pltpu.CompilerParams(
            dimension_semantics=("parallel", "arbitrary"),
            vmem_limit_bytes=48 * 1024 * 1024),   # stays inside v7x's 64 MiB VMEM
        cost_estimate=pl.CostEstimate(flops=int(flops), transcendentals=0,
                                      bytes_accessed=int(bytes_accessed)),
    )(edge_bf16, p_src, p_dst, dst_row, src_row, node_bf16,
      w_rb_all, w_self, b_self, inv_deg_in, inv_deg_out)


# -----------------------------------------------------------------------------
# RGCN layer / model glue.
# -----------------------------------------------------------------------------
def rgcn_layer(params, node_embs, edge_bf16, src_idx, dst_idx, src_row, dst_row,
               inv_deg_in, inv_deg_out, *, tn, te):
    """One RGCNLayer forward pass (dropout = identity, inference)."""
    node_bf16 = node_embs.astype(jnp.bfloat16)
    # Basis projection once on NODES (shared by forward and reverse passes).
    p = basis_project(node_bf16, params["w_basis_flat"], tn=tn)       # (N, B*D)
    # TODO(synk): these row gathers still round-trip (E, B*D) bf16 through HBM;
    # an in-kernel DMA gather (scalar-prefetched indices + make_async_copy)
    # would remove that traffic.
    p_src = jnp.take(p, src_idx, axis=0)
    p_dst = jnp.take(p, dst_idx, axis=0)
    return rgcn_fused_layer_call(edge_bf16, p_src, p_dst, dst_row, src_row,
                                 node_bf16, params["w_rb_all"],
                                 params["w_self"], params["b_self"],
                                 inv_deg_in, inv_deg_out, tn=tn, te=te)


def rgcn_forward(params1, params2, node_embs, edge_embs, src_idx, dst_idx,
                 *, tn, te):
    n = node_embs.shape[0]
    # O(E) degree computation (replaces the old dense (N, E) one-hot matrices).
    deg_in = jnp.zeros((n,), jnp.float32).at[dst_idx].add(1.0)
    deg_out = jnp.zeros((n,), jnp.float32).at[src_idx].add(1.0)
    inv_deg_in = (1.0 / jnp.maximum(deg_in, 1.0)).reshape(n, 1)
    inv_deg_out = (1.0 / jnp.maximum(deg_out, 1.0)).reshape(n, 1)
    src_row = src_idx.reshape(1, -1).astype(jnp.int32)
    dst_row = dst_idx.reshape(1, -1).astype(jnp.int32)
    edge_bf16 = edge_embs.astype(jnp.bfloat16)

    h = rgcn_layer(params1, node_embs, edge_bf16, src_idx, dst_idx, src_row,
                   dst_row, inv_deg_in, inv_deg_out, tn=tn, te=te)
    h = rgcn_layer(params2, h, edge_bf16, src_idx, dst_idx, src_row,
                   dst_row, inv_deg_in, inv_deg_out, tn=tn, te=te)
    return h


def init_layer_params(key, hid_dim, num_basis):
    k1, k2, k3, k4, k5 = jax.random.split(key, 5)
    scale = 0.1
    w_rb = scale * jax.random.normal(k1, (hid_dim, num_basis), jnp.float32)
    w_rb_inv = scale * jax.random.normal(k2, (hid_dim, num_basis), jnp.float32)
    w_basis = scale * jax.random.normal(k3, (num_basis, hid_dim, hid_dim),
                                        jnp.float32)
    w_self = scale * jax.random.normal(k4, (hid_dim, hid_dim), jnp.float32)
    b_self = scale * jax.random.normal(k5, (1, hid_dim), jnp.float32)
    return {
        # [W_rb | W_rb_inv] pre-transposed to (in, 2*basis): both directions in one matmul
        "w_rb_all": jnp.concatenate([w_rb, w_rb_inv], axis=1).astype(jnp.bfloat16),
        # W_basis (basis, in, out) laid out as (in, basis*out) for one wide matmul
        "w_basis_flat": jnp.transpose(w_basis, (1, 0, 2)).reshape(
            hid_dim, num_basis * hid_dim).astype(jnp.bfloat16),
        "w_self": w_self.astype(jnp.bfloat16),
        "b_self": b_self,
    }


def reference_forward(params1, params2, node_embs, edge_embs, src_idx, dst_idx):
    """Pure-JAX reference mirroring the kernel's bf16 casting points."""
    n, d = node_embs.shape
    deg_in = jnp.zeros((n,), jnp.float32).at[dst_idx].add(1.0)
    deg_out = jnp.zeros((n,), jnp.float32).at[src_idx].add(1.0)
    inv_in = (1.0 / jnp.maximum(deg_in, 1.0))[:, None]
    inv_out = (1.0 / jnp.maximum(deg_out, 1.0))[:, None]
    edge_b = edge_embs.astype(jnp.bfloat16)

    def layer(p, h):
        nb = p["w_rb_all"].shape[1] // 2
        hb = h.astype(jnp.bfloat16)
        proj = jnp.dot(hb, p["w_basis_flat"],
                       preferred_element_type=jnp.float32).astype(jnp.bfloat16)
        proj = proj.astype(jnp.float32)
        a = jnp.dot(edge_b, p["w_rb_all"], preferred_element_type=jnp.float32)
        psrc, pdst = proj[src_idx], proj[dst_idx]
        msg_f = sum(a[:, b:b + 1] * psrc[:, b * d:(b + 1) * d] for b in range(nb))
        msg_r = sum(a[:, nb + b:nb + b + 1] * pdst[:, b * d:(b + 1) * d]
                    for b in range(nb))
        msg_f = msg_f.astype(jnp.bfloat16).astype(jnp.float32)
        msg_r = msg_r.astype(jnp.bfloat16).astype(jnp.float32)
        agg_f = jnp.zeros((n, d), jnp.float32).at[dst_idx].add(msg_f) * inv_in
        agg_r = jnp.zeros((n, d), jnp.float32).at[src_idx].add(msg_r) * inv_out
        self_t = jnp.dot(hb, p["w_self"],
                         preferred_element_type=jnp.float32) + p["b_self"]
        return jnp.maximum(agg_f + agg_r + self_t, 0.0)

    return layer(params2, layer(params1, node_embs))


if __name__ == "__main__":
    hid_dim = 128      # lane-dense feature dim (multiple of 128)
    num_basis = 2
    num_nodes = 128
    num_edges = 256
    tn, te = 64, 128   # node/edge tiles -> grid (2, 2); for big graphs keep
                       # tn <= 256, te <= 512 so double-buffered tiles fit v7x VMEM.

    key = jax.random.PRNGKey(0)
    k_n, k_e, k_s, k_d, k_p1, k_p2 = jax.random.split(key, 6)

    node_embs = jax.random.normal(k_n, (num_nodes, hid_dim), jnp.float32)
    edge_embs = jax.random.normal(k_e, (num_edges, hid_dim), jnp.float32)
    src_idx = jax.random.randint(k_s, (num_edges,), 0, num_nodes, dtype=jnp.int32)
    dst_idx = jax.random.randint(k_d, (num_edges,), 0, num_nodes, dtype=jnp.int32)

    params1 = init_layer_params(k_p1, hid_dim, num_basis)
    params2 = init_layer_params(k_p2, hid_dim, num_basis)

    fwd = jax.jit(functools.partial(rgcn_forward, tn=tn, te=te))
    out = fwd(params1, params2, node_embs, edge_embs, src_idx, dst_idx)
    jax.block_until_ready(out)
    assert out.shape == (num_nodes, hid_dim)

    ref = reference_forward(params1, params2, node_embs, edge_embs, src_idx,
                            dst_idx)
    assert jnp.allclose(out, ref, rtol=5e-2, atol=5e-2), float(
        jnp.max(jnp.abs(out - ref)))

    print("KERNEL_OK")
</pallas_src>

<mosaic_0001>
module attributes {stable_mosaic.version = 11 : i64} {
  func.func @_basis_project_kernel(%arg0: i32, %arg1: memref<64x128xbf16, #tpu.memory_space<vmem>>, %arg2: memref<128x256xbf16, #tpu.memory_space<vmem>>, %arg3: memref<64x256xbf16, #tpu.memory_space<vmem>>) attributes {dimension_semantics = [#tpu.dimension_semantics<parallel>], iteration_bounds = array<i64: 2>, scalar_prefetch = 0 : i64, scratch_operands = 0 : i64, tpu.core_type = #tpu.core_type<tc>, window_params = [{transform_indices = @transform_0, window_bounds = array<i64: 64, 128>}, {pipeline_mode = #tpu.pipeline_mode<synchronous>, transform_indices = @transform_1, window_bounds = array<i64: 128, 256>}, {transform_indices = @transform_2, window_bounds = array<i64: 64, 256>}]} {
    %c0 = arith.constant 0 : index
    %c0_0 = arith.constant 0 : index
    %0 = vector.load %arg1[%c0, %c0_0] : memref<64x128xbf16, #tpu.memory_space<vmem>>, vector<64x128xbf16>
    %c0_1 = arith.constant 0 : index
    %c0_2 = arith.constant 0 : index
    %1 = vector.load %arg2[%c0_1, %c0_2] : memref<128x256xbf16, #tpu.memory_space<vmem>>, vector<128x256xbf16>
    %cst = arith.constant dense<0.000000e+00> : vector<64x256xf32>
    %2 = tpu.matmul %0, %1, %cst {dimension_numbers = #tpu.dot_dimension_numbers<[1], [0], [0], [1], [0, 0, 1, 1], [], []>} : vector<64x128xbf16>, vector<128x256xbf16>, vector<64x256xf32> -> vector<64x256xf32>
    %3 = arith.truncf %2 : vector<64x256xf32> to vector<64x256xbf16>
    %c0_3 = arith.constant 0 : index
    %c0_4 = arith.constant 0 : index
    %4 = vector.load %arg3[%c0_3, %c0_4] : memref<64x256xbf16, #tpu.memory_space<vmem>>, vector<64x256xbf16>
    tpu.vector_store %arg3[%c0_3, %c0_4], %3 {strides = array<i32>} : memref<64x256xbf16, #tpu.memory_space<vmem>>, vector<64x256xbf16>,
    return
  }
  func.func @transform_0(%arg0: i32) -> (i32, i32) {
    %c0_i32 = arith.constant 0 : i32
    %c0_i32_0 = arith.constant 0 : i32
    return %arg0, %c0_i32 : i32, i32
  }
  func.func @transform_1(%arg0: i32) -> (i32, i32) {
    %c0_i32 = arith.constant 0 : i32
    %c0_i32_0 = arith.constant 0 : i32
    %c0_i32_1 = arith.constant 0 : i32
    return %c0_i32, %c0_i32_0 : i32, i32
  }
  func.func @transform_2(%arg0: i32) -> (i32, i32) {
    %c0_i32 = arith.constant 0 : i32
    %c0_i32_0 = arith.constant 0 : i32
    return %arg0, %c0_i32 : i32, i32
  }
}

module attributes {stable_mosaic.version = 11 : i64} {
  func.func @_rgcn_fused_kernel(%arg0: i32, %arg1: i32, %arg2: memref<128x128xbf16, #tpu.memory_space<vmem>>, %arg3: memref<128x256xbf16, #tpu.memory_space<vmem>>, %arg4: memref<128x256xbf16, #tpu.memory_space<vmem>>, %arg5: memref<1x128xi32, #tpu.memory_space<vmem>>, %arg6: memref<1x128xi32, #tpu.memory_space<vmem>>, %arg7: memref<64x128xbf16, #tpu.memory_space<vmem>>, %arg8: memref<128x4xbf16, #tpu.memory_space<vmem>>, %arg9: memref<128x128xbf16, #tpu.memory_space<vmem>>, %arg10: memref<1x128xf32, #tpu.memory_space<vmem>>, %arg11: memref<64x1xf32, #tpu.memory_space<vmem>>, %arg12: memref<64x1xf32, #tpu.memory_space<vmem>>, %arg13: memref<64x128xf32, #tpu.memory_space<vmem>>, %arg14: memref<64x128xf32, #tpu.memory_space<vmem>>, %arg15: memref<64x128xf32, #tpu.memory_space<vmem>>) attributes {dimension_semantics = [#tpu.dimension_semantics<parallel>, #tpu.dimension_semantics<arbitrary>], iteration_bounds = array<i64: 2, 2>, scalar_prefetch = 0 : i64, scratch_operands = 2 : i64, tpu.core_type = #tpu.core_type<tc>, window_params = [{transform_indices = @transform_0, window_bounds = array<i64: 128, 128>}, {transform_indices = @transform_1, window_bounds = array<i64: 128, 256>}, {transform_indices = @transform_2, window_bounds = array<i64: 128, 256>}, {transform_indices = @transform_3, window_bounds = array<i64: 1, 128>}, {transform_indices = @transform_4, window_bounds = array<i64: 1, 128>}, {transform_indices = @transform_5, window_bounds = array<i64: 64, 128>}, {pipeline_mode = #tpu.pipeline_mode<synchronous>, transform_indices = @transform_6, window_bounds = array<i64: 128, 4>}, {pipeline_mode = #tpu.pipeline_mode<synchronous>, transform_indices = @transform_7, window_bounds = array<i64: 128, 128>}, {pipeline_mode = #tpu.pipeline_mode<synchronous>, transform_indices = @transform_8, window_bounds = array<i64: 1, 128>}, {transform_indices = @transform_9, window_bounds = array<i64: 64, 1>}, {transform_indices = @transform_10, window_bounds = array<i64: 64, 1>}, {transform_indices = @transform_11, window_bounds = array<i64: 64, 128>}]} {
    %c0_i32 = arith.constant 0 : i32
    %0 = arith.cmpi eq, %arg1, %c0_i32 : i32
    %1 = arith.extui %0 : i1 to i32
    %c0_i32_0 = arith.constant 0 : i32
    %2 = arith.cmpi ne, %1, %c0_i32_0 : i32
    scf.if %2 {
      %cst_29 = arith.constant 0.000000e+00 : f32
      %63 = vector.broadcast %cst_29 : f32 to vector<64x128xf32>
      %c0_30 = arith.constant 0 : index
      %c0_31 = arith.constant 0 : index
      %64 = vector.load %arg14[%c0_30, %c0_31] : memref<64x128xf32, #tpu.memory_space<vmem>>, vector<64x128xf32>
      tpu.vector_store %arg14[%c0_30, %c0_31], %63 {strides = array<i32>} : memref<64x128xf32, #tpu.memory_space<vmem>>, vector<64x128xf32>,
      %cst_32 = arith.constant 0.000000e+00 : f32
      %65 = vector.broadcast %cst_32 : f32 to vector<64x128xf32>
      %c0_33 = arith.constant 0 : index
      %c0_34 = arith.constant 0 : index
      %66 = vector.load %arg15[%c0_33, %c0_34] : memref<64x128xf32, #tpu.memory_space<vmem>>, vector<64x128xf32>
      tpu.vector_store %arg15[%c0_33, %c0_34], %65 {strides = array<i32>} : memref<64x128xf32, #tpu.memory_space<vmem>>, vector<64x128xf32>,
    } else {
    }
    %c0 = arith.constant 0 : index
    %c0_1 = arith.constant 0 : index
    %3 = vector.load %arg2[%c0, %c0_1] : memref<128x128xbf16, #tpu.memory_space<vmem>>, vector<128x128xbf16>
    %c0_2 = arith.constant 0 : index
    %c0_3 = arith.constant 0 : index
    %4 = vector.load %arg8[%c0_2, %c0_3] : memref<128x4xbf16, #tpu.memory_space<vmem>>, vector<128x4xbf16>
    %cst = arith.constant dense<0.000000e+00> : vector<128x4xf32>
    %5 = tpu.matmul %3, %4, %cst {dimension_numbers = #tpu.dot_dimension_numbers<[1], [0], [0], [1], [0, 0, 1, 1], [], []>} : vector<128x128xbf16>, vector<128x4xbf16>, vector<128x4xf32> -> vector<128x4xf32>
    %c0_4 = arith.constant 0 : index
    %c0_5 = arith.constant 0 : index
    %6 = vector.load %arg3[%c0_4, %c0_5] : memref<128x256xbf16, #tpu.memory_space<vmem>>, vector<128x256xbf16>
    %7 = arith.extf %6 : vector<128x256xbf16> to vector<128x256xf32>
    %c0_6 = arith.constant 0 : index
    %c0_7 = arith.constant 0 : index
    %8 = vector.load %arg4[%c0_6, %c0_7] : memref<128x256xbf16, #tpu.memory_space<vmem>>, vector<128x256xbf16>
    %9 = arith.extf %8 : vector<128x256xbf16> to vector<128x256xf32>
    %cst_8 = arith.constant 0.000000e+00 : f32
    %10 = vector.broadcast %cst_8 : f32 to vector<128x128xf32>
    %cst_9 = arith.constant 0.000000e+00 : f32
    %11 = vector.broadcast %cst_9 : f32 to vector<128x128xf32>
    %12 = vector.extract_strided_slice %5 {offsets = [0, 0], sizes = [128, 1], strides = [1, 1]} : vector<128x4xf32> to vector<128x1xf32>
    %13 = vector.extract_strided_slice %7 {offsets = [0, 0], sizes = [128, 128], strides = [1, 1]} : vector<128x256xf32> to vector<128x128xf32>
    %14 = vector.broadcast %12 : vector<128x1xf32> to vector<128x128xf32>
    %15 = arith.mulf %14, %13 : vector<128x128xf32>
    %16 = arith.addf %10, %15 : vector<128x128xf32>
    %17 = vector.extract_strided_slice %5 {offsets = [0, 2], sizes = [128, 1], strides = [1, 1]} : vector<128x4xf32> to vector<128x1xf32>
    %18 = vector.extract_strided_slice %9 {offsets = [0, 0], sizes = [128, 128], strides = [1, 1]} : vector<128x256xf32> to vector<128x128xf32>
    %19 = vector.broadcast %17 : vector<128x1xf32> to vector<128x128xf32>
    %20 = arith.mulf %19, %18 : vector<128x128xf32>
    %21 = arith.addf %11, %20 : vector<128x128xf32>
    %22 = vector.extract_strided_slice %5 {offsets = [0, 1], sizes = [128, 1], strides = [1, 1]} : vector<128x4xf32> to vector<128x1xf32>
    %23 = vector.extract_strided_slice %7 {offsets = [0, 128], sizes = [128, 128], strides = [1, 1]} : vector<128x256xf32> to vector<128x128xf32>
    %24 = vector.broadcast %22 : vector<128x1xf32> to vector<128x128xf32>
    %25 = arith.mulf %24, %23 : vector<128x128xf32>
    %26 = arith.addf %16, %25 : vector<128x128xf32>
    %27 = vector.extract_strided_slice %5 {offsets = [0, 3], sizes = [128, 1], strides = [1, 1]} : vector<128x4xf32> to vector<128x1xf32>
    %28 = vector.extract_strided_slice %9 {offsets = [0, 128], sizes = [128, 128], strides = [1, 1]} : vector<128x256xf32> to vector<128x128xf32>
    %29 = vector.broadcast %27 : vector<128x1xf32> to vector<128x128xf32>
    %30 = arith.mulf %29, %28 : vector<128x128xf32>
    %31 = arith.addf %21, %30 : vector<128x128xf32>
    %c64_i32 = arith.constant 64 : i32
    %32 = arith.muli %arg0, %c64_i32 : i32
    %33 = tpu.iota {dimensions = array<i32: 0>} : vector<64x128xi32>
    %34 = vector.broadcast %32 : i32 to vector<64x128xi32>
    %35 = arith.addi %34, %33 : vector<64x128xi32>
    %c0_10 = arith.constant 0 : index
    %c0_11 = arith.constant 0 : index
    %36 = vector.load %arg5[%c0_10, %c0_11] : memref<1x128xi32, #tpu.memory_space<vmem>>, vector<1x128xi32>
    %37 = vector.broadcast %36 : vector<1x128xi32> to vector<64x128xi32>
    %38 = arith.cmpi eq, %37, %35 : vector<64x128xi32>
    %cst_12 = arith.constant 1.000000e+00 : f32
    %cst_13 = arith.constant 0.000000e+00 : f32
    %39 = vector.broadcast %cst_12 : f32 to vector<64x128xf32>
    %40 = vector.broadcast %cst_13 : f32 to vector<64x128xf32>
    %41 = arith.select %38, %39, %40 : vector<64x128xi1>, vector<64x128xf32>
    %42 = arith.truncf %41 : vector<64x128xf32> to vector<64x128xbf16>
    %c0_14 = arith.constant 0 : index
    %c0_15 = arith.constant 0 : index
    %43 = vector.load %arg6[%c0_14, %c0_15] : memref<1x128xi32, #tpu.memory_space<vmem>>, vector<1x128xi32>
    %44 = vector.broadcast %43 : vector<1x128xi32> to vector<64x128xi32>
    %45 = arith.cmpi eq, %44, %35 : vector<64x128xi32>
    %cst_16 = arith.constant 1.000000e+00 : f32
    %cst_17 = arith.constant 0.000000e+00 : f32
    %46 = vector.broadcast %cst_16 : f32 to vector<64x128xf32>
    %47 = vector.broadcast %cst_17 : f32 to vector<64x128xf32>
    %48 = arith.select %45, %46, %47 : vector<64x128xi1>, vector<64x128xf32>
    %49 = arith.truncf %48 : vector<64x128xf32> to vector<64x128xbf16>
    %c0_18 = arith.constant 0 : index
    %c0_19 = arith.constant 0 : index
    %50 = vector.load %arg14[%c0_18, %c0_19] : memref<64x128xf32, #tpu.memory_space<vmem>>, vector<64x128xf32>
    %51 = arith.truncf %26 : vector<128x128xf32> to vector<128x128xbf16>
    %cst_20 = arith.constant dense<0.000000e+00> : vector<64x128xf32>
    %52 = tpu.matmul %42, %51, %cst_20 {dimension_numbers = #tpu.dot_dimension_numbers<[1], [0], [0], [1], [0, 0, 1, 1], [], []>} : vector<64x128xbf16>, vector<128x128xbf16>, vector<64x128xf32> -> vector<64x128xf32>
    %53 = arith.addf %50, %52 : vector<64x128xf32>
    %c0_21 = arith.constant 0 : index
    %c0_22 = arith.constant 0 : index
    %54 = vector.load %arg14[%c0_21, %c0_22] : memref<64x128xf32, #tpu.memory_space<vmem>>, vector<64x128xf32>
    tpu.vector_store %arg14[%c0_21, %c0_22], %53 {strides = array<i32>} : memref<64x128xf32, #tpu.memory_space<vmem>>, vector<64x128xf32>,
    %c0_23 = arith.constant 0 : index
    %c0_24 = arith.constant 0 : index
    %55 = vector.load %arg15[%c0_23, %c0_24] : memref<64x128xf32, #tpu.memory_space<vmem>>, vector<64x128xf32>
    %56 = arith.truncf %31 : vector<128x128xf32> to vector<128x128xbf16>
    %cst_25 = arith.constant dense<0.000000e+00> : vector<64x128xf32>
    %57 = tpu.matmul %49, %56, %cst_25 {dimension_numbers = #tpu.dot_dimension_numbers<[1], [0], [0], [1], [0, 0, 1, 1], [], []>} : vector<64x128xbf16>, vector<128x128xbf16>, vector<64x128xf32> -> vector<64x128xf32>
    %58 = arith.addf %55, %57 : vector<64x128xf32>
    %c0_26 = arith.constant 0 : index
    %c0_27 = arith.constant 0 : index
    %59 = vector.load %arg15[%c0_26, %c0_27] : memref<64x128xf32, #tpu.memory_space<vmem>>, vector<64x128xf32>
    tpu.vector_store %arg15[%c0_26, %c0_27], %58 {strides = array<i32>} : memref<64x128xf32, #tpu.memory_space<vmem>>, vector<64x128xf32>,
    %c1_i32 = arith.constant 1 : i32
    %60 = arith.cmpi eq, %arg1, %c1_i32 : i32
    %61 = arith.extui %60 : i1 to i32
    %c0_i32_28 = arith.constant 0 : i32
    %62 = arith.cmpi ne, %61, %c0_i32_28 : i32
    scf.if %62 {
      %c0_29 = arith.constant 0 : index
      %c0_30 = arith.constant 0 : index
      %63 = vector.load %arg7[%c0_29, %c0_30] : memref<64x128xbf16, #tpu.memory_space<vmem>>, vector<64x128xbf16>
      %c0_31 = arith.constant 0 : index
      %c0_32 = arith.constant 0 : index
      %64 = vector.load %arg9[%c0_31, %c0_32] : memref<128x128xbf16, #tpu.memory_space<vmem>>, vector<128x128xbf16>
      %cst_33 = arith.constant dense<0.000000e+00> : vector<64x128xf32>
      %65 = tpu.matmul %63, %64, %cst_33 {dimension_numbers = #tpu.dot_dimension_numbers<[1], [0], [0], [1], [0, 0, 1, 1], [], []>} : vector<64x128xbf16>, vector<128x128xbf16>, vector<64x128xf32> -> vector<64x128xf32>
      %c0_34 = arith.constant 0 : index
      %c0_35 = arith.constant 0 : index
      %66 = vector.load %arg10[%c0_34, %c0_35] : memref<1x128xf32, #tpu.memory_space<vmem>>, vector<1x128xf32>
      %67 = vector.broadcast %66 : vector<1x128xf32> to vector<64x128xf32>
      %68 = arith.addf %65, %67 : vector<64x128xf32>
      %c0_36 = arith.constant 0 : index
      %c0_37 = arith.constant 0 : index
      %69 = vector.load %arg14[%c0_36, %c0_37] : memref<64x128xf32, #tpu.memory_space<vmem>>, vector<64x128xf32>
      %c0_38 = arith.constant 0 : index
      %c0_39 = arith.constant 0 : index
      %70 = vector.load %arg11[%c0_38, %c0_39] : memref<64x1xf32, #tpu.memory_space<vmem>>, vector<64x1xf32>
      %71 = vector.broadcast %70 : vector<64x1xf32> to vector<64x128xf32>
      %72 = arith.mulf %69, %71 : vector<64x128xf32>
      %c0_40 = arith.constant 0 : index
      %c0_41 = arith.constant 0 : index
      %73 = vector.load %arg15[%c0_40, %c0_41] : memref<64x128xf32, #tpu.memory_space<vmem>>, vector<64x128xf32>
      %c0_42 = arith.constant 0 : index
      %c0_43 = arith.constant 0 : index
      %74 = vector.load %arg12[%c0_42, %c0_43] : memref<64x1xf32, #tpu.memory_space<vmem>>, vector<64x1xf32>
      %75 = vector.broadcast %74 : vector<64x1xf32> to vector<64x128xf32>
      %76 = arith.mulf %73, %75 : vector<64x128xf32>
      %77 = arith.addf %72, %76 : vector<64x128xf32>
      %78 = arith.addf %77, %68 : vector<64x128xf32>
      %cst_44 = arith.constant 0.000000e+00 : f32
      %79 = vector.broadcast %cst_44 : f32 to vector<64x128xf32>
      %80 = arith.maximumf %78, %79 : vector<64x128xf32>
      %c0_45 = arith.constant 0 : index
      %c0_46 = arith.constant 0 : index
      %81 = vector.load %arg13[%c0_45, %c0_46] : memref<64x128xf32, #tpu.memory_space<vmem>>, vector<64x128xf32>
      tpu.vector_store %arg13[%c0_45, %c0_46], %80 {strides = array<i32>} : memref<64x128xf32, #tpu.memory_space<vmem>>, vector<64x128xf32>,
    } else {
    }
    return
  }
  func.func @transform_0(%arg0: i32, %arg1: i32) -> (i32, i32) {
    %c0_i32 = arith.constant 0 : i32
    %c0_i32_0 = arith.constant 0 : i32
    return %arg1, %c0_i32 : i32, i32
  }
  func.func @transform_1(%arg0: i32, %arg1: i32) -> (i32, i32) {
    %c0_i32 = arith.constant 0 : i32
    %c0_i32_0 = arith.constant 0 : i32
    return %arg1, %c0_i32 : i32, i32
  }
  func.func @transform_2(%arg0: i32, %arg1: i32) -> (i32, i32) {
    %c0_i32 = arith.constant 0 : i32
    %c0_i32_0 = arith.constant 0 : i32
    return %arg1, %c0_i32 : i32, i32
  }
  func.func @transform_3(%arg0: i32, %arg1: i32) -> (i32, i32) {
    %c0_i32 = arith.constant 0 : i32
    %c0_i32_0 = arith.constant 0 : i32
    return %c0_i32, %arg1 : i32, i32
  }
  func.func @transform_4(%arg0: i32, %arg1: i32) -> (i32, i32) {
    %c0_i32 = arith.constant 0 : i32
    %c0_i32_0 = arith.constant 0 : i32
    return %c0_i32, %arg1 : i32, i32
  }
  func.func @transform_5(%arg0: i32, %arg1: i32) -> (i32, i32) {
    %c0_i32 = arith.constant 0 : i32
    %c0_i32_0 = arith.constant 0 : i32
    return %arg0, %c0_i32 : i32, i32
  }
  func.func @transform_6(%arg0: i32, %arg1: i32) -> (i32, i32) {
    %c0_i32 = arith.constant 0 : i32
    %c0_i32_0 = arith.constant 0 : i32
    %c0_i32_1 = arith.constant 0 : i32
    return %c0_i32, %c0_i32_0 : i32, i32
  }
  func.func @transform_7(%arg0: i32, %arg1: i32) -> (i32, i32) {
    %c0_i32 = arith.constant 0 : i32
    %c0_i32_0 = arith.constant 0 : i32
    %c0_i32_1 = arith.constant 0 : i32
    return %c0_i32, %c0_i32_0 : i32, i32
  }
  func.func @transform_8(%arg0: i32, %arg1: i32) -> (i32, i32) {
    %c0_i32 = arith.constant 0 : i32
    %c0_i32_0 = arith.constant 0 : i32
    %c0_i32_1 = arith.constant 0 : i32
    return %c0_i32, %c0_i32_0 : i32, i32
  }
  func.func @transform_9(%arg0: i32, %arg1: i32) -> (i32, i32) {
    %c0_i32 = arith.constant 0 : i32
    %c0_i32_0 = arith.constant 0 : i32
    return %arg0, %c0_i32 : i32, i32
  }
  func.func @transform_10(%arg0: i32, %arg1: i32) -> (i32, i32) {
    %c0_i32 = arith.constant 0 : i32
    %c0_i32_0 = arith.constant 0 : i32
    return %arg0, %c0_i32 : i32, i32
  }
  func.func @transform_11(%arg0: i32, %arg1: i32) -> (i32, i32) {
    %c0_i32 = arith.constant 0 : i32
    %c0_i32_0 = arith.constant 0 : i32
    return %arg0, %c0_i32 : i32, i32
  }
}

module attributes {stable_mosaic.version = 11 : i64} {
  func.func @_rgcn_fused_kernel(%arg0: i32, %arg1: i32, %arg2: memref<128x128xbf16, #tpu.memory_space<vmem>>, %arg3: memref<128x256xbf16, #tpu.memory_space<vmem>>, %arg4: memref<128x256xbf16, #tpu.memory_space<vmem>>, %arg5: memref<1x128xi32, #tpu.memory_space<vmem>>, %arg6: memref<1x128xi32, #tpu.memory_space<vmem>>, %arg7: memref<64x128xbf16, #tpu.memory_space<vmem>>, %arg8: memref<128x4xbf16, #tpu.memory_space<vmem>>, %arg9: memref<128x128xbf16, #tpu.memory_space<vmem>>, %arg10: memref<1x128xf32, #tpu.memory_space<vmem>>, %arg11: memref<64x1xf32, #tpu.memory_space<vmem>>, %arg12: memref<64x1xf32, #tpu.memory_space<vmem>>, %arg13: memref<64x128xf32, #tpu.memory_space<vmem>>, %arg14: memref<64x128xf32, #tpu.memory_space<vmem>>, %arg15: memref<64x128xf32, #tpu.memory_space<vmem>>) attributes {dimension_semantics = [#tpu.dimension_semantics<parallel>, #tpu.dimension_semantics<arbitrary>], iteration_bounds = array<i64: 2, 2>, scalar_prefetch = 0 : i64, scratch_operands = 2 : i64, tpu.core_type = #tpu.core_type<tc>, window_params = [{transform_indices = @transform_0, window_bounds = array<i64: 128, 128>}, {transform_indices = @transform_1, window_bounds = array<i64: 128, 256>}, {transform_indices = @transform_2, window_bounds = array<i64: 128, 256>}, {transform_indices = @transform_3, window_bounds = array<i64: 1, 128>}, {transform_indices = @transform_4, window_bounds = array<i64: 1, 128>}, {transform_indices = @transform_5, window_bounds = array<i64: 64, 128>}, {pipeline_mode = #tpu.pipeline_mode<synchronous>, transform_indices = @transform_6, window_bounds = array<i64: 128, 4>}, {pipeline_mode = #tpu.pipeline_mode<synchronous>, transform_indices = @transform_7, window_bounds = array<i64: 128, 128>}, {pipeline_mode = #tpu.pipeline_mode<synchronous>, transform_indices = @transform_8, window_bounds = array<i64: 1, 128>}, {transform_indices = @transform_9, window_bounds = array<i64: 64, 1>}, {transform_indices = @transform_10, window_bounds = array<i64: 64, 1>}, {transform_indices = @transform_11, window_bounds = array<i64: 64, 128>}]} {
    %c0_i32 = arith.constant 0 : i32
    %0 = arith.cmpi eq, %arg1, %c0_i32 : i32
    %1 = arith.extui %0 : i1 to i32
    %c0_i32_0 = arith.constant 0 : i32
    %2 = arith.cmpi ne, %1, %c0_i32_0 : i32
    scf.if %2 {
      %cst_29 = arith.constant 0.000000e+00 : f32
      %63 = vector.broadcast %cst_29 : f32 to vector<64x128xf32>
      %c0_30 = arith.constant 0 : index
      %c0_31 = arith.constant 0 : index
      %64 = vector.load %arg14[%c0_30, %c0_31] : memref<64x128xf32, #tpu.memory_space<vmem>>, vector<64x128xf32>
      tpu.vector_store %arg14[%c0_30, %c0_31], %63 {strides = array<i32>} : memref<64x128xf32, #tpu.memory_space<vmem>>, vector<64x128xf32>,
      %cst_32 = arith.constant 0.000000e+00 : f32
      %65 = vector.broadcast %cst_32 : f32 to vector<64x128xf32>
      %c0_33 = arith.constant 0 : index
      %c0_34 = arith.constant 0 : index
      %66 = vector.load %arg15[%c0_33, %c0_34] : memref<64x128xf32, #tpu.memory_space<vmem>>, vector<64x128xf32>
      tpu.vector_store %arg15[%c0_33, %c0_34], %65 {strides = array<i32>} : memref<64x128xf32, #tpu.memory_space<vmem>>, vector<64x128xf32>,
    } else {
    }
    %c0 = arith.constant 0 : index
    %c0_1 = arith.constant 0 : index
    %3 = vector.load %arg2[%c0, %c0_1] : memref<128x128xbf16, #tpu.memory_space<vmem>>, vector<128x128xbf16>
    %c0_2 = arith.constant 0 : index
    %c0_3 = arith.constant 0 : index
    %4 = vector.load %arg8[%c0_2, %c0_3] : memref<128x4xbf16, #tpu.memory_space<vmem>>, vector<128x4xbf16>
    %cst = arith.constant dense<0.000000e+00> : vector<128x4xf32>
    %5 = tpu.matmul %3, %4, %cst {dimension_numbers = #tpu.dot_dimension_numbers<[1], [0], [0], [1], [0, 0, 1, 1], [], []>} : vector<128x128xbf16>, vector<128x4xbf16>, vector<128x4xf32> -> vector<128x4xf32>
    %c0_4 = arith.constant 0 : index
    %c0_5 = arith.constant 0 : index
    %6 = vector.load %arg3[%c0_4, %c0_5] : memref<128x256xbf16, #tpu.memory_space<vmem>>, vector<128x256xbf16>
    %7 = arith.extf %6 : vector<128x256xbf16> to vector<128x256xf32>
    %c0_6 = arith.constant 0 : index
    %c0_7 = arith.constant 0 : index
    %8 = vector.load %arg4[%c0_6, %c0_7] : memref<128x256xbf16, #tpu.memory_space<vmem>>, vector<128x256xbf16>
    %9 = arith.extf %8 : vector<128x256xbf16> to vector<128x256xf32>
    %cst_8 = arith.constant 0.000000e+00 : f32
    %10 = vector.broadcast %cst_8 : f32 to vector<128x128xf32>
    %cst_9 = arith.constant 0.000000e+00 : f32
    %11 = vector.broadcast %cst_9 : f32 to vector<128x128xf32>
    %12 = vector.extract_strided_slice %5 {offsets = [0, 0], sizes = [128, 1], strides = [1, 1]} : vector<128x4xf32> to vector<128x1xf32>
    %13 = vector.extract_strided_slice %7 {offsets = [0, 0], sizes = [128, 128], strides = [1, 1]} : vector<128x256xf32> to vector<128x128xf32>
    %14 = vector.broadcast %12 : vector<128x1xf32> to vector<128x128xf32>
    %15 = arith.mulf %14, %13 : vector<128x128xf32>
    %16 = arith.addf %10, %15 : vector<128x128xf32>
    %17 = vector.extract_strided_slice %5 {offsets = [0, 2], sizes = [128, 1], strides = [1, 1]} : vector<128x4xf32> to vector<128x1xf32>
    %18 = vector.extract_strided_slice %9 {offsets = [0, 0], sizes = [128, 128], strides = [1, 1]} : vector<128x256xf32> to vector<128x128xf32>
    %19 = vector.broadcast %17 : vector<128x1xf32> to vector<128x128xf32>
    %20 = arith.mulf %19, %18 : vector<128x128xf32>
    %21 = arith.addf %11, %20 : vector<128x128xf32>
    %22 = vector.extract_strided_slice %5 {offsets = [0, 1], sizes = [128, 1], strides = [1, 1]} : vector<128x4xf32> to vector<128x1xf32>
    %23 = vector.extract_strided_slice %7 {offsets = [0, 128], sizes = [128, 128], strides = [1, 1]} : vector<128x256xf32> to vector<128x128xf32>
    %24 = vector.broadcast %22 : vector<128x1xf32> to vector<128x128xf32>
    %25 = arith.mulf %24, %23 : vector<128x128xf32>
    %26 = arith.addf %16, %25 : vector<128x128xf32>
    %27 = vector.extract_strided_slice %5 {offsets = [0, 3], sizes = [128, 1], strides = [1, 1]} : vector<128x4xf32> to vector<128x1xf32>
    %28 = vector.extract_strided_slice %9 {offsets = [0, 128], sizes = [128, 128], strides = [1, 1]} : vector<128x256xf32> to vector<128x128xf32>
    %29 = vector.broadcast %27 : vector<128x1xf32> to vector<128x128xf32>
    %30 = arith.mulf %29, %28 : vector<128x128xf32>
    %31 = arith.addf %21, %30 : vector<128x128xf32>
    %c64_i32 = arith.constant 64 : i32
    %32 = arith.muli %arg0, %c64_i32 : i32
    %33 = tpu.iota {dimensions = array<i32: 0>} : vector<64x128xi32>
    %34 = vector.broadcast %32 : i32 to vector<64x128xi32>
    %35 = arith.addi %34, %33 : vector<64x128xi32>
    %c0_10 = arith.constant 0 : index
    %c0_11 = arith.constant 0 : index
    %36 = vector.load %arg5[%c0_10, %c0_11] : memref<1x128xi32, #tpu.memory_space<vmem>>, vector<1x128xi32>
    %37 = vector.broadcast %36 : vector<1x128xi32> to vector<64x128xi32>
    %38 = arith.cmpi eq, %37, %35 : vector<64x128xi32>
    %cst_12 = arith.constant 1.000000e+00 : f32
    %cst_13 = arith.constant 0.000000e+00 : f32
    %39 = vector.broadcast %cst_12 : f32 to vector<64x128xf32>
    %40 = vector.broadcast %cst_13 : f32 to vector<64x128xf32>
    %41 = arith.select %38, %39, %40 : vector<64x128xi1>, vector<64x128xf32>
    %42 = arith.truncf %41 : vector<64x128xf32> to vector<64x128xbf16>
    %c0_14 = arith.constant 0 : index
    %c0_15 = arith.constant 0 : index
    %43 = vector.load %arg6[%c0_14, %c0_15] : memref<1x128xi32, #tpu.memory_space<vmem>>, vector<1x128xi32>
    %44 = vector.broadcast %43 : vector<1x128xi32> to vector<64x128xi32>
    %45 = arith.cmpi eq, %44, %35 : vector<64x128xi32>
    %cst_16 = arith.constant 1.000000e+00 : f32
    %cst_17 = arith.constant 0.000000e+00 : f32
    %46 = vector.broadcast %cst_16 : f32 to vector<64x128xf32>
    %47 = vector.broadcast %cst_17 : f32 to vector<64x128xf32>
    %48 = arith.select %45, %46, %47 : vector<64x128xi1>, vector<64x128xf32>
    %49 = arith.truncf %48 : vector<64x128xf32> to vector<64x128xbf16>
    %c0_18 = arith.constant 0 : index
    %c0_19 = arith.constant 0 : index
    %50 = vector.load %arg14[%c0_18, %c0_19] : memref<64x128xf32, #tpu.memory_space<vmem>>, vector<64x128xf32>
    %51 = arith.truncf %26 : vector<128x128xf32> to vector<128x128xbf16>
    %cst_20 = arith.constant dense<0.000000e+00> : vector<64x128xf32>
    %52 = tpu.matmul %42, %51, %cst_20 {dimension_numbers = #tpu.dot_dimension_numbers<[1], [0], [0], [1], [0, 0, 1, 1], [], []>} : vector<64x128xbf16>, vector<128x128xbf16>, vector<64x128xf32> -> vector<64x128xf32>
    %53 = arith.addf %50, %52 : vector<64x128xf32>
    %c0_21 = arith.constant 0 : index
    %c0_22 = arith.constant 0 : index
    %54 = vector.load %arg14[%c0_21, %c0_22] : memref<64x128xf32, #tpu.memory_space<vmem>>, vector<64x128xf32>
    tpu.vector_store %arg14[%c0_21, %c0_22], %53 {strides = array<i32>} : memref<64x128xf32, #tpu.memory_space<vmem>>, vector<64x128xf32>,
    %c0_23 = arith.constant 0 : index
    %c0_24 = arith.constant 0 : index
    %55 = vector.load %arg15[%c0_23, %c0_24] : memref<64x128xf32, #tpu.memory_space<vmem>>, vector<64x128xf32>
    %56 = arith.truncf %31 : vector<128x128xf32> to vector<128x128xbf16>
    %cst_25 = arith.constant dense<0.000000e+00> : vector<64x128xf32>
    %57 = tpu.matmul %49, %56, %cst_25 {dimension_numbers = #tpu.dot_dimension_numbers<[1], [0], [0], [1], [0, 0, 1, 1], [], []>} : vector<64x128xbf16>, vector<128x128xbf16>, vector<64x128xf32> -> vector<64x128xf32>
    %58 = arith.addf %55, %57 : vector<64x128xf32>
    %c0_26 = arith.constant 0 : index
    %c0_27 = arith.constant 0 : index
    %59 = vector.load %arg15[%c0_26, %c0_27] : memref<64x128xf32, #tpu.memory_space<vmem>>, vector<64x128xf32>
    tpu.vector_store %arg15[%c0_26, %c0_27], %58 {strides = array<i32>} : memref<64x128xf32, #tpu.memory_space<vmem>>, vector<64x128xf32>,
    %c1_i32 = arith.constant 1 : i32
    %60 = arith.cmpi eq, %arg1, %c1_i32 : i32
    %61 = arith.extui %60 : i1 to i32
    %c0_i32_28 = arith.constant 0 : i32
    %62 = arith.cmpi ne, %61, %c0_i32_28 : i32
    scf.if %62 {
      %c0_29 = arith.constant 0 : index
      %c0_30 = arith.constant 0 : index
      %63 = vector.load %arg7[%c0_29, %c0_30] : memref<64x128xbf16, #tpu.memory_space<vmem>>, vector<64x128xbf16>
      %c0_31 = arith.constant 0 : index
      %c0_32 = arith.constant 0 : index
      %64 = vector.load %arg9[%c0_31, %c0_32] : memref<128x128xbf16, #tpu.memory_space<vmem>>, vector<128x128xbf16>
      %cst_33 = arith.constant dense<0.000000e+00> : vector<64x128xf32>
      %65 = tpu.matmul %63, %64, %cst_33 {dimension_numbers = #tpu.dot_dimension_numbers<[1], [0], [0], [1], [0, 0, 1, 1], [], []>} : vector<64x128xbf16>, vector<128x128xbf16>, vector<64x128xf32> -> vector<64x128xf32>
      %c0_34 = arith.constant 0 : index
      %c0_35 = arith.constant 0 : index
      %66 = vector.load %arg10[%c0_34, %c0_35] : memref<1x128xf32, #tpu.memory_space<vmem>>, vector<1x128xf32>
      %67 = vector.broadcast %66 : vector<1x128xf32> to vector<64x128xf32>
      %68 = arith.addf %65, %67 : vector<64x128xf32>
      %c0_36 = arith.constant 0 : index
      %c0_37 = arith.constant 0 : index
      %69 = vector.load %arg14[%c0_36, %c0_37] : memref<64x128xf32, #tpu.memory_space<vmem>>, vector<64x128xf32>
      %c0_38 = arith.constant 0 : index
      %c0_39 = arith.constant 0 : index
      %70 = vector.load %arg11[%c0_38, %c0_39] : memref<64x1xf32, #tpu.memory_space<vmem>>, vector<64x1xf32>
      %71 = vector.broadcast %70 : vector<64x1xf32> to vector<64x128xf32>
      %72 = arith.mulf %69, %71 : vector<64x128xf32>
      %c0_40 = arith.constant 0 : index
      %c0_41 = arith.constant 0 : index
      %73 = vector.load %arg15[%c0_40, %c0_41] : memref<64x128xf32, #tpu.memory_space<vmem>>, vector<64x128xf32>
      %c0_42 = arith.constant 0 : index
      %c0_43 = arith.constant 0 : index
      %74 = vector.load %arg12[%c0_42, %c0_43] : memref<64x1xf32, #tpu.memory_space<vmem>>, vector<64x1xf32>
      %75 = vector.broadcast %74 : vector<64x1xf32> to vector<64x128xf32>
      %76 = arith.mulf %73, %75 : vector<64x128xf32>
      %77 = arith.addf %72, %76 : vector<64x128xf32>
      %78 = arith.addf %77, %68 : vector<64x128xf32>
      %cst_44 = arith.constant 0.000000e+00 : f32
      %79 = vector.broadcast %cst_44 : f32 to vector<64x128xf32>
      %80 = arith.maximumf %78, %79 : vector<64x128xf32>
      %c0_45 = arith.constant 0 : index
      %c0_46 = arith.constant 0 : index
      %81 = vector.load %arg13[%c0_45, %c0_46] : memref<64x128xf32, #tpu.memory_space<vmem>>, vector<64x128xf32>
      tpu.vector_store %arg13[%c0_45, %c0_46], %80 {strides = array<i32>} : memref<64x128xf32, #tpu.memory_space<vmem>>, vector<64x128xf32>,
    } else {
    }
    return
  }
  func.func @transform_0(%arg0: i32, %arg1: i32) -> (i32, i32) {
    %c0_i32 = arith.constant 0 : i32
    %c0_i32_0 = arith.constant 0 : i32
    return %arg1, %c0_i32 : i32, i32
  }
  func.func @transform_1(%arg0: i32, %arg1: i32) -> (i32, i32) {
    %c0_i32 = arith.constant 0 : i32
    %c0_i32_0 = arith.constant 0 : i32
    return %arg1, %c0_i32 : i32, i32
  }
  func.func @transform_2(%arg0: i32, %arg1: i32) -> (i32, i32) {
    %c0_i32 = arith.constant 0 : i32
    %c0_i32_0 = arith.constant 0 : i32
    return %arg1, %c0_i32 : i32, i32
  }
  func.func @transform_3(%arg0: i32, %arg1: i32) -> (i32, i32) {
    %c0_i32 = arith.constant 0 : i32
    %c0_i32_0 = arith.constant 0 : i32
    return %c0_i32, %arg1 : i32, i32
  }
  func.func @transform_4(%arg0: i32, %arg1: i32) -> (i32, i32) {
    %c0_i32 = arith.constant 0 : i32
    %c0_i32_0 = arith.constant 0 : i32
    return %c0_i32, %arg1 : i32, i32
  }
  func.func @transform_5(%arg0: i32, %arg1: i32) -> (i32, i32) {
    %c0_i32 = arith.constant 0 : i32
    %c0_i32_0 = arith.constant 0 : i32
    return %arg0, %c0_i32 : i32, i32
  }
  func.func @transform_6(%arg0: i32, %arg1: i32) -> (i32, i32) {
    %c0_i32 = arith.constant 0 : i32
    %c0_i32_0 = arith.constant 0 : i32
    %c0_i32_1 = arith.constant 0 : i32
    return %c0_i32, %c0_i32_0 : i32, i32
  }
  func.func @transform_7(%arg0: i32, %arg1: i32) -> (i32, i32) {
    %c0_i32 = arith.constant 0 : i32
    %c0_i32_0 = arith.constant 0 : i32
    %c0_i32_1 = arith.constant 0 : i32
    return %c0_i32, %c0_i32_0 : i32, i32
  }
  func.func @transform_8(%arg0: i32, %arg1: i32) -> (i32, i32) {
    %c0_i32 = arith.constant 0 : i32
    %c0_i32_0 = arith.constant 0 : i32
    %c0_i32_1 = arith.constant 0 : i32
    return %c0_i32, %c0_i32_0 : i32, i32
  }
  func.func @transform_9(%arg0: i32, %arg1: i32) -> (i32, i32) {
    %c0_i32 = arith.constant 0 : i32
    %c0_i32_0 = arith.constant 0 : i32
    return %arg0, %c0_i32 : i32, i32
  }
  func.func @transform_10(%arg0: i32, %arg1: i32) -> (i32, i32) {
    %c0_i32 = arith.constant 0 : i32
    %c0_i32_0 = arith.constant 0 : i32
    return %arg0, %c0_i32 : i32, i32
  }
  func.func @transform_11(%arg0: i32, %arg1: i32) -> (i32, i32) {
    %c0_i32 = arith.constant 0 : i32
    %c0_i32_0 = arith.constant 0 : i32
    return %arg0, %c0_i32 : i32, i32
  }
}

</mosaic_0001>

<llo_original>
// kernel: rgcn_forward.4
$region0: #{rgcn_forward.4}
  #allocation0 [shape = 'u32[]', space=smem, size = 0x4, offset = 0x4, fixed_abs, tag = 'smem constant byte address 0x4 - core index']
  #allocation1 [shape = 'u32[72,128]{1,0:T(1,128)}', space=vmem, size = 0x9000, scoped, tag = 'internal scratch']
  %s0 = inlined_call_operand.vmem [shape: bf16[128,128], index: 0, kind: input, shape index: {}]
  %s1 = inlined_call_operand.vmem [shape: bf16[128,256], index: 1, kind: input, shape index: {}]
  %s2 = inlined_call_operand.vmem [shape: bf16[128,256], index: 2, kind: output, shape index: {}]
  %s3 = sld [smem:[#allocation0]]
  $region41: #{rgcn_forward.4} parent=0
    _
  %s5 = ssub.s32 1, %s3
  %s6 = scalar_select 0, %s5, %s3
  loop: start=0, step=1, limit=4
  $region2: #{rgcn_forward.4} parent=0 // loop_pre_header
    _
  $region3: #{rgcn_forward.4} parent=0 // loop_header
    %s8 = sphi 0, %s12
    %p9 = scmp.ge.s32.totalorder %s8, 4
    %s18 = sphi 0, %s20
    %s21 = sphi 0, %s18
    %s22 = sphi 0, %s21
    %s38 = sphi 0, %s22
    %s42 = sphi 0, %s42
    %s44 = sphi 0, %s42
    %s45 = sphi 0, %s44
    %s59 = sphi 0, %s45
    %s65 = sphi 0, %s67
    %s68 = sphi 0, %s65
    %s69 = sphi 0, %s68
    %s85 = sphi 0, %s69
  $region4: #{rgcn_forward.4} parent=0 // loop_header_branch
    %11 = sbr.rel (%p9) target = $region8
  $region5: #{rgcn_forward.4} parent=0 // loop_body
    %s13 = ssub.s32 %s8, 1
    %s14 = ssub.s32 %s8, 2
    %s15 = sadd.s32 %s8, 1
    %s16 = ssub.s32 %s8, %s15
    %p17 = scmp.eq.s32.totalorder %s16, 0
    %s19 = sadd.s32 %s18, 1
    %s20 = scalar_select %p17, %s18, %s19
    %p23 = pneg %p17
    %p24 = scmp.eq.s32.totalorder %s8, 1
    %p25 = por %p23, %p24
    %p26 = scmp.ne.s32.totalorder %s18, %s21
    %p27 = scmp.eq.s32.totalorder %s8, 0
    %p28 = por %p26, %p27
    %p29 = scmp.ne.s32.totalorder %s18, %s21
    %p30 = scmp.eq.s32.totalorder %s13, 1
    %p31 = por %p29, %p30
    %p32 = scmp.ne.s32.totalorder %s21, %s22
    %p33 = scmp.eq.s32.totalorder %s13, 0
    %p34 = por %p32, %p33
    %p35 = scmp.ne.s32.totalorder %s21, %s22
    %p36 = scmp.eq.s32.totalorder %s14, 1
    %p37 = por %p35, %p36
    %p39 = scmp.ne.s32.totalorder %s22, %s38
    %p40 = scmp.eq.s32.totalorder %s14, 0
    %p41 = por %p39, %p40
    %s43 = sadd.s32 %s42, 1
    %p46 = scmp.eq.s32.totalorder %s8, 1
    %p47 = scmp.ne.s32.totalorder %s42, %s44
    %p48 = scmp.eq.s32.totalorder %s8, 0
    %p49 = por %p47, %p48
    %p50 = scmp.ne.s32.totalorder %s42, %s44
    %p51 = scmp.eq.s32.totalorder %s13, 1
    %p52 = por %p50, %p51
    %p53 = scmp.ne.s32.totalorder %s44, %s45
    %p54 = scmp.eq.s32.totalorder %s13, 0
    %p55 = por %p53, %p54
    %p56 = scmp.ne.s32.totalorder %s44, %s45
    %p57 = scmp.eq.s32.totalorder %s14, 1
    %p58 = por %p56, %p57
    %p60 = scmp.ne.s32.totalorder %s45, %s59
    %p61 = scmp.eq.s32.totalorder %s14, 0
    %p62 = por %p60, %p61
    %s63 = ssub.s32 %s8, %s15
    %p64 = scmp.eq.s32.totalorder %s63, 0
    %s66 = sadd.s32 %s65, 1
    %s67 = scalar_select %p64, %s65, %s66
    %p70 = pneg %p64
    %p71 = scmp.eq.s32.totalorder %s8, 1
    %p72 = por %p70, %p71
    %p73 = scmp.ne.s32.totalorder %s65, %s68
    %p74 = scmp.eq.s32.totalorder %s8, 0
    %p75 = por %p73, %p74
    %p76 = scmp.ne.s32.totalorder %s65, %s68
    %p77 = scmp.eq.s32.totalorder %s13, 1
    %p78 = por %p76, %p77
    %p79 = scmp.ne.s32.totalorder %s68, %s69
    %p80 = scmp.eq.s32.totalorder %s13, 0
    %p81 = por %p79, %p80
    %p82 = scmp.ne.s32.totalorder %s68, %s69
    %p83 = scmp.eq.s32.totalorder %s14, 1
    %p84 = por %p82, %p83
    %p86 = scmp.ne.s32.totalorder %s69, %s85
    %p87 = scmp.eq.s32.totalorder %s14, 0
    %p88 = por %p86, %p87
    %p89 = scmp.le.s32.totalorder 1, %s8
    %p90 = scmp.lt.s32.totalorder %s8, 3
    %p91 = pnand %p89, %p90
    %p92 = pneg %p91
    // Predicated region
    $region9: #{rgcn_forward.4} parent=5 // pred_check
      _
    $region10: #{rgcn_forward.4} parent=5 // pred_check_branch
      %94 = sbr.rel (%p91) target = $region12
    $region11: #{rgcn_forward.4} parent=5 // pred_region
      %s95 = ssub.s32 %s8, 1
      // Predicated region
      $region13: #{rgcn_forward.4} parent=11 // pred_check
        %p96 = pneg %p55
      $region14: #{rgcn_forward.4} parent=11 // pred_check_branch
        %98 = sbr.rel (%p96) target = $region16
      $region15: #{rgcn_forward.4} parent=11 // pred_region
        _
      $region16: #{rgcn_forward.4} parent=11 // pred_fallthru
        _
    $region12: #{rgcn_forward.4} parent=5 // pred_fallthru
      _
    %p99 = scmp.lt.s32.totalorder %s8, 2
    // Predicated region
    $region17: #{rgcn_forward.4} parent=5 // pred_check
      %p100 = pneg %p99
    $region18: #{rgcn_forward.4} parent=5 // pred_check_branch
      %102 = sbr.rel (%p100) target = $region20
    $region19: #{rgcn_forward.4} parent=5 // pred_region
      // Predicated region
      $region21: #{rgcn_forward.4} parent=19 // pred_check
        %p103 = pneg %p28
      $region22: #{rgcn_forward.4} parent=19 // pred_check_branch
        %105 = sbr.rel (%p103) target = $region24
      $region23: #{rgcn_forward.4} parent=19 // pred_region
        %s106 = smul.u32 8, %s8
        %p107 = scmp.lt.s32.totalorder %s106, 15
        %s108 = scalar_select %p107, %s106, 15
        %s109 = smul.addr %s108, 4
        %s110 = scalar_lea.vmem %s0, %s109
        %s111 = smul.u32 8, %s8
      $region24: #{rgcn_forward.4} parent=19 // pred_fallthru
        _
    $region20: #{rgcn_forward.4} parent=5 // pred_fallthru
      _
    %p112 = scmp.le.s32.totalorder 1, %s8
    %p113 = scmp.lt.s32.totalorder %s8, 3
    %p114 = pnand %p112, %p113
    %p115 = pneg %p114
    // Predicated region
    $region25: #{rgcn_forward.4} parent=5 // pred_check
      _
    $region26: #{rgcn_forward.4} parent=5 // pred_check_branch
      %117 = sbr.rel (%p114) target = $region28
    $region27: #{rgcn_forward.4} parent=5 // pred_region
      %s118 = ssub.s32 %s8, 1
      %s119 = smul.u32 8, %s13
      %p120 = scmp.lt.s32.totalorder %s119, 15
      %s121 = scalar_select %p120, %s119, 15
      %s122 = smul.addr %s121, 4
      %s123 = scalar_lea.vmem %s0, %s122
      %p124 = pneg %p34
      %p125 = pneg %p31
      %p126 = pneg %p55
      %p127 = pneg %p52
      %p128 = pneg %p81
      %p129 = pneg %p78
      %s130 = smul.u32 8, %s13
      %p131 = scmp.lt.s32.totalorder %s130, 15
      %s132 = scalar_select %p131, %s130, 15
      %s133 = smul.addr %s132, 2
      %s134 = smul.addr %s133, 4
      %s135 = scalar_lea.vmem %s2, %s134
      %s136 = smul.u32 8, %s13
      %p137 = scmp.lt.s32.totalorder %s136, 15
      %s138 = scalar_select %p137, %s136, 15
      %s139 = smul.addr %s138, 4
      %s140 = scalar_lea.vmem %s0, %s139
      %s141 = smul.u32 8, %s13
      %s142 = smul.u32 8, %s13
      %p143 = scmp.lt.s32.totalorder %s142, 15
      %s144 = scalar_select %p143, %s142, 15
      %s145 = smul.addr %s144, 2
      %s146 = smul.addr %s145, 4
      %s147 = scalar_lea.vmem %s2, %s146
      %s148 = smul.u32 8, %s13
      %v149 = vld [vmem:[%s140] sm:$0xf]
      %v150 = vld [vmem:[%s140 + $0x4] sm:$0xf]
      %v151 = vld [vmem:[%s140 + $0x8] sm:$0xf]
      %v152 = vld [vmem:[%s140 + $0xc] sm:$0xf]
      %v153 = vld [vmem:[%s140 + $0x10] sm:$0xf]
      %v154 = vld [vmem:[%s140 + $0x14] sm:$0xf]
      %v155 = vld [vmem:[%s140 + $0x18] sm:$0xf]
      %v156 = vld [vmem:[%s140 + $0x1c] sm:$0xf]
      %v157 = vld [vmem:[%s1] sm:$0xff]
      %v158 = vld [vmem:[%s1 + $0x8] sm:$0xff]
      %v159 = vld [vmem:[%s1 + $0x10] sm:$0xff]
      %v160 = vld [vmem:[%s1 + $0x18] sm:$0xff]
      %v161 = vld [vmem:[%s1 + $0x20] sm:$0xff]
      %v162 = vld [vmem:[%s1 + $0x28] sm:$0xff]
      %v163 = vld [vmem:[%s1 + $0x30] sm:$0xff]
      %v164 = vld [vmem:[%s1 + $0x38] sm:$0xff]
      %v165 = vld [vmem:[%s1 + $0x40] sm:$0xff]
      %v166 = vld [vmem:[%s1 + $0x48] sm:$0xff]
      %v167 = vld [vmem:[%s1 + $0x50] sm:$0xff]
      %v168 = vld [vmem:[%s1 + $0x58] sm:$0xff]
      %v169 = vld [vmem:[%s1 + $0x60] sm:$0xff]
      %v170 = vld [vmem:[%s1 + $0x68] sm:$0xff]
      %v171 = vld [vmem:[%s1 + $0x70] sm:$0xff]
      %v172 = vld [vmem:[%s1 + $0x78] sm:$0xff]
      %v181 = vunpack.c.l.b16 %v149
      %v182 = vunpack.c.l.b16 %v150
      %v183 = vunpack.c.l.b16 %v151
      %v184 = vunpack.c.l.b16 %v152
      %v185 = vunpack.c.l.b16 %v153
      %v186 = vunpack.c.l.b16 %v154
      %v187 = vunpack.c.l.b16 %v155
      %v188 = vunpack.c.l.b16 %v156
      %v189 = vpack.c.b16 %v182, %v181
      %v190 = vpack.c.b16 %v184, %v183
      %v191 = vpack.c.b16 %v186, %v185
      %v192 = vpack.c.b16 %v188, %v187
      %v213 = vunpack.c.l.b16 %v157
      %v214 = vunpack.c.h.b16 %v157
      %v215 = vunpack.c.l.b16 %v158
      %v216 = vunpack.c.h.b16 %v158
      %v217 = vunpack.c.l.b16 %v159
      %v218 = vunpack.c.h.b16 %v159
      %v219 = vunpack.c.l.b16 %v160
      %v220 = vunpack.c.h.b16 %v160
      %v221 = vunpack.c.l.b16 %v161
      %v222 = vunpack.c.h.b16 %v161
      %v223 = vunpack.c.l.b16 %v162
      %v224 = vunpack.c.h.b16 %v162
      %v225 = vunpack.c.l.b16 %v163
      %v226 = vunpack.c.h.b16 %v163
      %v227 = vunpack.c.l.b16 %v164
      %v228 = vunpack.c.h.b16 %v164
      %v229 = vunpack.c.l.b16 %v165
      %v230 = vunpack.c.h.b16 %v165
      %v231 = vunpack.c.l.b16 %v166
      %v232 = vunpack.c.h.b16 %v166
      %v233 = vunpack.c.l.b16 %v167
      %v234 = vunpack.c.h.b16 %v167
      %v235 = vunpack.c.l.b16 %v168
      %v236 = vunpack.c.h.b16 %v168
      %v237 = vunpack.c.l.b16 %v169
      %v238 = vunpack.c.h.b16 %v169
      %v239 = vunpack.c.l.b16 %v170
      %v240 = vunpack.c.h.b16 %v170
      %v241 = vunpack.c.l.b16 %v171
      %v242 = vunpack.c.h.b16 %v171
      %v243 = vunpack.c.l.b16 %v172
      %v244 = vunpack.c.h.b16 %v172
      %v245 = vpack.c.b16 %v215, %v213
      %v246 = vpack.c.b16 %v216, %v214
      %v247 = vpack.c.b16 %v219, %v217
      %v248 = vpack.c.b16 %v220, %v218
      %v249 = vpack.c.b16 %v223, %v221
      %v250 = vpack.c.b16 %v224, %v222
      %v251 = vpack.c.b16 %v227, %v225
      %v252 = vpack.c.b16 %v228, %v226
      %v253 = vpack.c.b16 %v231, %v229
      %v254 = vpack.c.b16 %v232, %v230
      %v255 = vpack.c.b16 %v235, %v233
      %v256 = vpack.c.b16 %v236, %v234
      %v257 = vpack.c.b16 %v239, %v237
      %v258 = vpack.c.b16 %v240, %v238
      %v259 = vpack.c.b16 %v243, %v241
      %v260 = vpack.c.b16 %v244, %v242
      %277 = vmatpush.bf16.msra.mxu0 %v259
      %278 = vmatpush.bf16.msra.mxu0 %v257
      %279 = vmatpush.bf16.msra.mxu0 %v255
      %280 = vmatpush.bf16.msra.mxu0 %v253
      %281 = vmatpush.bf16.msra.mxu0 %v251
      %282 = vmatpush.bf16.msra.mxu0 %v249
      %283 = vmatpush.bf16.msra.mxu0 %v247
      %284 = vmatpush.bf16.msra.mxu0 %v245
      %285 = vmatmul.bf16.gmra.mxu0 %v189
      %v286 = vpop.f32.mrf.mxu0
      %v287 = vadd.f32 0.0, %v286
      %v288 = vpop.f32.mrf.mxu0
      %v289 = vadd.f32 0.0, %v288
      %290 = vmatmul.bf16.gmra.mxu0 %v190
      %v291 = vpop.f32.mrf.mxu0
      %v292 = vadd.f32 0.0, %v291
      %v293 = vpop.f32.mrf.mxu0
      %v294 = vadd.f32 0.0, %v293
      %295 = vmatmul.bf16.gmra.mxu0 %v191
      %v296 = vpop.f32.mrf.mxu0
      %v297 = vadd.f32 0.0, %v296
      %v298 = vpop.f32.mrf.mxu0
      %v299 = vadd.f32 0.0, %v298
      %300 = vmatmul.bf16.gmra.mxu0 %v192
      %v301 = vpop.f32.mrf.mxu0
      %v302 = vadd.f32 0.0, %v301
      %v303 = vpop.f32.mrf.mxu0
      %v304 = vadd.f32 0.0, %v303
      %305 = vdwg.mxu0
      %306 = vmatpush.bf16.msra.mxu0 %v260
      %307 = vmatpush.bf16.msra.mxu0 %v258
      %308 = vmatpush.bf16.msra.mxu0 %v256
      %309 = vmatpush.bf16.msra.mxu0 %v254
      %310 = vmatpush.bf16.msra.mxu0 %v252
      %311 = vmatpush.bf16.msra.mxu0 %v250
      %312 = vmatpush.bf16.msra.mxu0 %v248
      %313 = vmatpush.bf16.msra.mxu0 %v246
      %314 = vmatmul.bf16.gmra.mxu0 %v189
      %v315 = vpop.f32.mrf.mxu0
      %v316 = vadd.f32 0.0, %v315
      %v317 = vpop.f32.mrf.mxu0
      %v318 = vadd.f32 0.0, %v317
      %319 = vmatmul.bf16.gmra.mxu0 %v190
      %v320 = vpop.f32.mrf.mxu0
      %v321 = vadd.f32 0.0, %v320
      %v322 = vpop.f32.mrf.mxu0
      %v323 = vadd.f32 0.0, %v322
      %324 = vmatmul.bf16.gmra.mxu0 %v191
      %v325 = vpop.f32.mrf.mxu0
      %v326 = vadd.f32 0.0, %v325
      %v327 = vpop.f32.mrf.mxu0
      %v328 = vadd.f32 0.0, %v327
      %329 = vmatmul.bf16.gmra.mxu0 %v192
      %v330 = vpop.f32.mrf.mxu0
      %v331 = vadd.f32 0.0, %v330
      %v332 = vpop.f32.mrf.mxu0
      %v333 = vadd.f32 0.0, %v332
      %334 = vdwg.mxu0
      %v335 = vpack.c.bf16 %v316, %v287
      %v336 = vpack.c.bf16 %v318, %v289
      %v337 = vpack.c.bf16 %v321, %v292
      %v338 = vpack.c.bf16 %v323, %v294
      %v339 = vpack.c.bf16 %v326, %v297
      %v340 = vpack.c.bf16 %v328, %v299
      %v341 = vpack.c.bf16 %v331, %v302
      %v342 = vpack.c.bf16 %v333, %v304
      %343 = vst [vmem:[%s147] sm:$0xff] %v335
      %344 = vst [vmem:[%s147 + $0x8] sm:$0xff] %v336
      %345 = vst [vmem:[%s147 + $0x10] sm:$0xff] %v337
      %346 = vst [vmem:[%s147 + $0x18] sm:$0xff] %v338
      %347 = vst [vmem:[%s147 + $0x20] sm:$0xff] %v339
      %348 = vst [vmem:[%s147 + $0x28] sm:$0xff] %v340
      %349 = vst [vmem:[%s147 + $0x30] sm:$0xff] %v341
      %350 = vst [vmem:[%s147 + $0x38] sm:$0xff] %v342
      %s351 = smul.u32 8, %s13
      %p352 = scmp.lt.s32.totalorder %s351, 15
      %s353 = scalar_select %p352, %s351, 15
      %s354 = smul.addr %s353, 2
      %s355 = smul.addr %s354, 4
      %s356 = scalar_lea.vmem %s2, %s355
      // Predicated region
      $region29: #{rgcn_forward.4} parent=27 // pred_check
        %p357 = pneg %p78
      $region30: #{rgcn_forward.4} parent=27 // pred_check_branch
        %359 = sbr.rel (%p357) target = $region32
      $region31: #{rgcn_forward.4} parent=27 // pred_region
        %s360 = smul.u32 8, %s13
      $region32: #{rgcn_forward.4} parent=27 // pred_fallthru
        _
    $region28: #{rgcn_forward.4} parent=5 // pred_fallthru
      _
    %p361 = scmp.le.s32.totalorder 2, %s8
    // Predicated region
    $region33: #{rgcn_forward.4} parent=5 // pred_check
      %p362 = pneg %p361
    $region34: #{rgcn_forward.4} parent=5 // pred_check_branch
      %364 = sbr.rel (%p362) target = $region36
    $region35: #{rgcn_forward.4} parent=5 // pred_region
      %s365 = ssub.s32 %s8, 2
      // Predicated region
      $region37: #{rgcn_forward.4} parent=35 // pred_check
        %p366 = pneg %p84
      $region38: #{rgcn_forward.4} parent=35 // pred_check_branch
        %368 = sbr.rel (%p366) target = $region40
      $region39: #{rgcn_forward.4} parent=35 // pred_region
        %s369 = smul.u32 8, %s14
        %p370 = scmp.lt.s32.totalorder %s369, 15
        %s371 = scalar_select %p370, %s369, 15
        %s372 = smul.addr %s371, 2
        %s373 = smul.addr %s372, 4
        %s374 = scalar_lea.vmem %s2, %s373
      $region40: #{rgcn_forward.4} parent=35 // pred_fallthru
        _
    $region36: #{rgcn_forward.4} parent=5 // pred_fallthru
      _
  $region6: #{rgcn_forward.4} parent=0 // loop_footer
    %s12 = sadd.s32 1, %s8
  $region7: #{rgcn_forward.4} parent=0 // loop_footer_branch
    %7 = sbr.rel target = $region3
  $region8: #{rgcn_forward.4} parent=0 // loop_exit
    _

// kernel: rgcn_forward.7
$region0: #{rgcn_forward.7}
  #allocation0 [shape = 'u32[]', space=smem, size = 0x4, offset = 0x4, fixed_abs, tag = 'smem constant byte address 0x4 - core index']
  #allocation1 [shape = 'u32[72,128]{1,0:T(1,128)}', space=vmem, size = 0x9000, scoped, tag = 'internal scratch']
  #allocation2 [shape = 'f32[64,128]{1,0:T(8,128)}', space=vmem, size = 0x8000, scoped, tag = 'scratch operand']
  #allocation3 [shape = 'f32[64,128]{1,0:T(8,128)}', space=vmem, size = 0x8000, scoped, tag = 'scratch operand']
  %s0 = inlined_call_operand.vmem [shape: bf16[256,128], index: 0, kind: input, shape index: {}]
  %s1 = inlined_call_operand.vmem [shape: bf16[256,256], index: 1, kind: input, shape index: {}]
  %s2 = inlined_call_operand.vmem [shape: bf16[256,256], index: 2, kind: input, shape index: {}]
  %s3 = inlined_call_operand.vmem [shape: s32[1,256], index: 3, kind: input, shape index: {}]
  %s4 = inlined_call_operand.vmem [shape: s32[1,256], index: 4, kind: input, shape index: {}]
  %s5 = inlined_call_operand.vmem [shape: bf16[128,128], index: 5, kind: input, shape index: {}]
  %s6 = inlined_call_operand.vmem [shape: bf16[128,4], index: 6, kind: input, shape index: {}]
  %s7 = inlined_call_operand.vmem [shape: bf16[128,128], index: 7, kind: input, shape index: {}]
  %s8 = inlined_call_operand.vmem [shape: f32[1,128], index: 8, kind: input, shape index: {}]
  %s9 = inlined_call_operand.vmem [shape: f32[128,1], index: 9, kind: input, shape index: {}]
  %s10 = inlined_call_operand.vmem [shape: f32[128,1], index: 10, kind: input, shape index: {}]
  %s11 = inlined_call_operand.hbm [shape: f32[128,128], index: 11, kind: output, shape index: {}]
  %s12 = sld [smem:[#allocation0]]
  $region85: #{rgcn_forward.7} parent=0
    _
  %s14 = ssub.s32 1, %s12
  %s15 = scalar_select 0, %s14, %s12
  $region1: #{rgcn_forward.7} parent=0
    #allocation4 [shape = 'u8[65536]{0}', space=vmem, size = 0x10000, scoped, tag = 'output window, operand 0']
    #allocation5 [shape = 's32[2]{0}', space=sflag, size = 0x8, scoped, tag = 'scoped memory for rgcn_forward.7']
    %16 = vsyncpa [#allocation5], 0
    %s17 = scalar_lea.sflag [#allocation5], 1
    %18 = vsyncpa %s17, 0
    loop: start=0, step=1, limit=6
    $region2: #{rgcn_forward.7} parent=1 // loop_pre_header
      _
    $region3: #{rgcn_forward.7} parent=1 // loop_header
      %s20 = sphi 0, %s24
      %p21 = scmp.ge.s32.totalorder %s20, 6
      %s27 = sphi 0, %s39
      %s28 = sphi 0, %s35
      %s29 = sphi 0, %s27
      %s30 = sphi 0, %s28
      %s31 = sphi 0, %s29
      %s32 = sphi 0, %s30
      %s42 = sphi 0, %s44
      %s45 = sphi 0, %s42
      %s46 = sphi 0, %s45
      %s62 = sphi 0, %s46
      %s68 = sphi 0, %s70
      %s71 = sphi 0, %s68
      %s72 = sphi 0, %s71
      %s88 = sphi 0, %s72
      %s94 = sphi 0, %s96
      %s97 = sphi 0, %s94
      %s98 = sphi 0, %s97
      %s114 = sphi 0, %s98
      %s120 = sphi 0, %s122
      %s123 = sphi 0, %s120
      %s124 = sphi 0, %s123
      %s140 = sphi 0, %s124
      %s146 = sphi 0, %s148
      %s149 = sphi 0, %s146
      %s150 = sphi 0, %s149
      %s166 = sphi 0, %s150
      %s172 = sphi 0, %s174
      %s175 = sphi 0, %s172
      %s176 = sphi 0, %s175
      %s192 = sphi 0, %s176
      %s196 = sphi 0, %s196
      %s198 = sphi 0, %s196
      %s199 = sphi 0, %s198
      %s213 = sphi 0, %s199
      %s217 = sphi 0, %s217
      %s219 = sphi 0, %s217
      %s220 = sphi 0, %s219
      %s234 = sphi 0, %s220
      %s238 = sphi 0, %s238
      %s240 = sphi 0, %s238
      %s241 = sphi 0, %s240
      %s255 = sphi 0, %s241
      %s261 = sphi 0, %s263
      %s264 = sphi 0, %s261
      %s265 = sphi 0, %s264
      %s281 = sphi 0, %s265
      %s287 = sphi 0, %s289
      %s290 = sphi 0, %s287
      %s291 = sphi 0, %s290
      %s307 = sphi 0, %s291
      %s313 = sphi 0, %s315
      %s316 = sphi 0, %s313
      %s317 = sphi 0, %s316
      %s333 = sphi 0, %s317
    $region4: #{rgcn_forward.7} parent=1 // loop_header_branch
      %23 = sbr.rel (%p21) target = $region8
    $region5: #{rgcn_forward.7} parent=1 // loop_body
      %s25 = ssub.s32 %s20, 1
      %s26 = ssub.s32 %s20, 2
      %s33 = sadd.s32 1, %s28
      %p34 = scmp.ge.s32.totalorder %s33, 2
      %s35 = scalar_select %p34, 0, %s33
      %s36 = sadd.s32 1, %s27
      %s37 = scalar_select %p34, %s36, %s27
      %p38 = scmp.ge.s32.totalorder %s37, 2
      %s39 = scalar_select %p38, 0, %s37
      %s40 = ssub.s32 %s28, %s35
      %p41 = scmp.eq.s32.totalorder %s40, 0
      %s43 = sadd.s32 %s42, 1
      %s44 = scalar_select %p41, %s42, %s43
      %p47 = pneg %p41
      %p48 = scmp.eq.s32.totalorder %s20, 3
      %p49 = por %p47, %p48
      %p50 = scmp.ne.s32.totalorder %s42, %s45
      %p51 = scmp.eq.s32.totalorder %s20, 0
      %p52 = por %p50, %p51
      %p53 = scmp.ne.s32.totalorder %s42, %s45
      %p54 = scmp.eq.s32.totalorder %s25, 3
      %p55 = por %p53, %p54
      %p56 = scmp.ne.s32.totalorder %s45, %s46
      %p57 = scmp.eq.s32.totalorder %s25, 0
      %p58 = por %p56, %p57
      %p59 = scmp.ne.s32.totalorder %s45, %s46
      %p60 = scmp.eq.s32.totalorder %s26, 3
      %p61 = por %p59, %p60
      %p63 = scmp.ne.s32.totalorder %s46, %s62
      %p64 = scmp.eq.s32.totalorder %s26, 0
      %p65 = por %p63, %p64
      %s66 = ssub.s32 %s28, %s35
      %p67 = scmp.eq.s32.totalorder %s66, 0
      %s69 = sadd.s32 %s68, 1
      %s70 = scalar_select %p67, %s68, %s69
      %p73 = pneg %p67
      %p74 = scmp.eq.s32.totalorder %s20, 3
      %p75 = por %p73, %p74
      %p76 = scmp.ne.s32.totalorder %s68, %s71
      %p77 = scmp.eq.s32.totalorder %s20, 0
      %p78 = por %p76, %p77
      %p79 = scmp.ne.s32.totalorder %s68, %s71
      %p80 = scmp.eq.s32.totalorder %s25, 3
      %p81 = por %p79, %p80
      %p82 = scmp.ne.s32.totalorder %s71, %s72
      %p83 = scmp.eq.s32.totalorder %s25, 0
      %p84 = por %p82, %p83
      %p85 = scmp.ne.s32.totalorder %s71, %s72
      %p86 = scmp.eq.s32.totalorder %s26, 3
      %p87 = por %p85, %p86
      %p89 = scmp.ne.s32.totalorder %s72, %s88
      %p90 = scmp.eq.s32.totalorder %s26, 0
      %p91 = por %p89, %p90
      %s92 = ssub.s32 %s28, %s35
      %p93 = scmp.eq.s32.totalorder %s92, 0
      %s95 = sadd.s32 %s94, 1
      %s96 = scalar_select %p93, %s94, %s95
      %p99 = pneg %p93
      %p100 = scmp.eq.s32.totalorder %s20, 3
      %p101 = por %p99, %p100
      %p102 = scmp.ne.s32.totalorder %s94, %s97
      %p103 = scmp.eq.s32.totalorder %s20, 0
      %p104 = por %p102, %p103
      %p105 = scmp.ne.s32.totalorder %s94, %s97
      %p106 = scmp.eq.s32.totalorder %s25, 3
      %p107 = por %p105, %p106
      %p108 = scmp.ne.s32.totalorder %s97, %s98
      %p109 = scmp.eq.s32.totalorder %s25, 0
      %p110 = por %p108, %p109
      %p111 = scmp.ne.s32.totalorder %s97, %s98
      %p112 = scmp.eq.s32.totalorder %s26, 3
      %p113 = por %p111, %p112
      %p115 = scmp.ne.s32.totalorder %s98, %s114
      %p116 = scmp.eq.s32.totalorder %s26, 0
      %p117 = por %p115, %p116
      %s118 = ssub.s32 %s28, %s35
      %p119 = scmp.eq.s32.totalorder %s118, 0
      %s121 = sadd.s32 %s120, 1
      %s122 = scalar_select %p119, %s120, %s121
      %p125 = pneg %p119
      %p126 = scmp.eq.s32.totalorder %s20, 3
      %p127 = por %p125, %p126
      %p128 = scmp.ne.s32.totalorder %s120, %s123
      %p129 = scmp.eq.s32.totalorder %s20, 0
      %p130 = por %p128, %p129
      %p131 = scmp.ne.s32.totalorder %s120, %s123
      %p132 = scmp.eq.s32.totalorder %s25, 3
      %p133 = por %p131, %p132
      %p134 = scmp.ne.s32.totalorder %s123, %s124
      %p135 = scmp.eq.s32.totalorder %s25, 0
      %p136 = por %p134, %p135
      %p137 = scmp.ne.s32.totalorder %s123, %s124
      %p138 = scmp.eq.s32.totalorder %s26, 3
      %p139 = por %p137, %p138
      %p141 = scmp.ne.s32.totalorder %s124, %s140
      %p142 = scmp.eq.s32.totalorder %s26, 0
      %p143 = por %p141, %p142
      %s144 = ssub.s32 %s28, %s35
      %p145 = scmp.eq.s32.totalorder %s144, 0
      %s147 = sadd.s32 %s146, 1
      %s148 = scalar_select %p145, %s146, %s147
      %p151 = pneg %p145
      %p152 = scmp.eq.s32.totalorder %s20, 3
      %p153 = por %p151, %p152
      %p154 = scmp.ne.s32.totalorder %s146, %s149
      %p155 = scmp.eq.s32.totalorder %s20, 0
      %p156 = por %p154, %p155
      %p157 = scmp.ne.s32.totalorder %s146, %s149
      %p158 = scmp.eq.s32.totalorder %s25, 3
      %p159 = por %p157, %p158
      %p160 = scmp.ne.s32.totalorder %s149, %s150
      %p161 = scmp.eq.s32.totalorder %s25, 0
      %p162 = por %p160, %p161
      %p163 = scmp.ne.s32.totalorder %s149, %s150
      %p164 = scmp.eq.s32.totalorder %s26, 3
      %p165 = por %p163, %p164
      %p167 = scmp.ne.s32.totalorder %s150, %s166
      %p168 = scmp.eq.s32.totalorder %s26, 0
      %p169 = por %p167, %p168
      %s170 = ssub.s32 %s27, %s39
      %p171 = scmp.eq.s32.totalorder %s170, 0
      %s173 = sadd.s32 %s172, 1
      %s174 = scalar_select %p171, %s172, %s173
      %p177 = pneg %p171
      %p178 = scmp.eq.s32.totalorder %s20, 3
      %p179 = por %p177, %p178
      %p180 = scmp.ne.s32.totalorder %s172, %s175
      %p181 = scmp.eq.s32.totalorder %s20, 0
      %p182 = por %p180, %p181
      %p183 = scmp.ne.s32.totalorder %s172, %s175
      %p184 = scmp.eq.s32.totalorder %s25, 3
      %p185 = por %p183, %p184
      %p186 = scmp.ne.s32.totalorder %s175, %s176
      %p187 = scmp.eq.s32.totalorder %s25, 0
      %p188 = por %p186, %p187
      %p189 = scmp.ne.s32.totalorder %s175, %s176
      %p190 = scmp.eq.s32.totalorder %s26, 3
      %p191 = por %p189, %p190
      %p193 = scmp.ne.s32.totalorder %s176, %s192
      %p194 = scmp.eq.s32.totalorder %s26, 0
      %p195 = por %p193, %p194
      %s197 = sadd.s32 %s196, 1
      %p200 = scmp.eq.s32.totalorder %s20, 3
      %p201 = scmp.ne.s32.totalorder %s196, %s198
      %p202 = scmp.eq.s32.totalorder %s20, 0
      %p203 = por %p201, %p202
      %p204 = scmp.ne.s32.totalorder %s196, %s198
      %p205 = scmp.eq.s32.totalorder %s25, 3
      %p206 = por %p204, %p205
      %p207 = scmp.ne.s32.totalorder %s198, %s199
      %p208 = scmp.eq.s32.totalorder %s25, 0
      %p209 = por %p207, %p208
      %p210 = scmp.ne.s32.totalorder %s198, %s199
      %p211 = scmp.eq.s32.totalorder %s26, 3
      %p212 = por %p210, %p211
      %p214 = scmp.ne.s32.totalorder %s199, %s213
      %p215 = scmp.eq.s32.totalorder %s26, 0
      %p216 = por %p214, %p215
      %s218 = sadd.s32 %s217, 1
      %p221 = scmp.eq.s32.totalorder %s20, 3
      %p222 = scmp.ne.s32.totalorder %s217, %s219
      %p223 = scmp.eq.s32.totalorder %s20, 0
      %p224 = por %p222, %p223
      %p225 = scmp.ne.s32.totalorder %s217, %s219
      %p226 = scmp.eq.s32.totalorder %s25, 3
      %p227 = por %p225, %p226
      %p228 = scmp.ne.s32.totalorder %s219, %s220
      %p229 = scmp.eq.s32.totalorder %s25, 0
      %p230 = por %p228, %p229
      %p231 = scmp.ne.s32.totalorder %s219, %s220
      %p232 = scmp.eq.s32.totalorder %s26, 3
      %p233 = por %p231, %p232
      %p235 = scmp.ne.s32.totalorder %s220, %s234
      %p236 = scmp.eq.s32.totalorder %s26, 0
      %p237 = por %p235, %p236
      %s239 = sadd.s32 %s238, 1
      %p242 = scmp.eq.s32.totalorder %s20, 3
      %p243 = scmp.ne.s32.totalorder %s238, %s240
      %p244 = scmp.eq.s32.totalorder %s20, 0
      %p245 = por %p243, %p244
      %p246 = scmp.ne.s32.totalorder %s238, %s240
      %p247 = scmp.eq.s32.totalorder %s25, 3
      %p248 = por %p246, %p247
      %p249 = scmp.ne.s32.totalorder %s240, %s241
      %p250 = scmp.eq.s32.totalorder %s25, 0
      %p251 = por %p249, %p250
      %p252 = scmp.ne.s32.totalorder %s240, %s241
      %p253 = scmp.eq.s32.totalorder %s26, 3
      %p254 = por %p252, %p253
      %p256 = scmp.ne.s32.totalorder %s241, %s255
      %p257 = scmp.eq.s32.totalorder %s26, 0
      %p258 = por %p256, %p257
      %s259 = ssub.s32 %s27, %s39
      %p260 = scmp.eq.s32.totalorder %s259, 0
      %s262 = sadd.s32 %s261, 1
      %s263 = scalar_select %p260, %s261, %s262
      %p266 = pneg %p260
      %p267 = scmp.eq.s32.totalorder %s20, 3
      %p268 = por %p266, %p267
      %p269 = scmp.ne.s32.totalorder %s261, %s264
      %p270 = scmp.eq.s32.totalorder %s20, 0
      %p271 = por %p269, %p270
      %p272 = scmp.ne.s32.totalorder %s261, %s264
      %p273 = scmp.eq.s32.totalorder %s25, 3
      %p274 = por %p272, %p273
      %p275 = scmp.ne.s32.totalorder %s264, %s265
      %p276 = scmp.eq.s32.totalorder %s25, 0
      %p277 = por %p275, %p276
      %p278 = scmp.ne.s32.totalorder %s264, %s265
      %p279 = scmp.eq.s32.totalorder %s26, 3
      %p280 = por %p278, %p279
      %p282 = scmp.ne.s32.totalorder %s265, %s281
      %p283 = scmp.eq.s32.totalorder %s26, 0
      %p284 = por %p282, %p283
      %s285 = ssub.s32 %s27, %s39
      %p286 = scmp.eq.s32.totalorder %s285, 0
      %s288 = sadd.s32 %s287, 1
      %s289 = scalar_select %p286, %s287, %s288
      %p292 = pneg %p286
      %p293 = scmp.eq.s32.totalorder %s20, 3
      %p294 = por %p292, %p293
      %p295 = scmp.ne.s32.totalorder %s287, %s290
      %p296 = scmp.eq.s32.totalorder %s20, 0
      %p297 = por %p295, %p296
      %p298 = scmp.ne.s32.totalorder %s287, %s290
      %p299 = scmp.eq.s32.totalorder %s25, 3
      %p300 = por %p298, %p299
      %p301 = scmp.ne.s32.totalorder %s290, %s291
      %p302 = scmp.eq.s32.totalorder %s25, 0
      %p303 = por %p301, %p302
      %p304 = scmp.ne.s32.totalorder %s290, %s291
      %p305 = scmp.eq.s32.totalorder %s26, 3
      %p306 = por %p304, %p305
      %p308 = scmp.ne.s32.totalorder %s291, %s307
      %p309 = scmp.eq.s32.totalorder %s26, 0
      %p310 = por %p308, %p309
      %s311 = ssub.s32 %s27, %s39
      %p312 = scmp.eq.s32.totalorder %s311, 0
      %s314 = sadd.s32 %s313, 1
      %s315 = scalar_select %p312, %s313, %s314
      %p318 = pneg %p312
      %p319 = scmp.eq.s32.totalorder %s20, 3
      %p320 = por %p318, %p319
      %p321 = scmp.ne.s32.totalorder %s313, %s316
      %p322 = scmp.eq.s32.totalorder %s20, 0
      %p323 = por %p321, %p322
      %p324 = scmp.ne.s32.totalorder %s313, %s316
      %p325 = scmp.eq.s32.totalorder %s25, 3
      %p326 = por %p324, %p325
      %p327 = scmp.ne.s32.totalorder %s316, %s317
      %p328 = scmp.eq.s32.totalorder %s25, 0
      %p329 = por %p327, %p328
      %p330 = scmp.ne.s32.totalorder %s316, %s317
      %p331 = scmp.eq.s32.totalorder %s26, 3
      %p332 = por %p330, %p331
      %p334 = scmp.ne.s32.totalorder %s317, %s333
      %p335 = scmp.eq.s32.totalorder %s26, 0
      %p336 = por %p334, %p335
      %p337 = scmp.le.s32.totalorder 1, %s20
      %p338 = scmp.lt.s32.totalorder %s20, 5
      %p339 = pnand %p337, %p338
      %p340 = pneg %p339
      // Predicated region
      $region9: #{rgcn_forward.7} parent=5 // pred_check
        _
      $region10: #{rgcn_forward.7} parent=5 // pred_check_branch
        %342 = sbr.rel (%p339) target = $region12
      $region11: #{rgcn_forward.7} parent=5 // pred_region
        %s343 = ssub.s32 %s20, 1
        // Predicated region
        $region13: #{rgcn_forward.7} parent=11 // pred_check
          %p344 = pneg %p209
        $region14: #{rgcn_forward.7} parent=11 // pred_check_branch
          %346 = sbr.rel (%p344) target = $region16
        $region15: #{rgcn_forward.7} parent=11 // pred_region
          _
        $region16: #{rgcn_forward.7} parent=11 // pred_fallthru
          _
        // Predicated region
        $region17: #{rgcn_forward.7} parent=11 // pred_check
          %p347 = pneg %p230
        $region18: #{rgcn_forward.7} parent=11 // pred_check_branch
          %349 = sbr.rel (%p347) target = $region20
        $region19: #{rgcn_forward.7} parent=11 // pred_region
          _
        $region20: #{rgcn_forward.7} parent=11 // pred_fallthru
          _
        // Predicated region
        $region21: #{rgcn_forward.7} parent=11 // pred_check
          %p350 = pneg %p251
        $region22: #{rgcn_forward.7} parent=11 // pred_check_branch
          %352 = sbr.rel (%p350) target = $region24
        $region23: #{rgcn_forward.7} parent=11 // pred_region
          _
        $region24: #{rgcn_forward.7} parent=11 // pred_fallthru
          _
      $region12: #{rgcn_forward.7} parent=5 // pred_fallthru
        _
      %p353 = scmp.lt.s32.totalorder %s20, 4
      // Predicated region
      $region25: #{rgcn_forward.7} parent=5 // pred_check
        %p354 = pneg %p353
      $region26: #{rgcn_forward.7} parent=5 // pred_check_branch
        %356 = sbr.rel (%p354) target = $region28
      $region27: #{rgcn_forward.7} parent=5 // pred_region
        // Predicated region
        $region29: #{rgcn_forward.7} parent=27 // pred_check
          %p357 = pneg %p52
        $region30: #{rgcn_forward.7} parent=27 // pred_check_branch
          %359 = sbr.rel (%p357) target = $region32
        $region31: #{rgcn_forward.7} parent=27 // pred_region
          %s360 = smul.u32 16, %s28
          %p361 = scmp.lt.s32.totalorder %s360, 31
          %s362 = scalar_select %p361, %s360, 31
          %s363 = smul.addr %s362, 4
          %s364 = scalar_lea.vmem %s0, %s363
          %s365 = smul.u32 16, %s28
        $region32: #{rgcn_forward.7} parent=27 // pred_fallthru
          _
        // Predicated region
        $region33: #{rgcn_forward.7} parent=27 // pred_check
          %p366 = pneg %p78
        $region34: #{rgcn_forward.7} parent=27 // pred_check_branch
          %368 = sbr.rel (%p366) target = $region36
        $region35: #{rgcn_forward.7} parent=27 // pred_region
          %s369 = smul.u32 16, %s28
          %p370 = scmp.lt.s32.totalorder %s369, 31
          %s371 = scalar_select %p370, %s369, 31
          %s372 = smul.addr %s371, 2
          %s373 = smul.addr %s372, 4
          %s374 = scalar_lea.vmem %s1, %s373
          %s375 = smul.u32 16, %s28
        $region36: #{rgcn_forward.7} parent=27 // pred_fallthru
          _
        // Predicated region
        $region37: #{rgcn_forward.7} parent=27 // pred_check
          %p376 = pneg %p104
        $region38: #{rgcn_forward.7} parent=27 // pred_check_branch
          %378 = sbr.rel (%p376) target = $region40
        $region39: #{rgcn_forward.7} parent=27 // pred_region
          %s379 = smul.u32 16, %s28
          %p380 = scmp.lt.s32.totalorder %s379, 31
          %s381 = scalar_select %p380, %s379, 31
          %s382 = smul.addr %s381, 2
          %s383 = smul.addr %s382, 4
          %s384 = scalar_lea.vmem %s2, %s383
          %s385 = smul.u32 16, %s28
        $region40: #{rgcn_forward.7} parent=27 // pred_fallthru
          _
        // Predicated region
        $region41: #{rgcn_forward.7} parent=27 // pred_check
          %p386 = pneg %p130
        $region42: #{rgcn_forward.7} parent=27 // pred_check_branch
          %388 = sbr.rel (%p386) target = $region44
        $region43: #{rgcn_forward.7} parent=27 // pred_region
          %p389 = scmp.lt.s32.totalorder %s28, 1
          %s390 = scalar_select %p389, %s28, 1
          %s391 = scalar_lea.vmem %s3, %s390
        $region44: #{rgcn_forward.7} parent=27 // pred_fallthru
          _
        // Predicated region
        $region45: #{rgcn_forward.7} parent=27 // pred_check
          %p392 = pneg %p156
        $region46: #{rgcn_forward.7} parent=27 // pred_check_branch
          %394 = sbr.rel (%p392) target = $region48
        $region47: #{rgcn_forward.7} parent=27 // pred_region
          %p395 = scmp.lt.s32.totalorder %s28, 1
          %s396 = scalar_select %p395, %s28, 1
          %s397 = scalar_lea.vmem %s4, %s396
        $region48: #{rgcn_forward.7} parent=27 // pred_fallthru
          _
        // Predicated region
        $region49: #{rgcn_forward.7} parent=27 // pred_check
          %p398 = pneg %p182
        $region50: #{rgcn_forward.7} parent=27 // pred_check_branch
          %400 = sbr.rel (%p398) target = $region52
        $region51: #{rgcn_forward.7} parent=27 // pred_region
          %s401 = smul.u32 8, %s27
          %p402 = scmp.lt.s32.totalorder %s401, 15
          %s403 = scalar_select %p402, %s401, 15
          %s404 = smul.addr %s403, 4
          %s405 = scalar_lea.vmem %s5, %s404
          %s406 = smul.u32 8, %s27
        $region52: #{rgcn_forward.7} parent=27 // pred_fallthru
          _
        // Predicated region
        $region53: #{rgcn_forward.7} parent=27 // pred_check
          %p407 = pneg %p271
        $region54: #{rgcn_forward.7} parent=27 // pred_check_branch
          %409 = sbr.rel (%p407) target = $region56
        $region55: #{rgcn_forward.7} parent=27 // pred_region
          %s410 = smul.u32 8, %s27
          %p411 = scmp.lt.s32.totalorder %s410, 15
          %s412 = scalar_select %p411, %s410, 15
          %s413 = smul.addr %s412, 8
          %s414 = scalar_lea.vmem %s9, %s413
          %s415 = smul.u32 8, %s27
        $region56: #{rgcn_forward.7} parent=27 // pred_fallthru
          _
        // Predicated region
        $region57: #{rgcn_forward.7} parent=27 // pred_check
          %p416 = pneg %p297
        $region58: #{rgcn_forward.7} parent=27 // pred_check_branch
          %418 = sbr.rel (%p416) target = $region60
        $region59: #{rgcn_forward.7} parent=27 // pred_region
          %s419 = smul.u32 8, %s27
          %p420 = scmp.lt.s32.totalorder %s419, 15
          %s421 = scalar_select %p420, %s419, 15
          %s422 = smul.addr %s421, 8
          %s423 = scalar_lea.vmem %s10, %s422
          %s424 = smul.u32 8, %s27
        $region60: #{rgcn_forward.7} parent=27 // pred_fallthru
          _
      $region28: #{rgcn_forward.7} parent=5 // pred_fallthru
        _
      %p425 = scmp.le.s32.totalorder 1, %s20
      %p426 = scmp.lt.s32.totalorder %s20, 5
      %p427 = pnand %p425, %p426
      %p428 = pneg %p427
      // Predicated region
      $region61: #{rgcn_forward.7} parent=5 // pred_check
        _
      $region62: #{rgcn_forward.7} parent=5 // pred_check_branch
        %430 = sbr.rel (%p427) target = $region64
      $region63: #{rgcn_forward.7} parent=5 // pred_region
        %s431 = ssub.s32 %s20, 1
        %s432 = smul.u32 16, %s30
        %p433 = scmp.lt.s32.totalorder %s432, 31
        %s434 = scalar_select %p433, %s432, 31
        %s435 = smul.addr %s434, 4
        %s436 = scalar_lea.vmem %s0, %s435
        %p437 = pneg %p58
        %p438 = pneg %p55
        %s439 = smul.u32 16, %s30
        %p440 = scmp.lt.s32.totalorder %s439, 31
        %s441 = scalar_select %p440, %s439, 31
        %s442 = smul.addr %s441, 2
        %s443 = smul.addr %s442, 4
        %s444 = scalar_lea.vmem %s1, %s443
        %p445 = pneg %p84
        %p446 = pneg %p81
        %s447 = smul.u32 16, %s30
        %p448 = scmp.lt.s32.totalorder %s447, 31
        %s449 = scalar_select %p448, %s447, 31
        %s450 = smul.addr %s449, 2
        %s451 = smul.addr %s450, 4
        %s452 = scalar_lea.vmem %s2, %s451
        %p453 = pneg %p110
        %p454 = pneg %p107
        %p455 = scmp.lt.s32.totalorder %s30, 1
        %s456 = scalar_select %p455, %s30, 1
        %s457 = scalar_lea.vmem %s3, %s456
        %p458 = pneg %p136
        %p459 = pneg %p133
        %p460 = scmp.lt.s32.totalorder %s30, 1
        %s461 = scalar_select %p460, %s30, 1
        %s462 = scalar_lea.vmem %s4, %s461
        %p463 = pneg %p162
        %p464 = pneg %p159
        %s465 = smul.u32 8, %s29
        %p466 = scmp.lt.s32.totalorder %s465, 15
        %s467 = scalar_select %p466, %s465, 15
        %s468 = smul.addr %s467, 4
        %s469 = scalar_lea.vmem %s5, %s468
        %p470 = pneg %p188
        %p471 = pneg %p185
        %p472 = pneg %p209
        %p473 = pneg %p206
        %p474 = pneg %p230
        %p475 = pneg %p227
        %p476 = pneg %p251
        %p477 = pneg %p248
        %s478 = smul.u32 8, %s29
        %p479 = scmp.lt.s32.totalorder %s478, 15
        %s480 = scalar_select %p479, %s478, 15
        %s481 = smul.addr %s480, 8
        %s482 = scalar_lea.vmem %s9, %s481
        %p483 = pneg %p277
        %p484 = pneg %p274
        %s485 = smul.u32 8, %s29
        %p486 = scmp.lt.s32.totalorder %s485, 15
        %s487 = scalar_select %p486, %s485, 15
        %s488 = smul.addr %s487, 8
        %s489 = scalar_lea.vmem %s10, %s488
        %p490 = pneg %p303
        %p491 = pneg %p300
        %p492 = pneg %p329
        %p493 = pneg %p326
        %s494 = sand.u32 %s316, 1
        %s495 = scalar_lea.sflag [#allocation5], %s494
        %s496 = sand.u32 %s316, 1
        %s497 = smul.addr %s496, 64
        %s498 = scalar_lea.vmem [#allocation4], %s497
        %s499 = smul.u32 16, %s30
        %p500 = scmp.lt.s32.totalorder %s499, 31
        %s501 = scalar_select %p500, %s499, 31
        %s502 = smul.addr %s501, 4
        %s503 = scalar_lea.vmem %s0, %s502
        %s504 = smul.u32 16, %s30
        %s505 = smul.u32 16, %s30
        %p506 = scmp.lt.s32.totalorder %s505, 31
        %s507 = scalar_select %p506, %s505, 31
        %s508 = smul.addr %s507, 2
        %s509 = smul.addr %s508, 4
        %s510 = scalar_lea.vmem %s1, %s509
        %s511 = smul.u32 16, %s30
        %s512 = smul.u32 16, %s30
        %p513 = scmp.lt.s32.totalorder %s512, 31
        %s514 = scalar_select %p513, %s512, 31
        %s515 = smul.addr %s514, 2
        %s516 = smul.addr %s515, 4
        %s517 = scalar_lea.vmem %s2, %s516
        %s518 = smul.u32 16, %s30
        %p519 = scmp.lt.s32.totalorder %s30, 1
        %s520 = scalar_select %p519, %s30, 1
        %s521 = scalar_lea.vmem %s3, %s520
        %p522 = scmp.lt.s32.totalorder %s30, 1
        %s523 = scalar_select %p522, %s30, 1
        %s524 = scalar_lea.vmem %s4, %s523
        %s525 = smul.u32 8, %s29
        %p526 = scmp.lt.s32.totalorder %s525, 15
        %s527 = scalar_select %p526, %s525, 15
        %s528 = smul.addr %s527, 4
        %s529 = scalar_lea.vmem %s5, %s528
        %s530 = smul.u32 8, %s29
        %s531 = smul.u32 8, %s29
        %p532 = scmp.lt.s32.totalorder %s531, 15
        %s533 = scalar_select %p532, %s531, 15
        %s534 = smul.addr %s533, 8
        %s535 = scalar_lea.vmem %s9, %s534
        %s536 = smul.u32 8, %s29
        %s537 = smul.u32 8, %s29
        %p538 = scmp.lt.s32.totalorder %s537, 15
        %s539 = scalar_select %p538, %s537, 15
        %s540 = smul.addr %s539, 8
        %s541 = scalar_lea.vmem %s10, %s540
        %s542 = smul.u32 8, %s29
        %s543 = smul.u32 8, %s29
        %p544 = scmp.eq.s32.totalorder %s30, 0
        // Predicated region
        $region65: #{rgcn_forward.7} parent=63 // pred_check
          %p545 = pneg %p544
        $region66: #{rgcn_forward.7} parent=63 // pred_check_branch
          %547 = sbr.rel (%p545) target = $region68
        $region67: #{rgcn_forward.7} parent=63 // pred_region
          %548 = vst [vmem:[#allocation2] sm:$0xff] 0.0
          %549 = vst [vmem:[#allocation2 + $0x8] sm:$0xff] 0.0
          %550 = vst [vmem:[#allocation2 + $0x10] sm:$0xff] 0.0
          %551 = vst [vmem:[#allocation2 + $0x18] sm:$0xff] 0.0
          %552 = vst [vmem:[#allocation2 + $0x20] sm:$0xff] 0.0
          %553 = vst [vmem:[#allocation2 + $0x28] sm:$0xff] 0.0
          %554 = vst [vmem:[#allocation2 + $0x30] sm:$0xff] 0.0
          %555 = vst [vmem:[#allocation2 + $0x38] sm:$0xff] 0.0
          %556 = vst [vmem:[#allocation3] sm:$0xff] 0.0
          %557 = vst [vmem:[#allocation3 + $0x8] sm:$0xff] 0.0
          %558 = vst [vmem:[#allocation3 + $0x10] sm:$0xff] 0.0
          %559 = vst [vmem:[#allocation3 + $0x18] sm:$0xff] 0.0
          %560 = vst [vmem:[#allocation3 + $0x20] sm:$0xff] 0.0
          %561 = vst [vmem:[#allocation3 + $0x28] sm:$0xff] 0.0
          %562 = vst [vmem:[#allocation3 + $0x30] sm:$0xff] 0.0
          %563 = vst [vmem:[#allocation3 + $0x38] sm:$0xff] 0.0
        $region68: #{rgcn_forward.7} parent=63 // pred_fallthru
          _
        %v564 = vld [vmem:[%s503] sm:$0xf]
        %v565 = vld [vmem:[%s503 + $0x4] sm:$0xf]
        %v566 = vld [vmem:[%s503 + $0x8] sm:$0xf]
        %v567 = vld [vmem:[%s503 + $0xc] sm:$0xf]
        %v568 = vld [vmem:[%s503 + $0x10] sm:$0xf]
        %v569 = vld [vmem:[%s503 + $0x14] sm:$0xf]
        %v570 = vld [vmem:[%s503 + $0x18] sm:$0xf]
        %v571 = vld [vmem:[%s503 + $0x1c] sm:$0xf]
        %v572 = vld [vmem:[%s503 + $0x20] sm:$0xf]
        %v573 = vld [vmem:[%s503 + $0x24] sm:$0xf]
        %v574 = vld [vmem:[%s503 + $0x28] sm:$0xf]
        %v575 = vld [vmem:[%s503 + $0x2c] sm:$0xf]
        %v576 = vld [vmem:[%s503 + $0x30] sm:$0xf]
        %v577 = vld [vmem:[%s503 + $0x34] sm:$0xf]
        %v578 = vld [vmem:[%s503 + $0x38] sm:$0xf]
        %v579 = vld [vmem:[%s503 + $0x3c] sm:$0xf]
        %v580 = vld [vmem:[%s6] sm:$0xf]
        %v581 = vld [vmem:[%s6 + $0x4] sm:$0xf]
        %v582 = vld [vmem:[%s6 + $0x8] sm:$0xf]
        %v583 = vld [vmem:[%s6 + $0xc] sm:$0xf]
        %v584 = vld [vmem:[%s6 + $0x10] sm:$0xf]
        %v585 = vld [vmem:[%s6 + $0x14] sm:$0xf]
        %v586 = vld [vmem:[%s6 + $0x18] sm:$0xf]
        %v587 = vld [vmem:[%s6 + $0x1c] sm:$0xf]
        %v588 = vld [vmem:[%s6 + $0x20] sm:$0xf]
        %v589 = vld [vmem:[%s6 + $0x24] sm:$0xf]
        %v590 = vld [vmem:[%s6 + $0x28] sm:$0xf]
        %v591 = vld [vmem:[%s6 + $0x2c] sm:$0xf]
        %v592 = vld [vmem:[%s6 + $0x30] sm:$0xf]
        %v593 = vld [vmem:[%s6 + $0x34] sm:$0xf]
        %v594 = vld [vmem:[%s6 + $0x38] sm:$0xf]
        %v595 = vld [vmem:[%s6 + $0x3c] sm:$0xf]
        %v612 = vunpack.c.l.b16 %v564
        %v613 = vunpack.c.l.b16 %v565
        %v614 = vunpack.c.l.b16 %v566
        %v615 = vunpack.c.l.b16 %v567
        %v616 = vunpack.c.l.b16 %v568
        %v617 = vunpack.c.l.b16 %v569
        %v618 = vunpack.c.l.b16 %v570
        %v619 = vunpack.c.l.b16 %v571
        %v620 = vunpack.c.l.b16 %v572
        %v621 = vunpack.c.l.b16 %v573
        %v622 = vunpack.c.l.b16 %v574
        %v623 = vunpack.c.l.b16 %v575
        %v624 = vunpack.c.l.b16 %v576
        %v625 = vunpack.c.l.b16 %v577
        %v626 = vunpack.c.l.b16 %v578
        %v627 = vunpack.c.l.b16 %v579
        %v628 = vpack.c.b16 %v613, %v612
        %v629 = vpack.c.b16 %v615, %v614
        %v630 = vpack.c.b16 %v617, %v616
        %v631 = vpack.c.b16 %v619, %v618
        %v632 = vpack.c.b16 %v621, %v620
        %v633 = vpack.c.b16 %v623, %v622
        %v634 = vpack.c.b16 %v625, %v624
        %v635 = vpack.c.b16 %v627, %v626
        %v660 = vunpack.c.l.b16 %v580
        %v661 = vunpack.c.l.b16 %v581
        %v662 = vunpack.c.l.b16 %v582
        %v663 = vunpack.c.l.b16 %v583
        %v664 = vunpack.c.l.b16 %v584
        %v665 = vunpack.c.l.b16 %v585
        %v666 = vunpack.c.l.b16 %v586
        %v667 = vunpack.c.l.b16 %v587
        %v668 = vunpack.c.l.b16 %v588
        %v669 = vunpack.c.l.b16 %v589
        %v670 = vunpack.c.l.b16 %v590
        %v671 = vunpack.c.l.b16 %v591
        %v672 = vunpack.c.l.b16 %v592
        %v673 = vunpack.c.l.b16 %v593
        %v674 = vunpack.c.l.b16 %v594
        %v675 = vunpack.c.l.b16 %v595
        %v676 = vpack.c.b16 %v661, %v660
        %v677 = vpack.c.b16 %v663, %v662
        %v678 = vpack.c.b16 %v665, %v664
        %v679 = vpack.c.b16 %v667, %v666
        %v680 = vpack.c.b16 %v669, %v668
        %v681 = vpack.c.b16 %v671, %v670
        %v682 = vpack.c.b16 %v673, %v672
        %v683 = vpack.c.b16 %v675, %v674
        %692 = vmatpush.bf16.msra.mxu0 %v683
        %693 = vmatpush.bf16.msra.mxu0 %v682
        %694 = vmatpush.bf16.msra.mxu0 %v681
        %695 = vmatpush.bf16.msra.mxu0 %v680
        %696 = vmatpush.bf16.msra.mxu0 %v679
        %697 = vmatpush.bf16.msra.mxu0 %v678
        %698 = vmatpush.bf16.msra.mxu0 %v677
        %699 = vmatpush.bf16.msra.mxu0 %v676
        %700 = vmatmul.bf16.gmra.mxu0 %v628
        %v701 = vpop.f32.mrf.mxu0
        %v702 = vadd.f32 0.0, %v701
        %v703 = vpop.f32.mrf.mxu0
        %v704 = vadd.f32 0.0, %v703
        %705 = vmatmul.bf16.gmra.mxu0 %v629
        %v706 = vpop.f32.mrf.mxu0
        %v707 = vadd.f32 0.0, %v706
        %v708 = vpop.f32.mrf.mxu0
        %v709 = vadd.f32 0.0, %v708
        %710 = vmatmul.bf16.gmra.mxu0 %v630
        %v711 = vpop.f32.mrf.mxu0
        %v712 = vadd.f32 0.0, %v711
        %v713 = vpop.f32.mrf.mxu0
        %v714 = vadd.f32 0.0, %v713
        %715 = vmatmul.bf16.gmra.mxu0 %v631
        %v716 = vpop.f32.mrf.mxu0
        %v717 = vadd.f32 0.0, %v716
        %v718 = vpop.f32.mrf.mxu0
        %v719 = vadd.f32 0.0, %v718
        %720 = vmatmul.bf16.gmra.mxu0 %v632
        %v721 = vpop.f32.mrf.mxu0
        %v722 = vadd.f32 0.0, %v721
        %v723 = vpop.f32.mrf.mxu0
        %v724 = vadd.f32 0.0, %v723
        %725 = vmatmul.bf16.gmra.mxu0 %v633
        %v726 = vpop.f32.mrf.mxu0
        %v727 = vadd.f32 0.0, %v726
        %v728 = vpop.f32.mrf.mxu0
        %v729 = vadd.f32 0.0, %v728
        %730 = vmatmul.bf16.gmra.mxu0 %v634
        %v731 = vpop.f32.mrf.mxu0
        %v732 = vadd.f32 0.0, %v731
        %v733 = vpop.f32.mrf.mxu0
        %v734 = vadd.f32 0.0, %v733
        %735 = vmatmul.bf16.gmra.mxu0 %v635
        %v736 = vpop.f32.mrf.mxu0
        %v737 = vadd.f32 0.0, %v736
        %v738 = vpop.f32.mrf.mxu0
        %v739 = vadd.f32 0.0, %v738
        %740 = vdwg.mxu0
        %v741 = vld [vmem:[%s510] sm:$0xff]
        %v742 = vld [vmem:[%s510 + $0x8] sm:$0xff]
        %v743 = vld [vmem:[%s510 + $0x10] sm:$0xff]
        %v744 = vld [vmem:[%s510 + $0x18] sm:$0xff]
        %v745 = vld [vmem:[%s510 + $0x20] sm:$0xff]
        %v746 = vld [vmem:[%s510 + $0x28] sm:$0xff]
        %v747 = vld [vmem:[%s510 + $0x30] sm:$0xff]
        %v748 = vld [vmem:[%s510 + $0x38] sm:$0xff]
        %v749 = vld [vmem:[%s510 + $0x40] sm:$0xff]
        %v750 = vld [vmem:[%s510 + $0x48] sm:$0xff]
        %v751 = vld [vmem:[%s510 + $0x50] sm:$0xff]
        %v752 = vld [vmem:[%s510 + $0x58] sm:$0xff]
        %v753 = vld [vmem:[%s510 + $0x60] sm:$0xff]
        %v754 = vld [vmem:[%s510 + $0x68] sm:$0xff]
        %v755 = vld [vmem:[%s510 + $0x70] sm:$0xff]
        %v756 = vld [vmem:[%s510 + $0x78] sm:$0xff]
        %v757 = vunpack.c.l.bf16 %v741
        %v758 = vunpack.c.h.bf16 %v741
        %v759 = vunpack.c.l.bf16 %v742
        %v760 = vunpack.c.h.bf16 %v742
        %v761 = vunpack.c.l.bf16 %v743
        %v762 = vunpack.c.h.bf16 %v743
        %v763 = vunpack.c.l.bf16 %v744
        %v764 = vunpack.c.h.bf16 %v744
        %v765 = vunpack.c.l.bf16 %v745
        %v766 = vunpack.c.h.bf16 %v745
        %v767 = vunpack.c.l.bf16 %v746
        %v768 = vunpack.c.h.bf16 %v746
        %v769 = vunpack.c.l.bf16 %v747
        %v770 = vunpack.c.h.bf16 %v747
        %v771 = vunpack.c.l.bf16 %v748
        %v772 = vunpack.c.h.bf16 %v748
        %v773 = vunpack.c.l.bf16 %v749
        %v774 = vunpack.c.h.bf16 %v749
        %v775 = vunpack.c.l.bf16 %v750
        %v776 = vunpack.c.h.bf16 %v750
        %v777 = vunpack.c.l.bf16 %v751
        %v778 = vunpack.c.h.bf16 %v751
        %v779 = vunpack.c.l.bf16 %v752
        %v780 = vunpack.c.h.bf16 %v752
        %v781 = vunpack.c.l.bf16 %v753
        %v782 = vunpack.c.h.bf16 %v753
        %v783 = vunpack.c.l.bf16 %v754
        %v784 = vunpack.c.h.bf16 %v754
        %v785 = vunpack.c.l.bf16 %v755
        %v786 = vunpack.c.h.bf16 %v755
        %v787 = vunpack.c.l.bf16 %v756
        %v788 = vunpack.c.h.bf16 %v756
        %v789 = vld [vmem:[%s517] sm:$0xff]
        %v790 = vld [vmem:[%s517 + $0x8] sm:$0xff]
        %v791 = vld [vmem:[%s517 + $0x10] sm:$0xff]
        %v792 = vld [vmem:[%s517 + $0x18] sm:$0xff]
        %v793 = vld [vmem:[%s517 + $0x20] sm:$0xff]
        %v794 = vld [vmem:[%s517 + $0x28] sm:$0xff]
        %v795 = vld [vmem:[%s517 + $0x30] sm:$0xff]
        %v796 = vld [vmem:[%s517 + $0x38] sm:$0xff]
        %v797 = vld [vmem:[%s517 + $0x40] sm:$0xff]
        %v798 = vld [vmem:[%s517 + $0x48] sm:$0xff]
        %v799 = vld [vmem:[%s517 + $0x50] sm:$0xff]
        %v800 = vld [vmem:[%s517 + $0x58] sm:$0xff]
        %v801 = vld [vmem:[%s517 + $0x60] sm:$0xff]
        %v802 = vld [vmem:[%s517 + $0x68] sm:$0xff]
        %v803 = vld [vmem:[%s517 + $0x70] sm:$0xff]
        %v804 = vld [vmem:[%s517 + $0x78] sm:$0xff]
        %v805 = vunpack.c.l.bf16 %v789
        %v806 = vunpack.c.h.bf16 %v789
        %v807 = vunpack.c.l.bf16 %v790
        %v808 = vunpack.c.h.bf16 %v790
        %v809 = vunpack.c.l.bf16 %v791
        %v810 = vunpack.c.h.bf16 %v791
        %v811 = vunpack.c.l.bf16 %v792
        %v812 = vunpack.c.h.bf16 %v792
        %v813 = vunpack.c.l.bf16 %v793
        %v814 = vunpack.c.h.bf16 %v793
        %v815 = vunpack.c.l.bf16 %v794
        %v816 = vunpack.c.h.bf16 %v794
        %v817 = vunpack.c.l.bf16 %v795
        %v818 = vunpack.c.h.bf16 %v795
        %v819 = vunpack.c.l.bf16 %v796
        %v820 = vunpack.c.h.bf16 %v796
        %v821 = vunpack.c.l.bf16 %v797
        %v822 = vunpack.c.h.bf16 %v797
        %v823 = vunpack.c.l.bf16 %v798
        %v824 = vunpack.c.h.bf16 %v798
        %v825 = vunpack.c.l.bf16 %v799
        %v826 = vunpack.c.h.bf16 %v799
        %v827 = vunpack.c.l.bf16 %v800
        %v828 = vunpack.c.h.bf16 %v800
        %v829 = vunpack.c.l.bf16 %v801
        %v830 = vunpack.c.h.bf16 %v801
        %v831 = vunpack.c.l.bf16 %v802
        %v832 = vunpack.c.h.bf16 %v802
        %v833 = vunpack.c.l.bf16 %v803
        %v834 = vunpack.c.h.bf16 %v803
        %v835 = vunpack.c.l.bf16 %v804
        %v836 = vunpack.c.h.bf16 %v804
        %838 = vset.pattern.permute.xlu0 0
        %839 = vperm.xlu0 %838, %v702
        %v840 = vpop.permute.xlu0 %839
        %843 = vset.pattern.permute.xlu0 0
        %844 = vperm.xlu0 %843, %v704
        %v845 = vpop.permute.xlu0 %844
        %848 = vset.pattern.permute.xlu0 0
        %849 = vperm.xlu0 %848, %v707
        %v850 = vpop.permute.xlu0 %849
        %853 = vset.pattern.permute.xlu0 0
        %854 = vperm.xlu0 %853, %v709
        %v855 = vpop.permute.xlu0 %854
        %858 = vset.pattern.permute.xlu0 0
        %859 = vperm.xlu0 %858, %v712
        %v860 = vpop.permute.xlu0 %859
        %863 = vset.pattern.permute.xlu0 0
        %864 = vperm.xlu0 %863, %v714
        %v865 = vpop.permute.xlu0 %864
        %868 = vset.pattern.permute.xlu0 0
        %869 = vperm.xlu0 %868, %v717
        %v870 = vpop.permute.xlu0 %869
        %873 = vset.pattern.permute.xlu0 0
        %874 = vperm.xlu0 %873, %v719
        %v875 = vpop.permute.xlu0 %874
        %878 = vset.pattern.permute.xlu0 0
        %879 = vperm.xlu0 %878, %v722
        %v880 = vpop.permute.xlu0 %879
        %883 = vset.pattern.permute.xlu0 0
        %884 = vperm.xlu0 %883, %v724
        %v885 = vpop.permute.xlu0 %884
        %888 = vset.pattern.permute.xlu0 0
        %889 = vperm.xlu0 %888, %v727
        %v890 = vpop.permute.xlu0 %889
        %893 = vset.pattern.permute.xlu0 0
        %894 = vperm.xlu0 %893, %v729
        %v895 = vpop.permute.xlu0 %894
        %898 = vset.pattern.permute.xlu0 0
        %899 = vperm.xlu0 %898, %v732
        %v900 = vpop.permute.xlu0 %899
        %903 = vset.pattern.permute.xlu0 0
        %904 = vperm.xlu0 %903, %v734
        %v905 = vpop.permute.xlu0 %904
        %908 = vset.pattern.permute.xlu0 0
        %909 = vperm.xlu0 %908, %v737
        %v910 = vpop.permute.xlu0 %909
        %913 = vset.pattern.permute.xlu0 0
        %914 = vperm.xlu0 %913, %v739
        %v915 = vpop.permute.xlu0 %914
        %v917 = vmul.f32 %v840, %v757
        %v918 = vmul.f32 %v845, %v759
        %v919 = vmul.f32 %v850, %v761
        %v920 = vmul.f32 %v855, %v763
        %v921 = vmul.f32 %v860, %v765
        %v922 = vmul.f32 %v865, %v767
        %v923 = vmul.f32 %v870, %v769
        %v924 = vmul.f32 %v875, %v771
        %v925 = vmul.f32 %v880, %v773
        %v926 = vmul.f32 %v885, %v775
        %v927 = vmul.f32 %v890, %v777
        %v928 = vmul.f32 %v895, %v779
        %v929 = vmul.f32 %v900, %v781
        %v930 = vmul.f32 %v905, %v783
        %v931 = vmul.f32 %v910, %v785
        %v932 = vmul.f32 %v915, %v787
        %v933 = vadd.f32 %v917, 0.0
        %v934 = vadd.f32 %v918, 0.0
        %v935 = vadd.f32 %v919, 0.0
        %v936 = vadd.f32 %v920, 0.0
        %v937 = vadd.f32 %v921, 0.0
        %v938 = vadd.f32 %v922, 0.0
        %v939 = vadd.f32 %v923, 0.0
        %v940 = vadd.f32 %v924, 0.0
        %v941 = vadd.f32 %v925, 0.0
        %v942 = vadd.f32 %v926, 0.0
        %v943 = vadd.f32 %v927, 0.0
        %v944 = vadd.f32 %v928, 0.0
        %v945 = vadd.f32 %v929, 0.0
        %v946 = vadd.f32 %v930, 0.0
        %v947 = vadd.f32 %v931, 0.0
        %v948 = vadd.f32 %v932, 0.0
        %949 = vset.pattern.permute.xlu0 2
        %950 = vperm.xlu0 %949, %v702
        %v951 = vpop.permute.xlu0 %950
        %953 = vset.pattern.permute.xlu0 2
        %954 = vperm.xlu0 %953, %v704
        %v955 = vpop.permute.xlu0 %954
        %957 = vset.pattern.permute.xlu0 2
        %958 = vperm.xlu0 %957, %v707
        %v959 = vpop.permute.xlu0 %958
        %961 = vset.pattern.permute.xlu0 2
        %962 = vperm.xlu0 %961, %v709
        %v963 = vpop.permute.xlu0 %962
        %965 = vset.pattern.permute.xlu0 2
        %966 = vperm.xlu0 %965, %v712
        %v967 = vpop.permute.xlu0 %966
        %969 = vset.pattern.permute.xlu0 2
        %970 = vperm.xlu0 %969, %v714
        %v971 = vpop.permute.xlu0 %970
        %973 = vset.pattern.permute.xlu0 2
        %974 = vperm.xlu0 %973, %v717
        %v975 = vpop.permute.xlu0 %974
        %977 = vset.pattern.permute.xlu0 2
        %978 = vperm.xlu0 %977, %v719
        %v979 = vpop.permute.xlu0 %978
        %981 = vset.pattern.permute.xlu0 2
        %982 = vperm.xlu0 %981, %v722
        %v983 = vpop.permute.xlu0 %982
        %985 = vset.pattern.permute.xlu0 2
        %986 = vperm.xlu0 %985, %v724
        %v987 = vpop.permute.xlu0 %986
        %989 = vset.pattern.permute.xlu0 2
        %990 = vperm.xlu0 %989, %v727
        %v991 = vpop.permute.xlu0 %990
        %993 = vset.pattern.permute.xlu0 2
        %994 = vperm.xlu0 %993, %v729
        %v995 = vpop.permute.xlu0 %994
        %997 = vset.pattern.permute.xlu0 2
        %998 = vperm.xlu0 %997, %v732
        %v999 = vpop.permute.xlu0 %998
        %1001 = vset.pattern.permute.xlu0 2
        %1002 = vperm.xlu0 %1001, %v734
        %v1003 = vpop.permute.xlu0 %1002
        %1005 = vset.pattern.permute.xlu0 2
        %1006 = vperm.xlu0 %1005, %v737
        %v1007 = vpop.permute.xlu0 %1006
        %1009 = vset.pattern.permute.xlu0 2
        %1010 = vperm.xlu0 %1009, %v739
        %v1011 = vpop.permute.xlu0 %1010
        %v1013 = vmul.f32 %v951, %v805
        %v1014 = vmul.f32 %v955, %v807
        %v1015 = vmul.f32 %v959, %v809
        %v1016 = vmul.f32 %v963, %v811
        %v1017 = vmul.f32 %v967, %v813
        %v1018 = vmul.f32 %v971, %v815
        %v1019 = vmul.f32 %v975, %v817
        %v1020 = vmul.f32 %v979, %v819
        %v1021 = vmul.f32 %v983, %v821
        %v1022 = vmul.f32 %v987, %v823
        %v1023 = vmul.f32 %v991, %v825
        %v1024 = vmul.f32 %v995, %v827
        %v1025 = vmul.f32 %v999, %v829
        %v1026 = vmul.f32 %v1003, %v831
        %v1027 = vmul.f32 %v1007, %v833
        %v1028 = vmul.f32 %v1011, %v835
        %v1029 = vadd.f32 %v1013, 0.0
        %v1030 = vadd.f32 %v1014, 0.0
        %v1031 = vadd.f32 %v1015, 0.0
        %v1032 = vadd.f32 %v1016, 0.0
        %v1033 = vadd.f32 %v1017, 0.0
        %v1034 = vadd.f32 %v1018, 0.0
        %v1035 = vadd.f32 %v1019, 0.0
        %v1036 = vadd.f32 %v1020, 0.0
        %v1037 = vadd.f32 %v1021, 0.0
        %v1038 = vadd.f32 %v1022, 0.0
        %v1039 = vadd.f32 %v1023, 0.0
        %v1040 = vadd.f32 %v1024, 0.0
        %v1041 = vadd.f32 %v1025, 0.0
        %v1042 = vadd.f32 %v1026, 0.0
        %v1043 = vadd.f32 %v1027, 0.0
        %v1044 = vadd.f32 %v1028, 0.0
        %1045 = vset.pattern.permute.xlu0 1
        %1046 = vperm.xlu0 %1045, %v702
        %v1047 = vpop.permute.xlu0 %1046
        %1049 = vset.pattern.permute.xlu0 1
        %1050 = vperm.xlu0 %1049, %v704
        %v1051 = vpop.permute.xlu0 %1050
        %1053 = vset.pattern.permute.xlu0 1
        %1054 = vperm.xlu0 %1053, %v707
        %v1055 = vpop.permute.xlu0 %1054
        %1057 = vset.pattern.permute.xlu0 1
        %1058 = vperm.xlu0 %1057, %v709
        %v1059 = vpop.permute.xlu0 %1058
        %1061 = vset.pattern.permute.xlu0 1
        %1062 = vperm.xlu0 %1061, %v712
        %v1063 = vpop.permute.xlu0 %1062
        %1065 = vset.pattern.permute.xlu0 1
        %1066 = vperm.xlu0 %1065, %v714
        %v1067 = vpop.permute.xlu0 %1066
        %1069 = vset.pattern.permute.xlu0 1
        %1070 = vperm.xlu0 %1069, %v717
        %v1071 = vpop.permute.xlu0 %1070
        %1073 = vset.pattern.permute.xlu0 1
        %1074 = vperm.xlu0 %1073, %v719
        %v1075 = vpop.permute.xlu0 %1074
        %1077 = vset.pattern.permute.xlu0 1
        %1078 = vperm.xlu0 %1077, %v722
        %v1079 = vpop.permute.xlu0 %1078
        %1081 = vset.pattern.permute.xlu0 1
        %1082 = vperm.xlu0 %1081, %v724
        %v1083 = vpop.permute.xlu0 %1082
        %1085 = vset.pattern.permute.xlu0 1
        %1086 = vperm.xlu0 %1085, %v727
        %v1087 = vpop.permute.xlu0 %1086
        %1089 = vset.pattern.permute.xlu0 1
        %1090 = vperm.xlu0 %1089, %v729
        %v1091 = vpop.permute.xlu0 %1090
        %1093 = vset.pattern.permute.xlu0 1
        %1094 = vperm.xlu0 %1093, %v732
        %v1095 = vpop.permute.xlu0 %1094
        %1097 = vset.pattern.permute.xlu0 1
        %1098 = vperm.xlu0 %1097, %v734
        %v1099 = vpop.permute.xlu0 %1098
        %1101 = vset.pattern.permute.xlu0 1
        %1102 = vperm.xlu0 %1101, %v737
        %v1103 = vpop.permute.xlu0 %1102
        %1105 = vset.pattern.permute.xlu0 1
        %1106 = vperm.xlu0 %1105, %v739
        %v1107 = vpop.permute.xlu0 %1106
        %v1109 = vmul.f32 %v1047, %v758
        %v1110 = vmul.f32 %v1051, %v760
        %v1111 = vmul.f32 %v1055, %v762
        %v1112 = vmul.f32 %v1059, %v764
        %v1113 = vmul.f32 %v1063, %v766
        %v1114 = vmul.f32 %v1067, %v768
        %v1115 = vmul.f32 %v1071, %v770
        %v1116 = vmul.f32 %v1075, %v772
        %v1117 = vmul.f32 %v1079, %v774
        %v1118 = vmul.f32 %v1083, %v776
        %v1119 = vmul.f32 %v1087, %v778
        %v1120 = vmul.f32 %v1091, %v780
        %v1121 = vmul.f32 %v1095, %v782
        %v1122 = vmul.f32 %v1099, %v784
        %v1123 = vmul.f32 %v1103, %v786
        %v1124 = vmul.f32 %v1107, %v788
        %v1125 = vadd.f32 %v933, %v1109
        %v1126 = vadd.f32 %v934, %v1110
        %v1127 = vadd.f32 %v935, %v1111
        %v1128 = vadd.f32 %v936, %v1112
        %v1129 = vadd.f32 %v937, %v1113
        %v1130 = vadd.f32 %v938, %v1114
        %v1131 = vadd.f32 %v939, %v1115
        %v1132 = vadd.f32 %v940, %v1116
        %v1133 = vadd.f32 %v941, %v1117
        %v1134 = vadd.f32 %v942, %v1118
        %v1135 = vadd.f32 %v943, %v1119
        %v1136 = vadd.f32 %v944, %v1120
        %v1137 = vadd.f32 %v945, %v1121
        %v1138 = vadd.f32 %v946, %v1122
        %v1139 = vadd.f32 %v947, %v1123
        %v1140 = vadd.f32 %v948, %v1124
        %1141 = vset.pattern.permute.xlu0 3
        %1142 = vperm.xlu0 %1141, %v702
        %v1143 = vpop.permute.xlu0 %1142
        %1145 = vset.pattern.permute.xlu0 3
        %1146 = vperm.xlu0 %1145, %v704
        %v1147 = vpop.permute.xlu0 %1146
        %1149 = vset.pattern.permute.xlu0 3
        %1150 = vperm.xlu0 %1149, %v707
        %v1151 = vpop.permute.xlu0 %1150
        %1153 = vset.pattern.permute.xlu0 3
        %1154 = vperm.xlu0 %1153, %v709
        %v1155 = vpop.permute.xlu0 %1154
        %1157 = vset.pattern.permute.xlu0 3
        %1158 = vperm.xlu0 %1157, %v712
        %v1159 = vpop.permute.xlu0 %1158
        %1161 = vset.pattern.permute.xlu0 3
        %1162 = vperm.xlu0 %1161, %v714
        %v1163 = vpop.permute.xlu0 %1162
        %1165 = vset.pattern.permute.xlu0 3
        %1166 = vperm.xlu0 %1165, %v717
        %v1167 = vpop.permute.xlu0 %1166
        %1169 = vset.pattern.permute.xlu0 3
        %1170 = vperm.xlu0 %1169, %v719
        %v1171 = vpop.permute.xlu0 %1170
        %1173 = vset.pattern.permute.xlu0 3
        %1174 = vperm.xlu0 %1173, %v722
        %v1175 = vpop.permute.xlu0 %1174
        %1177 = vset.pattern.permute.xlu0 3
        %1178 = vperm.xlu0 %1177, %v724
        %v1179 = vpop.permute.xlu0 %1178
        %1181 = vset.pattern.permute.xlu0 3
        %1182 = vperm.xlu0 %1181, %v727
        %v1183 = vpop.permute.xlu0 %1182
        %1185 = vset.pattern.permute.xlu0 3
        %1186 = vperm.xlu0 %1185, %v729
        %v1187 = vpop.permute.xlu0 %1186
        %1189 = vset.pattern.permute.xlu0 3
        %1190 = vperm.xlu0 %1189, %v732
        %v1191 = vpop.permute.xlu0 %1190
        %1193 = vset.pattern.permute.xlu0 3
        %1194 = vperm.xlu0 %1193, %v734
        %v1195 = vpop.permute.xlu0 %1194
        %1197 = vset.pattern.permute.xlu0 3
        %1198 = vperm.xlu0 %1197, %v737
        %v1199 = vpop.permute.xlu0 %1198
        %1201 = vset.pattern.permute.xlu0 3
        %1202 = vperm.xlu0 %1201, %v739
        %v1203 = vpop.permute.xlu0 %1202
        %v1205 = vmul.f32 %v1143, %v806
        %v1206 = vmul.f32 %v1147, %v808
        %v1207 = vmul.f32 %v1151, %v810
        %v1208 = vmul.f32 %v1155, %v812
        %v1209 = vmul.f32 %v1159, %v814
        %v1210 = vmul.f32 %v1163, %v816
        %v1211 = vmul.f32 %v1167, %v818
        %v1212 = vmul.f32 %v1171, %v820
        %v1213 = vmul.f32 %v1175, %v822
        %v1214 = vmul.f32 %v1179, %v824
        %v1215 = vmul.f32 %v1183, %v826
        %v1216 = vmul.f32 %v1187, %v828
        %v1217 = vmul.f32 %v1191, %v830
        %v1218 = vmul.f32 %v1195, %v832
        %v1219 = vmul.f32 %v1199, %v834
        %v1220 = vmul.f32 %v1203, %v836
        %v1221 = vadd.f32 %v1029, %v1205
        %v1222 = vadd.f32 %v1030, %v1206
        %v1223 = vadd.f32 %v1031, %v1207
        %v1224 = vadd.f32 %v1032, %v1208
        %v1225 = vadd.f32 %v1033, %v1209
        %v1226 = vadd.f32 %v1034, %v1210
        %v1227 = vadd.f32 %v1035, %v1211
        %v1228 = vadd.f32 %v1036, %v1212
        %v1229 = vadd.f32 %v1037, %v1213
        %v1230 = vadd.f32 %v1038, %v1214
        %v1231 = vadd.f32 %v1039, %v1215
        %v1232 = vadd.f32 %v1040, %v1216
        %v1233 = vadd.f32 %v1041, %v1217
        %v1234 = vadd.f32 %v1042, %v1218
        %v1235 = vadd.f32 %v1043, %v1219
        %v1236 = vadd.f32 %v1044, %v1220
        %s1237 = smul.u32 %s29, 64
        %v1238 = vlaneseq
        %v1239 = vshrl.u32 %v1238, 7
        %v1240 = vadd.s32 %v1239, 8
        %v1241 = vadd.s32 %v1239, 16
        %v1242 = vadd.s32 %v1239, 24
        %v1243 = vadd.s32 %v1239, 32
        %v1244 = vadd.s32 %v1239, 40
        %v1245 = vadd.s32 %v1239, 48
        %v1246 = vadd.s32 %v1239, 56
        %v1247 = vstv %s1237
        %v1248 = vadd.s32 %v1247, %v1239
        %v1249 = vadd.s32 %v1247, %v1240
        %v1250 = vadd.s32 %v1247, %v1241
        %v1251 = vadd.s32 %v1247, %v1242
        %v1252 = vadd.s32 %v1247, %v1243
        %v1253 = vadd.s32 %v1247, %v1244
        %v1254 = vadd.s32 %v1247, %v1245
        %v1255 = vadd.s32 %v1247, %v1246
        %v1256 = vld [vmem:[%s521] sm:$0x1]
        %v1257 = vperm.slane %v1256, 0
        %vm1258 = vcmp.eq.s32.totalorder %v1257, %v1248
        %vm1259 = vcmp.eq.s32.totalorder %v1257, %v1249
        %vm1260 = vcmp.eq.s32.totalorder %v1257, %v1250
        %vm1261 = vcmp.eq.s32.totalorder %v1257, %v1251
        %vm1262 = vcmp.eq.s32.totalorder %v1257, %v1252
        %vm1263 = vcmp.eq.s32.totalorder %v1257, %v1253
        %vm1264 = vcmp.eq.s32.totalorder %v1257, %v1254
        %vm1265 = vcmp.eq.s32.totalorder %v1257, %v1255
        %v1266 = vsel %vm1258, 1.0, 0.0
        %v1267 = vsel %vm1259, 1.0, 0.0
        %v1268 = vsel %vm1260, 1.0, 0.0
        %v1269 = vsel %vm1261, 1.0, 0.0
        %v1270 = vsel %vm1262, 1.0, 0.0
        %v1271 = vsel %vm1263, 1.0, 0.0
        %v1272 = vsel %vm1264, 1.0, 0.0
        %v1273 = vsel %vm1265, 1.0, 0.0
        %v1274 = vpack.c.bf16 %v1267, %v1266
        %v1275 = vpack.c.bf16 %v1269, %v1268
        %v1276 = vpack.c.bf16 %v1271, %v1270
        %v1277 = vpack.c.bf16 %v1273, %v1272
        %v1278 = vld [vmem:[%s524] sm:$0x1]
        %v1279 = vperm.slane %v1278, 0
        %vm1280 = vcmp.eq.s32.totalorder %v1279, %v1248
        %vm1281 = vcmp.eq.s32.totalorder %v1279, %v1249
        %vm1282 = vcmp.eq.s32.totalorder %v1279, %v1250
        %vm1283 = vcmp.eq.s32.totalorder %v1279, %v1251
        %vm1284 = vcmp.eq.s32.totalorder %v1279, %v1252
        %vm1285 = vcmp.eq.s32.totalorder %v1279, %v1253
        %vm1286 = vcmp.eq.s32.totalorder %v1279, %v1254
        %vm1287 = vcmp.eq.s32.totalorder %v1279, %v1255
        %v1288 = vsel %vm1280, 1.0, 0.0
        %v1289 = vsel %vm1281, 1.0, 0.0
        %v1290 = vsel %vm1282, 1.0, 0.0
        %v1291 = vsel %vm1283, 1.0, 0.0
        %v1292 = vsel %vm1284, 1.0, 0.0
        %v1293 = vsel %vm1285, 1.0, 0.0
        %v1294 = vsel %vm1286, 1.0, 0.0
        %v1295 = vsel %vm1287, 1.0, 0.0
        %v1296 = vpack.c.bf16 %v1289, %v1288
        %v1297 = vpack.c.bf16 %v1291, %v1290
        %v1298 = vpack.c.bf16 %v1293, %v1292
        %v1299 = vpack.c.bf16 %v1295, %v1294
        %v1300 = vld [vmem:[#allocation2] sm:$0xff]
        %v1301 = vld [vmem:[#allocation2 + $0x8] sm:$0xff]
        %v1302 = vld [vmem:[#allocation2 + $0x10] sm:$0xff]
        %v1303 = vld [vmem:[#allocation2 + $0x18] sm:$0xff]
        %v1304 = vld [vmem:[#allocation2 + $0x20] sm:$0xff]
        %v1305 = vld [vmem:[#allocation2 + $0x28] sm:$0xff]
        %v1306 = vld [vmem:[#allocation2 + $0x30] sm:$0xff]
        %v1307 = vld [vmem:[#allocation2 + $0x38] sm:$0xff]
        %v1308 = vpack.c.bf16 %v1126, %v1125
        %v1309 = vpack.c.bf16 %v1128, %v1127
        %v1310 = vpack.c.bf16 %v1130, %v1129
        %v1311 = vpack.c.bf16 %v1132, %v1131
        %v1312 = vpack.c.bf16 %v1134, %v1133
        %v1313 = vpack.c.bf16 %v1136, %v1135
        %v1314 = vpack.c.bf16 %v1138, %v1137
        %v1315 = vpack.c.bf16 %v1140, %v1139
        %1316 = vmatpush.bf16.msra.mxu0 %v1315
        %1317 = vmatpush.bf16.msra.mxu0 %v1314
        %1318 = vmatpush.bf16.msra.mxu0 %v1313
        %1319 = vmatpush.bf16.msra.mxu0 %v1312
        %1320 = vmatpush.bf16.msra.mxu0 %v1311
        %1321 = vmatpush.bf16.msra.mxu0 %v1310
        %1322 = vmatpush.bf16.msra.mxu0 %v1309
        %1323 = vmatpush.bf16.msra.mxu0 %v1308
        %1324 = vmatmul.bf16.gmra.mxu0 %v1274
        %v1325 = vpop.f32.mrf.mxu0
        %v1326 = vadd.f32 0.0, %v1325
        %v1327 = vpop.f32.mrf.mxu0
        %v1328 = vadd.f32 0.0, %v1327
        %1329 = vmatmul.bf16.gmra.mxu0 %v1275
        %v1330 = vpop.f32.mrf.mxu0
        %v1331 = vadd.f32 0.0, %v1330
        %v1332 = vpop.f32.mrf.mxu0
        %v1333 = vadd.f32 0.0, %v1332
        %1334 = vmatmul.bf16.gmra.mxu0 %v1276
        %v1335 = vpop.f32.mrf.mxu0
        %v1336 = vadd.f32 0.0, %v1335
        %v1337 = vpop.f32.mrf.mxu0
        %v1338 = vadd.f32 0.0, %v1337
        %1339 = vmatmul.bf16.gmra.mxu0 %v1277
        %v1340 = vpop.f32.mrf.mxu0
        %v1341 = vadd.f32 0.0, %v1340
        %v1342 = vpop.f32.mrf.mxu0
        %v1343 = vadd.f32 0.0, %v1342
        %1344 = vdwg.mxu0
        %v1345 = vadd.f32 %v1300, %v1326
        %v1346 = vadd.f32 %v1301, %v1328
        %v1347 = vadd.f32 %v1302, %v1331
        %v1348 = vadd.f32 %v1303, %v1333
        %v1349 = vadd.f32 %v1304, %v1336
        %v1350 = vadd.f32 %v1305, %v1338
        %v1351 = vadd.f32 %v1306, %v1341
        %v1352 = vadd.f32 %v1307, %v1343
        %1353 = vst [vmem:[#allocation2] sm:$0xff] %v1345
        %1354 = vst [vmem:[#allocation2 + $0x8] sm:$0xff] %v1346
        %1355 = vst [vmem:[#allocation2 + $0x10] sm:$0xff] %v1347
        %1356 = vst [vmem:[#allocation2 + $0x18] sm:$0xff] %v1348
        %1357 = vst [vmem:[#allocation2 + $0x20] sm:$0xff] %v1349
        %1358 = vst [vmem:[#allocation2 + $0x28] sm:$0xff] %v1350
        %1359 = vst [vmem:[#allocation2 + $0x30] sm:$0xff] %v1351
        %1360 = vst [vmem:[#allocation2 + $0x38] sm:$0xff] %v1352
        %v1361 = vld [vmem:[#allocation3] sm:$0xff]
        %v1362 = vld [vmem:[#allocation3 + $0x8] sm:$0xff]
        %v1363 = vld [vmem:[#allocation3 + $0x10] sm:$0xff]
        %v1364 = vld [vmem:[#allocation3 + $0x18] sm:$0xff]
        %v1365 = vld [vmem:[#allocation3 + $0x20] sm:$0xff]
        %v1366 = vld [vmem:[#allocation3 + $0x28] sm:$0xff]
        %v1367 = vld [vmem:[#allocation3 + $0x30] sm:$0xff]
        %v1368 = vld [vmem:[#allocation3 + $0x38] sm:$0xff]
        %v1369 = vpack.c.bf16 %v1222, %v1221
        %v1370 = vpack.c.bf16 %v1224, %v1223
        %v1371 = vpack.c.bf16 %v1226, %v1225
        %v1372 = vpack.c.bf16 %v1228, %v1227
        %v1373 = vpack.c.bf16 %v1230, %v1229
        %v1374 = vpack.c.bf16 %v1232, %v1231
        %v1375 = vpack.c.bf16 %v1234, %v1233
        %v1376 = vpack.c.bf16 %v1236, %v1235
        %1377 = vmatpush.bf16.msra.mxu0 %v1376
        %1378 = vmatpush.bf16.msra.mxu0 %v1375
        %1379 = vmatpush.bf16.msra.mxu0 %v1374
        %1380 = vmatpush.bf16.msra.mxu0 %v1373
        %1381 = vmatpush.bf16.msra.mxu0 %v1372
        %1382 = vmatpush.bf16.msra.mxu0 %v1371
        %1383 = vmatpush.bf16.msra.mxu0 %v1370
        %1384 = vmatpush.bf16.msra.mxu0 %v1369
        %1385 = vmatmul.bf16.gmra.mxu0 %v1296
        %v1386 = vpop.f32.mrf.mxu0
        %v1387 = vadd.f32 0.0, %v1386
        %v1388 = vpop.f32.mrf.mxu0
        %v1389 = vadd.f32 0.0, %v1388
        %1390 = vmatmul.bf16.gmra.mxu0 %v1297
        %v1391 = vpop.f32.mrf.mxu0
        %v1392 = vadd.f32 0.0, %v1391
        %v1393 = vpop.f32.mrf.mxu0
        %v1394 = vadd.f32 0.0, %v1393
        %1395 = vmatmul.bf16.gmra.mxu0 %v1298
        %v1396 = vpop.f32.mrf.mxu0
        %v1397 = vadd.f32 0.0, %v1396
        %v1398 = vpop.f32.mrf.mxu0
        %v1399 = vadd.f32 0.0, %v1398
        %1400 = vmatmul.bf16.gmra.mxu0 %v1299
        %v1401 = vpop.f32.mrf.mxu0
        %v1402 = vadd.f32 0.0, %v1401
        %v1403 = vpop.f32.mrf.mxu0
        %v1404 = vadd.f32 0.0, %v1403
        %1405 = vdwg.mxu0
        %v1406 = vadd.f32 %v1361, %v1387
        %v1407 = vadd.f32 %v1362, %v1389
        %v1408 = vadd.f32 %v1363, %v1392
        %v1409 = vadd.f32 %v1364, %v1394
        %v1410 = vadd.f32 %v1365, %v1397
        %v1411 = vadd.f32 %v1366, %v1399
        %v1412 = vadd.f32 %v1367, %v1402
        %v1413 = vadd.f32 %v1368, %v1404
        %1414 = vst [vmem:[#allocation3] sm:$0xff] %v1406
        %1415 = vst [vmem:[#allocation3 + $0x8] sm:$0xff] %v1407
        %1416 = vst [vmem:[#allocation3 + $0x10] sm:$0xff] %v1408
        %1417 = vst [vmem:[#allocation3 + $0x18] sm:$0xff] %v1409
        %1418 = vst [vmem:[#allocation3 + $0x20] sm:$0xff] %v1410
        %1419 = vst [vmem:[#allocation3 + $0x28] sm:$0xff] %v1411
        %1420 = vst [vmem:[#allocation3 + $0x30] sm:$0xff] %v1412
        %1421 = vst [vmem:[#allocation3 + $0x38] sm:$0xff] %v1413
        %p1422 = scmp.eq.s32.totalorder %s30, 1
        // Predicated region
        $region69: #{rgcn_forward.7} parent=63 // pred_check
          %p1423 = pneg %p1422
        $region70: #{rgcn_forward.7} parent=63 // pred_check_branch
          %1425 = sbr.rel (%p1423) target = $region72
        $region71: #{rgcn_forward.7} parent=63 // pred_region
          %v1426 = vld [vmem:[%s529] sm:$0xf]
          %v1427 = vld [vmem:[%s529 + $0x4] sm:$0xf]
          %v1428 = vld [vmem:[%s529 + $0x8] sm:$0xf]
          %v1429 = vld [vmem:[%s529 + $0xc] sm:$0xf]
          %v1430 = vld [vmem:[%s529 + $0x10] sm:$0xf]
          %v1431 = vld [vmem:[%s529 + $0x14] sm:$0xf]
          %v1432 = vld [vmem:[%s529 + $0x18] sm:$0xf]
          %v1433 = vld [vmem:[%s529 + $0x1c] sm:$0xf]
          %v1434 = vld [vmem:[%s7] sm:$0xf]
          %v1435 = vld [vmem:[%s7 + $0x4] sm:$0xf]
          %v1436 = vld [vmem:[%s7 + $0x8] sm:$0xf]
          %v1437 = vld [vmem:[%s7 + $0xc] sm:$0xf]
          %v1438 = vld [vmem:[%s7 + $0x10] sm:$0xf]
          %v1439 = vld [vmem:[%s7 + $0x14] sm:$0xf]
          %v1440 = vld [vmem:[%s7 + $0x18] sm:$0xf]
          %v1441 = vld [vmem:[%s7 + $0x1c] sm:$0xf]
          %v1442 = vld [vmem:[%s7 + $0x20] sm:$0xf]
          %v1443 = vld [vmem:[%s7 + $0x24] sm:$0xf]
          %v1444 = vld [vmem:[%s7 + $0x28] sm:$0xf]
          %v1445 = vld [vmem:[%s7 + $0x2c] sm:$0xf]
          %v1446 = vld [vmem:[%s7 + $0x30] sm:$0xf]
          %v1447 = vld [vmem:[%s7 + $0x34] sm:$0xf]
          %v1448 = vld [vmem:[%s7 + $0x38] sm:$0xf]
          %v1449 = vld [vmem:[%s7 + $0x3c] sm:$0xf]
          %v1450 = vld [vmem:[%s8] sm:$0x1]
          %v1452 = vperm.slane %v1450, 0
          %v1462 = vunpack.c.l.b16 %v1426
          %v1463 = vunpack.c.l.b16 %v1427
          %v1464 = vunpack.c.l.b16 %v1428
          %v1465 = vunpack.c.l.b16 %v1429
          %v1466 = vunpack.c.l.b16 %v1430
          %v1467 = vunpack.c.l.b16 %v1431
          %v1468 = vunpack.c.l.b16 %v1432
          %v1469 = vunpack.c.l.b16 %v1433
          %v1470 = vpack.c.b16 %v1463, %v1462
          %v1471 = vpack.c.b16 %v1465, %v1464
          %v1472 = vpack.c.b16 %v1467, %v1466
          %v1473 = vpack.c.b16 %v1469, %v1468
          %v1494 = vunpack.c.l.b16 %v1434
          %v1495 = vunpack.c.l.b16 %v1435
          %v1496 = vunpack.c.l.b16 %v1436
          %v1497 = vunpack.c.l.b16 %v1437
          %v1498 = vunpack.c.l.b16 %v1438
          %v1499 = vunpack.c.l.b16 %v1439
          %v1500 = vunpack.c.l.b16 %v1440
          %v1501 = vunpack.c.l.b16 %v1441
          %v1502 = vunpack.c.l.b16 %v1442
          %v1503 = vunpack.c.l.b16 %v1443
          %v1504 = vunpack.c.l.b16 %v1444
          %v1505 = vunpack.c.l.b16 %v1445
          %v1506 = vunpack.c.l.b16 %v1446
          %v1507 = vunpack.c.l.b16 %v1447
          %v1508 = vunpack.c.l.b16 %v1448
          %v1509 = vunpack.c.l.b16 %v1449
          %v1510 = vpack.c.b16 %v1495, %v1494
          %v1511 = vpack.c.b16 %v1497, %v1496
          %v1512 = vpack.c.b16 %v1499, %v1498
          %v1513 = vpack.c.b16 %v1501, %v1500
          %v1514 = vpack.c.b16 %v1503, %v1502
          %v1515 = vpack.c.b16 %v1505, %v1504
          %v1516 = vpack.c.b16 %v1507, %v1506
          %v1517 = vpack.c.b16 %v1509, %v1508
          %1526 = vmatpush.bf16.msra.mxu0 %v1517
          %1527 = vmatpush.bf16.msra.mxu0 %v1516
          %1528 = vmatpush.bf16.msra.mxu0 %v1515
          %1529 = vmatpush.bf16.msra.mxu0 %v1514
          %1530 = vmatpush.bf16.msra.mxu0 %v1513
          %1531 = vmatpush.bf16.msra.mxu0 %v1512
          %1532 = vmatpush.bf16.msra.mxu0 %v1511
          %1533 = vmatpush.bf16.msra.mxu0 %v1510
          %1534 = vmatmul.bf16.gmra.mxu0 %v1470
          %v1535 = vpop.f32.mrf.mxu0
          %v1536 = vadd.f32 %v1452, %v1535
          %v1537 = vpop.f32.mrf.mxu0
          %v1538 = vadd.f32 %v1452, %v1537
          %1539 = vmatmul.bf16.gmra.mxu0 %v1471
          %v1540 = vpop.f32.mrf.mxu0
          %v1541 = vadd.f32 %v1452, %v1540
          %v1542 = vpop.f32.mrf.mxu0
          %v1543 = vadd.f32 %v1452, %v1542
          %1544 = vmatmul.bf16.gmra.mxu0 %v1472
          %v1545 = vpop.f32.mrf.mxu0
          %v1546 = vadd.f32 %v1452, %v1545
          %v1547 = vpop.f32.mrf.mxu0
          %v1548 = vadd.f32 %v1452, %v1547
          %1549 = vmatmul.bf16.gmra.mxu0 %v1473
          %v1550 = vpop.f32.mrf.mxu0
          %v1551 = vadd.f32 %v1452, %v1550
          %v1552 = vpop.f32.mrf.mxu0
          %v1553 = vadd.f32 %v1452, %v1552
          %1554 = vdwg.mxu0
          %v1555 = vld [vmem:[#allocation2] sm:$0xff]
          %v1556 = vld [vmem:[#allocation2 + $0x8] sm:$0xff]
          %v1557 = vld [vmem:[#allocation2 + $0x10] sm:$0xff]
          %v1558 = vld [vmem:[#allocation2 + $0x18] sm:$0xff]
          %v1559 = vld [vmem:[#allocation2 + $0x20] sm:$0xff]
          %v1560 = vld [vmem:[#allocation2 + $0x28] sm:$0xff]
          %v1561 = vld [vmem:[#allocation2 + $0x30] sm:$0xff]
          %v1562 = vld [vmem:[#allocation2 + $0x38] sm:$0xff]
          %v1563 = vld [vmem:[%s535] sm:$0xff]
          %v1564 = vld [vmem:[%s535 + $0x8] sm:$0xff]
          %v1565 = vld [vmem:[%s535 + $0x10] sm:$0xff]
          %v1566 = vld [vmem:[%s535 + $0x18] sm:$0xff]
          %v1567 = vld [vmem:[%s535 + $0x20] sm:$0xff]
          %v1568 = vld [vmem:[%s535 + $0x28] sm:$0xff]
          %v1569 = vld [vmem:[%s535 + $0x30] sm:$0xff]
          %v1570 = vld [vmem:[%s535 + $0x38] sm:$0xff]
          %1572 = vset.pattern.permute.xlu0 0
          %1573 = vperm.xlu0 %1572, %v1563
          %v1574 = vpop.permute.xlu0 %1573
          %1577 = vset.pattern.permute.xlu0 0
          %1578 = vperm.xlu0 %1577, %v1564
          %v1579 = vpop.permute.xlu0 %1578
          %1582 = vset.pattern.permute.xlu0 0
          %1583 = vperm.xlu0 %1582, %v1565
          %v1584 = vpop.permute.xlu0 %1583
          %1587 = vset.pattern.permute.xlu0 0
          %1588 = vperm.xlu0 %1587, %v1566
          %v1589 = vpop.permute.xlu0 %1588
          %1592 = vset.pattern.permute.xlu0 0
          %1593 = vperm.xlu0 %1592, %v1567
          %v1594 = vpop.permute.xlu0 %1593
          %1597 = vset.pattern.permute.xlu0 0
          %1598 = vperm.xlu0 %1597, %v1568
          %v1599 = vpop.permute.xlu0 %1598
          %1602 = vset.pattern.permute.xlu0 0
          %1603 = vperm.xlu0 %1602, %v1569
          %v1604 = vpop.permute.xlu0 %1603
          %1607 = vset.pattern.permute.xlu0 0
          %1608 = vperm.xlu0 %1607, %v1570
          %v1609 = vpop.permute.xlu0 %1608
          %v1611 = vmul.f32 %v1555, %v1574
          %v1612 = vmul.f32 %v1556, %v1579
          %v1613 = vmul.f32 %v1557, %v1584
          %v1614 = vmul.f32 %v1558, %v1589
          %v1615 = vmul.f32 %v1559, %v1594
          %v1616 = vmul.f32 %v1560, %v1599
          %v1617 = vmul.f32 %v1561, %v1604
          %v1618 = vmul.f32 %v1562, %v1609
          %v1619 = vld [vmem:[#allocation3] sm:$0xff]
          %v1620 = vld [vmem:[#allocation3 + $0x8] sm:$0xff]
          %v1621 = vld [vmem:[#allocation3 + $0x10] sm:$0xff]
          %v1622 = vld [vmem:[#allocation3 + $0x18] sm:$0xff]
          %v1623 = vld [vmem:[#allocation3 + $0x20] sm:$0xff]
          %v1624 = vld [vmem:[#allocation3 + $0x28] sm:$0xff]
          %v1625 = vld [vmem:[#allocation3 + $0x30] sm:$0xff]
          %v1626 = vld [vmem:[#allocation3 + $0x38] sm:$0xff]
          %v1627 = vld [vmem:[%s541] sm:$0xff]
          %v1628 = vld [vmem:[%s541 + $0x8] sm:$0xff]
          %v1629 = vld [vmem:[%s541 + $0x10] sm:$0xff]
          %v1630 = vld [vmem:[%s541 + $0x18] sm:$0xff]
          %v1631 = vld [vmem:[%s541 + $0x20] sm:$0xff]
          %v1632 = vld [vmem:[%s541 + $0x28] sm:$0xff]
          %v1633 = vld [vmem:[%s541 + $0x30] sm:$0xff]
          %v1634 = vld [vmem:[%s541 + $0x38] sm:$0xff]
          %1636 = vset.pattern.permute.xlu0 0
          %1637 = vperm.xlu0 %1636, %v1627
          %v1638 = vpop.permute.xlu0 %1637
          %1641 = vset.pattern.permute.xlu0 0
          %1642 = vperm.xlu0 %1641, %v1628
          %v1643 = vpop.permute.xlu0 %1642
          %1646 = vset.pattern.permute.xlu0 0
          %1647 = vperm.xlu0 %1646, %v1629
          %v1648 = vpop.permute.xlu0 %1647
          %1651 = vset.pattern.permute.xlu0 0
          %1652 = vperm.xlu0 %1651, %v1630
          %v1653 = vpop.permute.xlu0 %1652
          %1656 = vset.pattern.permute.xlu0 0
          %1657 = vperm.xlu0 %1656, %v1631
          %v1658 = vpop.permute.xlu0 %1657
          %1661 = vset.pattern.permute.xlu0 0
          %1662 = vperm.xlu0 %1661, %v1632
          %v1663 = vpop.permute.xlu0 %1662
          %1666 = vset.pattern.permute.xlu0 0
          %1667 = vperm.xlu0 %1666, %v1633
          %v1668 = vpop.permute.xlu0 %1667
          %1671 = vset.pattern.permute.xlu0 0
          %1672 = vperm.xlu0 %1671, %v1634
          %v1673 = vpop.permute.xlu0 %1672
          %v1675 = vmul.f32 %v1619, %v1638
          %v1676 = vmul.f32 %v1620, %v1643
          %v1677 = vmul.f32 %v1621, %v1648
          %v1678 = vmul.f32 %v1622, %v1653
          %v1679 = vmul.f32 %v1623, %v1658
          %v1680 = vmul.f32 %v1624, %v1663
          %v1681 = vmul.f32 %v1625, %v1668
          %v1682 = vmul.f32 %v1626, %v1673
          %v1683 = vadd.f32 %v1611, %v1675
          %v1684 = vadd.f32 %v1612, %v1676
          %v1685 = vadd.f32 %v1613, %v1677
          %v1686 = vadd.f32 %v1614, %v1678
          %v1687 = vadd.f32 %v1615, %v1679
          %v1688 = vadd.f32 %v1616, %v1680
          %v1689 = vadd.f32 %v1617, %v1681
          %v1690 = vadd.f32 %v1618, %v1682
          %v1691 = vadd.f32 %v1683, %v1536
          %v1692 = vadd.f32 %v1684, %v1538
          %v1693 = vadd.f32 %v1685, %v1541
          %v1694 = vadd.f32 %v1686, %v1543
          %v1695 = vadd.f32 %v1687, %v1546
          %v1696 = vadd.f32 %v1688, %v1548
          %v1697 = vadd.f32 %v1689, %v1551
          %v1698 = vadd.f32 %v1690, %v1553
          %v1699 = vmax.f32 %v1691, 0.0
          %v1700 = vmax.f32 %v1692, 0.0
          %v1701 = vmax.f32 %v1693, 0.0
          %v1702 = vmax.f32 %v1694, 0.0
          %v1703 = vmax.f32 %v1695, 0.0
          %v1704 = vmax.f32 %v1696, 0.0
          %v1705 = vmax.f32 %v1697, 0.0
          %v1706 = vmax.f32 %v1698, 0.0
          %1707 = vst [vmem:[%s498] sm:$0xff] %v1699
          %1708 = vst [vmem:[%s498 + $0x8] sm:$0xff] %v1700
          %1709 = vst [vmem:[%s498 + $0x10] sm:$0xff] %v1701
          %1710 = vst [vmem:[%s498 + $0x18] sm:$0xff] %v1702
          %1711 = vst [vmem:[%s498 + $0x20] sm:$0xff] %v1703
          %1712 = vst [vmem:[%s498 + $0x28] sm:$0xff] %v1704
          %1713 = vst [vmem:[%s498 + $0x30] sm:$0xff] %v1705
          %1714 = vst [vmem:[%s498 + $0x38] sm:$0xff] %v1706
        $region72: #{rgcn_forward.7} parent=63 // pred_fallthru
          _
        %s1715 = sand.u32 %s316, 1
        %s1716 = scalar_lea.sflag [#allocation5], %s1715
        %s1717 = sand.u32 %s316, 1
        %s1718 = smul.addr %s1717, 64
        %s1719 = scalar_lea.vmem [#allocation4], %s1718
        // Predicated region
        $region73: #{rgcn_forward.7} parent=63 // pred_check
          %p1720 = pneg %p326
        $region74: #{rgcn_forward.7} parent=63 // pred_check_branch
          %1722 = sbr.rel (%p1720) target = $region76
        $region75: #{rgcn_forward.7} parent=63 // pred_region
          %s1723 = smul.u32 8, %s29
          %1725 = vsyncadd %s1716, 0
          %s1726 = smul.addr %s1723, 8
          %s1727 = scalar_lea.hbm %s11, %s1726
          %s1728 = sshll.u32 %s1719, 4
          %s1729 = int_to_ptr.vmem [resolvable:$true] %s1728
          %s1730 = sshll.u32 %s1727, 4
          %s1731 = int_to_ptr.hbm [resolvable:$true] %s1730
          %1736 = dma.vmem_to_hbm [thread:$0]  %s1729, 1024, %s1731, %s1716, 128, 128, 8
        $region76: #{rgcn_forward.7} parent=63 // pred_fallthru
          _
      $region64: #{rgcn_forward.7} parent=5 // pred_fallthru
        _
      %p1737 = scmp.le.s32.totalorder 2, %s20
      // Predicated region
      $region77: #{rgcn_forward.7} parent=5 // pred_check
        %p1738 = pneg %p1737
      $region78: #{rgcn_forward.7} parent=5 // pred_check_branch
        %1740 = sbr.rel (%p1738) target = $region80
      $region79: #{rgcn_forward.7} parent=5 // pred_region
        %s1741 = ssub.s32 %s20, 2
        // Predicated region
        $region81: #{rgcn_forward.7} parent=79 // pred_check
          %p1742 = pneg %p332
        $region82: #{rgcn_forward.7} parent=79 // pred_check_branch
          %1744 = sbr.rel (%p1742) target = $region84
        $region83: #{rgcn_forward.7} parent=79 // pred_region
          %s1745 = sand.u32 %s317, 1
          %s1746 = scalar_lea.sflag [#allocation5], %s1745
          %s1747 = sand.u32 %s317, 1
          %s1748 = smul.addr %s1747, 64
          %s1749 = scalar_lea.vmem [#allocation4], %s1748
          %1751 = dma.done %s1746, 1024
        $region84: #{rgcn_forward.7} parent=79 // pred_fallthru
          _
      $region80: #{rgcn_forward.7} parent=5 // pred_fallthru
        _
    $region6: #{rgcn_forward.7} parent=1 // loop_footer
      %s24 = sadd.s32 1, %s20
    $region7: #{rgcn_forward.7} parent=1 // loop_footer_branch
      %19 = sbr.rel target = $region3
    $region8: #{rgcn_forward.7} parent=1 // loop_exit
      _
    %1752 = vsyncpa [#allocation5], 1
    %s1753 = scalar_lea.sflag [#allocation5], 1
    %1754 = vsyncpa %s1753, 1

// kernel: rgcn_forward.5
$region0: #{rgcn_forward.5}
  #allocation0 [shape = 'u32[]', space=smem, size = 0x4, offset = 0x4, fixed_abs, tag = 'smem constant byte address 0x4 - core index']
  #allocation1 [shape = 'u32[72,128]{1,0:T(1,128)}', space=vmem, size = 0x9000, scoped, tag = 'internal scratch']
  #allocation2 [shape = 'f32[64,128]{1,0:T(8,128)}', space=vmem, size = 0x8000, scoped, tag = 'scratch operand']
  #allocation3 [shape = 'f32[64,128]{1,0:T(8,128)}', space=vmem, size = 0x8000, scoped, tag = 'scratch operand']
  %s0 = inlined_call_operand.vmem [shape: bf16[256,128], index: 0, kind: input, shape index: {}]
  %s1 = inlined_call_operand.vmem [shape: bf16[256,256], index: 1, kind: input, shape index: {}]
  %s2 = inlined_call_operand.vmem [shape: bf16[256,256], index: 2, kind: input, shape index: {}]
  %s3 = inlined_call_operand.vmem [shape: s32[1,256], index: 3, kind: input, shape index: {}]
  %s4 = inlined_call_operand.vmem [shape: s32[1,256], index: 4, kind: input, shape index: {}]
  %s5 = inlined_call_operand.vmem [shape: bf16[128,128], index: 5, kind: input, shape index: {}]
  %s6 = inlined_call_operand.vmem [shape: bf16[128,4], index: 6, kind: input, shape index: {}]
  %s7 = inlined_call_operand.vmem [shape: bf16[128,128], index: 7, kind: input, shape index: {}]
  %s8 = inlined_call_operand.vmem [shape: f32[1,128], index: 8, kind: input, shape index: {}]
  %s9 = inlined_call_operand.vmem [shape: f32[128,1], index: 9, kind: input, shape index: {}]
  %s10 = inlined_call_operand.vmem [shape: f32[128,1], index: 10, kind: input, shape index: {}]
  %s11 = inlined_call_operand.vmem [shape: f32[128,128], index: 11, kind: output, shape index: {}]
  %s12 = sld [smem:[#allocation0]]
  $region85: #{rgcn_forward.5} parent=0
    _
  %s14 = ssub.s32 1, %s12
  %s15 = scalar_select 0, %s14, %s12
  loop: start=0, step=1, limit=6
  $region2: #{rgcn_forward.5} parent=0 // loop_pre_header
    _
  $region3: #{rgcn_forward.5} parent=0 // loop_header
    %s17 = sphi 0, %s21
    %p18 = scmp.ge.s32.totalorder %s17, 6
    %s24 = sphi 0, %s36
    %s25 = sphi 0, %s32
    %s26 = sphi 0, %s24
    %s27 = sphi 0, %s25
    %s28 = sphi 0, %s26
    %s29 = sphi 0, %s27
    %s39 = sphi 0, %s41
    %s42 = sphi 0, %s39
    %s43 = sphi 0, %s42
    %s59 = sphi 0, %s43
    %s65 = sphi 0, %s67
    %s68 = sphi 0, %s65
    %s69 = sphi 0, %s68
    %s85 = sphi 0, %s69
    %s91 = sphi 0, %s93
    %s94 = sphi 0, %s91
    %s95 = sphi 0, %s94
    %s111 = sphi 0, %s95
    %s117 = sphi 0, %s119
    %s120 = sphi 0, %s117
    %s121 = sphi 0, %s120
    %s137 = sphi 0, %s121
    %s143 = sphi 0, %s145
    %s146 = sphi 0, %s143
    %s147 = sphi 0, %s146
    %s163 = sphi 0, %s147
    %s169 = sphi 0, %s171
    %s172 = sphi 0, %s169
    %s173 = sphi 0, %s172
    %s189 = sphi 0, %s173
    %s193 = sphi 0, %s193
    %s195 = sphi 0, %s193
    %s196 = sphi 0, %s195
    %s210 = sphi 0, %s196
    %s214 = sphi 0, %s214
    %s216 = sphi 0, %s214
    %s217 = sphi 0, %s216
    %s231 = sphi 0, %s217
    %s235 = sphi 0, %s235
    %s237 = sphi 0, %s235
    %s238 = sphi 0, %s237
    %s252 = sphi 0, %s238
    %s258 = sphi 0, %s260
    %s261 = sphi 0, %s258
    %s262 = sphi 0, %s261
    %s278 = sphi 0, %s262
    %s284 = sphi 0, %s286
    %s287 = sphi 0, %s284
    %s288 = sphi 0, %s287
    %s304 = sphi 0, %s288
    %s310 = sphi 0, %s312
    %s313 = sphi 0, %s310
    %s314 = sphi 0, %s313
    %s330 = sphi 0, %s314
  $region4: #{rgcn_forward.5} parent=0 // loop_header_branch
    %20 = sbr.rel (%p18) target = $region8
  $region5: #{rgcn_forward.5} parent=0 // loop_body
    %s22 = ssub.s32 %s17, 1
    %s23 = ssub.s32 %s17, 2
    %s30 = sadd.s32 1, %s25
    %p31 = scmp.ge.s32.totalorder %s30, 2
    %s32 = scalar_select %p31, 0, %s30
    %s33 = sadd.s32 1, %s24
    %s34 = scalar_select %p31, %s33, %s24
    %p35 = scmp.ge.s32.totalorder %s34, 2
    %s36 = scalar_select %p35, 0, %s34
    %s37 = ssub.s32 %s25, %s32
    %p38 = scmp.eq.s32.totalorder %s37, 0
    %s40 = sadd.s32 %s39, 1
    %s41 = scalar_select %p38, %s39, %s40
    %p44 = pneg %p38
    %p45 = scmp.eq.s32.totalorder %s17, 3
    %p46 = por %p44, %p45
    %p47 = scmp.ne.s32.totalorder %s39, %s42
    %p48 = scmp.eq.s32.totalorder %s17, 0
    %p49 = por %p47, %p48
    %p50 = scmp.ne.s32.totalorder %s39, %s42
    %p51 = scmp.eq.s32.totalorder %s22, 3
    %p52 = por %p50, %p51
    %p53 = scmp.ne.s32.totalorder %s42, %s43
    %p54 = scmp.eq.s32.totalorder %s22, 0
    %p55 = por %p53, %p54
    %p56 = scmp.ne.s32.totalorder %s42, %s43
    %p57 = scmp.eq.s32.totalorder %s23, 3
    %p58 = por %p56, %p57
    %p60 = scmp.ne.s32.totalorder %s43, %s59
    %p61 = scmp.eq.s32.totalorder %s23, 0
    %p62 = por %p60, %p61
    %s63 = ssub.s32 %s25, %s32
    %p64 = scmp.eq.s32.totalorder %s63, 0
    %s66 = sadd.s32 %s65, 1
    %s67 = scalar_select %p64, %s65, %s66
    %p70 = pneg %p64
    %p71 = scmp.eq.s32.totalorder %s17, 3
    %p72 = por %p70, %p71
    %p73 = scmp.ne.s32.totalorder %s65, %s68
    %p74 = scmp.eq.s32.totalorder %s17, 0
    %p75 = por %p73, %p74
    %p76 = scmp.ne.s32.totalorder %s65, %s68
    %p77 = scmp.eq.s32.totalorder %s22, 3
    %p78 = por %p76, %p77
    %p79 = scmp.ne.s32.totalorder %s68, %s69
    %p80 = scmp.eq.s32.totalorder %s22, 0
    %p81 = por %p79, %p80
    %p82 = scmp.ne.s32.totalorder %s68, %s69
    %p83 = scmp.eq.s32.totalorder %s23, 3
    %p84 = por %p82, %p83
    %p86 = scmp.ne.s32.totalorder %s69, %s85
    %p87 = scmp.eq.s32.totalorder %s23, 0
    %p88 = por %p86, %p87
    %s89 = ssub.s32 %s25, %s32
    %p90 = scmp.eq.s32.totalorder %s89, 0
    %s92 = sadd.s32 %s91, 1
    %s93 = scalar_select %p90, %s91, %s92
    %p96 = pneg %p90
    %p97 = scmp.eq.s32.totalorder %s17, 3
    %p98 = por %p96, %p97
    %p99 = scmp.ne.s32.totalorder %s91, %s94
    %p100 = scmp.eq.s32.totalorder %s17, 0
    %p101 = por %p99, %p100
    %p102 = scmp.ne.s32.totalorder %s91, %s94
    %p103 = scmp.eq.s32.totalorder %s22, 3
    %p104 = por %p102, %p103
    %p105 = scmp.ne.s32.totalorder %s94, %s95
    %p106 = scmp.eq.s32.totalorder %s22, 0
    %p107 = por %p105, %p106
    %p108 = scmp.ne.s32.totalorder %s94, %s95
    %p109 = scmp.eq.s32.totalorder %s23, 3
    %p110 = por %p108, %p109
    %p112 = scmp.ne.s32.totalorder %s95, %s111
    %p113 = scmp.eq.s32.totalorder %s23, 0
    %p114 = por %p112, %p113
    %s115 = ssub.s32 %s25, %s32
    %p116 = scmp.eq.s32.totalorder %s115, 0
    %s118 = sadd.s32 %s117, 1
    %s119 = scalar_select %p116, %s117, %s118
    %p122 = pneg %p116
    %p123 = scmp.eq.s32.totalorder %s17, 3
    %p124 = por %p122, %p123
    %p125 = scmp.ne.s32.totalorder %s117, %s120
    %p126 = scmp.eq.s32.totalorder %s17, 0
    %p127 = por %p125, %p126
    %p128 = scmp.ne.s32.totalorder %s117, %s120
    %p129 = scmp.eq.s32.totalorder %s22, 3
    %p130 = por %p128, %p129
    %p131 = scmp.ne.s32.totalorder %s120, %s121
    %p132 = scmp.eq.s32.totalorder %s22, 0
    %p133 = por %p131, %p132
    %p134 = scmp.ne.s32.totalorder %s120, %s121
    %p135 = scmp.eq.s32.totalorder %s23, 3
    %p136 = por %p134, %p135
    %p138 = scmp.ne.s32.totalorder %s121, %s137
    %p139 = scmp.eq.s32.totalorder %s23, 0
    %p140 = por %p138, %p139
    %s141 = ssub.s32 %s25, %s32
    %p142 = scmp.eq.s32.totalorder %s141, 0
    %s144 = sadd.s32 %s143, 1
    %s145 = scalar_select %p142, %s143, %s144
    %p148 = pneg %p142
    %p149 = scmp.eq.s32.totalorder %s17, 3
    %p150 = por %p148, %p149
    %p151 = scmp.ne.s32.totalorder %s143, %s146
    %p152 = scmp.eq.s32.totalorder %s17, 0
    %p153 = por %p151, %p152
    %p154 = scmp.ne.s32.totalorder %s143, %s146
    %p155 = scmp.eq.s32.totalorder %s22, 3
    %p156 = por %p154, %p155
    %p157 = scmp.ne.s32.totalorder %s146, %s147
    %p158 = scmp.eq.s32.totalorder %s22, 0
    %p159 = por %p157, %p158
    %p160 = scmp.ne.s32.totalorder %s146, %s147
    %p161 = scmp.eq.s32.totalorder %s23, 3
    %p162 = por %p160, %p161
    %p164 = scmp.ne.s32.totalorder %s147, %s163
    %p165 = scmp.eq.s32.totalorder %s23, 0
    %p166 = por %p164, %p165
    %s167 = ssub.s32 %s24, %s36
    %p168 = scmp.eq.s32.totalorder %s167, 0
    %s170 = sadd.s32 %s169, 1
    %s171 = scalar_select %p168, %s169, %s170
    %p174 = pneg %p168
    %p175 = scmp.eq.s32.totalorder %s17, 3
    %p176 = por %p174, %p175
    %p177 = scmp.ne.s32.totalorder %s169, %s172
    %p178 = scmp.eq.s32.totalorder %s17, 0
    %p179 = por %p177, %p178
    %p180 = scmp.ne.s32.totalorder %s169, %s172
    %p181 = scmp.eq.s32.totalorder %s22, 3
    %p182 = por %p180, %p181
    %p183 = scmp.ne.s32.totalorder %s172, %s173
    %p184 = scmp.eq.s32.totalorder %s22, 0
    %p185 = por %p183, %p184
    %p186 = scmp.ne.s32.totalorder %s172, %s173
    %p187 = scmp.eq.s32.totalorder %s23, 3
    %p188 = por %p186, %p187
    %p190 = scmp.ne.s32.totalorder %s173, %s189
    %p191 = scmp.eq.s32.totalorder %s23, 0
    %p192 = por %p190, %p191
    %s194 = sadd.s32 %s193, 1
    %p197 = scmp.eq.s32.totalorder %s17, 3
    %p198 = scmp.ne.s32.totalorder %s193, %s195
    %p199 = scmp.eq.s32.totalorder %s17, 0
    %p200 = por %p198, %p199
    %p201 = scmp.ne.s32.totalorder %s193, %s195
    %p202 = scmp.eq.s32.totalorder %s22, 3
    %p203 = por %p201, %p202
    %p204 = scmp.ne.s32.totalorder %s195, %s196
    %p205 = scmp.eq.s32.totalorder %s22, 0
    %p206 = por %p204, %p205
    %p207 = scmp.ne.s32.totalorder %s195, %s196
    %p208 = scmp.eq.s32.totalorder %s23, 3
    %p209 = por %p207, %p208
    %p211 = scmp.ne.s32.totalorder %s196, %s210
    %p212 = scmp.eq.s32.totalorder %s23, 0
    %p213 = por %p211, %p212
    %s215 = sadd.s32 %s214, 1
    %p218 = scmp.eq.s32.totalorder %s17, 3
    %p219 = scmp.ne.s32.totalorder %s214, %s216
    %p220 = scmp.eq.s32.totalorder %s17, 0
    %p221 = por %p219, %p220
    %p222 = scmp.ne.s32.totalorder %s214, %s216
    %p223 = scmp.eq.s32.totalorder %s22, 3
    %p224 = por %p222, %p223
    %p225 = scmp.ne.s32.totalorder %s216, %s217
    %p226 = scmp.eq.s32.totalorder %s22, 0
    %p227 = por %p225, %p226
    %p228 = scmp.ne.s32.totalorder %s216, %s217
    %p229 = scmp.eq.s32.totalorder %s23, 3
    %p230 = por %p228, %p229
    %p232 = scmp.ne.s32.totalorder %s217, %s231
    %p233 = scmp.eq.s32.totalorder %s23, 0
    %p234 = por %p232, %p233
    %s236 = sadd.s32 %s235, 1
    %p239 = scmp.eq.s32.totalorder %s17, 3
    %p240 = scmp.ne.s32.totalorder %s235, %s237
    %p241 = scmp.eq.s32.totalorder %s17, 0
    %p242 = por %p240, %p241
    %p243 = scmp.ne.s32.totalorder %s235, %s237
    %p244 = scmp.eq.s32.totalorder %s22, 3
    %p245 = por %p243, %p244
    %p246 = scmp.ne.s32.totalorder %s237, %s238
    %p247 = scmp.eq.s32.totalorder %s22, 0
    %p248 = por %p246, %p247
    %p249 = scmp.ne.s32.totalorder %s237, %s238
    %p250 = scmp.eq.s32.totalorder %s23, 3
    %p251 = por %p249, %p250
    %p253 = scmp.ne.s32.totalorder %s238, %s252
    %p254 = scmp.eq.s32.totalorder %s23, 0
    %p255 = por %p253, %p254
    %s256 = ssub.s32 %s24, %s36
    %p257 = scmp.eq.s32.totalorder %s256, 0
    %s259 = sadd.s32 %s258, 1
    %s260 = scalar_select %p257, %s258, %s259
    %p263 = pneg %p257
    %p264 = scmp.eq.s32.totalorder %s17, 3
    %p265 = por %p263, %p264
    %p266 = scmp.ne.s32.totalorder %s258, %s261
    %p267 = scmp.eq.s32.totalorder %s17, 0
    %p268 = por %p266, %p267
    %p269 = scmp.ne.s32.totalorder %s258, %s261
    %p270 = scmp.eq.s32.totalorder %s22, 3
    %p271 = por %p269, %p270
    %p272 = scmp.ne.s32.totalorder %s261, %s262
    %p273 = scmp.eq.s32.totalorder %s22, 0
    %p274 = por %p272, %p273
    %p275 = scmp.ne.s32.totalorder %s261, %s262
    %p276 = scmp.eq.s32.totalorder %s23, 3
    %p277 = por %p275, %p276
    %p279 = scmp.ne.s32.totalorder %s262, %s278
    %p280 = scmp.eq.s32.totalorder %s23, 0
    %p281 = por %p279, %p280
    %s282 = ssub.s32 %s24, %s36
    %p283 = scmp.eq.s32.totalorder %s282, 0
    %s285 = sadd.s32 %s284, 1
    %s286 = scalar_select %p283, %s284, %s285
    %p289 = pneg %p283
    %p290 = scmp.eq.s32.totalorder %s17, 3
    %p291 = por %p289, %p290
    %p292 = scmp.ne.s32.totalorder %s284, %s287
    %p293 = scmp.eq.s32.totalorder %s17, 0
    %p294 = por %p292, %p293
    %p295 = scmp.ne.s32.totalorder %s284, %s287
    %p296 = scmp.eq.s32.totalorder %s22, 3
    %p297 = por %p295, %p296
    %p298 = scmp.ne.s32.totalorder %s287, %s288
    %p299 = scmp.eq.s32.totalorder %s22, 0
    %p300 = por %p298, %p299
    %p301 = scmp.ne.s32.totalorder %s287, %s288
    %p302 = scmp.eq.s32.totalorder %s23, 3
    %p303 = por %p301, %p302
    %p305 = scmp.ne.s32.totalorder %s288, %s304
    %p306 = scmp.eq.s32.totalorder %s23, 0
    %p307 = por %p305, %p306
    %s308 = ssub.s32 %s24, %s36
    %p309 = scmp.eq.s32.totalorder %s308, 0
    %s311 = sadd.s32 %s310, 1
    %s312 = scalar_select %p309, %s310, %s311
    %p315 = pneg %p309
    %p316 = scmp.eq.s32.totalorder %s17, 3
    %p317 = por %p315, %p316
    %p318 = scmp.ne.s32.totalorder %s310, %s313
    %p319 = scmp.eq.s32.totalorder %s17, 0
    %p320 = por %p318, %p319
    %p321 = scmp.ne.s32.totalorder %s310, %s313
    %p322 = scmp.eq.s32.totalorder %s22, 3
    %p323 = por %p321, %p322
    %p324 = scmp.ne.s32.totalorder %s313, %s314
    %p325 = scmp.eq.s32.totalorder %s22, 0
    %p326 = por %p324, %p325
    %p327 = scmp.ne.s32.totalorder %s313, %s314
    %p328 = scmp.eq.s32.totalorder %s23, 3
    %p329 = por %p327, %p328
    %p331 = scmp.ne.s32.totalorder %s314, %s330
    %p332 = scmp.eq.s32.totalorder %s23, 0
    %p333 = por %p331, %p332
    %p334 = scmp.le.s32.totalorder 1, %s17
    %p335 = scmp.lt.s32.totalorder %s17, 5
    %p336 = pnand %p334, %p335
    %p337 = pneg %p336
    // Predicated region
    $region9: #{rgcn_forward.5} parent=5 // pred_check
      _
    $region10: #{rgcn_forward.5} parent=5 // pred_check_branch
      %339 = sbr.rel (%p336) target = $region12
    $region11: #{rgcn_forward.5} parent=5 // pred_region
      %s340 = ssub.s32 %s17, 1
      // Predicated region
      $region13: #{rgcn_forward.5} parent=11 // pred_check
        %p341 = pneg %p206
      $region14: #{rgcn_forward.5} parent=11 // pred_check_branch
        %343 = sbr.rel (%p341) target = $region16
      $region15: #{rgcn_forward.5} parent=11 // pred_region
        _
      $region16: #{rgcn_forward.5} parent=11 // pred_fallthru
        _
      // Predicated region
      $region17: #{rgcn_forward.5} parent=11 // pred_check
        %p344 = pneg %p227
      $region18: #{rgcn_forward.5} parent=11 // pred_check_branch
        %346 = sbr.rel (%p344) target = $region20
      $region19: #{rgcn_forward.5} parent=11 // pred_region
        _
      $region20: #{rgcn_forward.5} parent=11 // pred_fallthru
        _
      // Predicated region
      $region21: #{rgcn_forward.5} parent=11 // pred_check
        %p347 = pneg %p248
      $region22: #{rgcn_forward.5} parent=11 // pred_check_branch
        %349 = sbr.rel (%p347) target = $region24
      $region23: #{rgcn_forward.5} parent=11 // pred_region
        _
      $region24: #{rgcn_forward.5} parent=11 // pred_fallthru
        _
    $region12: #{rgcn_forward.5} parent=5 // pred_fallthru
      _
    %p350 = scmp.lt.s32.totalorder %s17, 4
    // Predicated region
    $region25: #{rgcn_forward.5} parent=5 // pred_check
      %p351 = pneg %p350
    $region26: #{rgcn_forward.5} parent=5 // pred_check_branch
      %353 = sbr.rel (%p351) target = $region28
    $region27: #{rgcn_forward.5} parent=5 // pred_region
      // Predicated region
      $region29: #{rgcn_forward.5} parent=27 // pred_check
        %p354 = pneg %p49
      $region30: #{rgcn_forward.5} parent=27 // pred_check_branch
        %356 = sbr.rel (%p354) target = $region32
      $region31: #{rgcn_forward.5} parent=27 // pred_region
        %s357 = smul.u32 16, %s25
        %p358 = scmp.lt.s32.totalorder %s357, 31
        %s359 = scalar_select %p358, %s357, 31
        %s360 = smul.addr %s359, 4
        %s361 = scalar_lea.vmem %s0, %s360
        %s362 = smul.u32 16, %s25
      $region32: #{rgcn_forward.5} parent=27 // pred_fallthru
        _
      // Predicated region
      $region33: #{rgcn_forward.5} parent=27 // pred_check
        %p363 = pneg %p75
      $region34: #{rgcn_forward.5} parent=27 // pred_check_branch
        %365 = sbr.rel (%p363) target = $region36
      $region35: #{rgcn_forward.5} parent=27 // pred_region
        %s366 = smul.u32 16, %s25
        %p367 = scmp.lt.s32.totalorder %s366, 31
        %s368 = scalar_select %p367, %s366, 31
        %s369 = smul.addr %s368, 2
        %s370 = smul.addr %s369, 4
        %s371 = scalar_lea.vmem %s1, %s370
        %s372 = smul.u32 16, %s25
      $region36: #{rgcn_forward.5} parent=27 // pred_fallthru
        _
      // Predicated region
      $region37: #{rgcn_forward.5} parent=27 // pred_check
        %p373 = pneg %p101
      $region38: #{rgcn_forward.5} parent=27 // pred_check_branch
        %375 = sbr.rel (%p373) target = $region40
      $region39: #{rgcn_forward.5} parent=27 // pred_region
        %s376 = smul.u32 16, %s25
        %p377 = scmp.lt.s32.totalorder %s376, 31
        %s378 = scalar_select %p377, %s376, 31
        %s379 = smul.addr %s378, 2
        %s380 = smul.addr %s379, 4
        %s381 = scalar_lea.vmem %s2, %s380
        %s382 = smul.u32 16, %s25
      $region40: #{rgcn_forward.5} parent=27 // pred_fallthru
        _
      // Predicated region
      $region41: #{rgcn_forward.5} parent=27 // pred_check
        %p383 = pneg %p127
      $region42: #{rgcn_forward.5} parent=27 // pred_check_branch
        %385 = sbr.rel (%p383) target = $region44
      $region43: #{rgcn_forward.5} parent=27 // pred_region
        %p386 = scmp.lt.s32.totalorder %s25, 1
        %s387 = scalar_select %p386, %s25, 1
        %s388 = scalar_lea.vmem %s3, %s387
      $region44: #{rgcn_forward.5} parent=27 // pred_fallthru
        _
      // Predicated region
      $region45: #{rgcn_forward.5} parent=27 // pred_check
        %p389 = pneg %p153
      $region46: #{rgcn_forward.5} parent=27 // pred_check_branch
        %391 = sbr.rel (%p389) target = $region48
      $region47: #{rgcn_forward.5} parent=27 // pred_region
        %p392 = scmp.lt.s32.totalorder %s25, 1
        %s393 = scalar_select %p392, %s25, 1
        %s394 = scalar_lea.vmem %s4, %s393
      $region48: #{rgcn_forward.5} parent=27 // pred_fallthru
        _
      // Predicated region
      $region49: #{rgcn_forward.5} parent=27 // pred_check
        %p395 = pneg %p179
      $region50: #{rgcn_forward.5} parent=27 // pred_check_branch
        %397 = sbr.rel (%p395) target = $region52
      $region51: #{rgcn_forward.5} parent=27 // pred_region
        %s398 = smul.u32 8, %s24
        %p399 = scmp.lt.s32.totalorder %s398, 15
        %s400 = scalar_select %p399, %s398, 15
        %s401 = smul.addr %s400, 4
        %s402 = scalar_lea.vmem %s5, %s401
        %s403 = smul.u32 8, %s24
      $region52: #{rgcn_forward.5} parent=27 // pred_fallthru
        _
      // Predicated region
      $region53: #{rgcn_forward.5} parent=27 // pred_check
        %p404 = pneg %p268
      $region54: #{rgcn_forward.5} parent=27 // pred_check_branch
        %406 = sbr.rel (%p404) target = $region56
      $region55: #{rgcn_forward.5} parent=27 // pred_region
        %s407 = smul.u32 8, %s24
        %p408 = scmp.lt.s32.totalorder %s407, 15
        %s409 = scalar_select %p408, %s407, 15
        %s410 = smul.addr %s409, 8
        %s411 = scalar_lea.vmem %s9, %s410
        %s412 = smul.u32 8, %s24
      $region56: #{rgcn_forward.5} parent=27 // pred_fallthru
        _
      // Predicated region
      $region57: #{rgcn_forward.5} parent=27 // pred_check
        %p413 = pneg %p294
      $region58: #{rgcn_forward.5} parent=27 // pred_check_branch
        %415 = sbr.rel (%p413) target = $region60
      $region59: #{rgcn_forward.5} parent=27 // pred_region
        %s416 = smul.u32 8, %s24
        %p417 = scmp.lt.s32.totalorder %s416, 15
        %s418 = scalar_select %p417, %s416, 15
        %s419 = smul.addr %s418, 8
        %s420 = scalar_lea.vmem %s10, %s419
        %s421 = smul.u32 8, %s24
      $region60: #{rgcn_forward.5} parent=27 // pred_fallthru
        _
    $region28: #{rgcn_forward.5} parent=5 // pred_fallthru
      _
    %p422 = scmp.le.s32.totalorder 1, %s17
    %p423 = scmp.lt.s32.totalorder %s17, 5
    %p424 = pnand %p422, %p423
    %p425 = pneg %p424
    // Predicated region
    $region61: #{rgcn_forward.5} parent=5 // pred_check
      _
    $region62: #{rgcn_forward.5} parent=5 // pred_check_branch
      %427 = sbr.rel (%p424) target = $region64
    $region63: #{rgcn_forward.5} parent=5 // pred_region
      %s428 = ssub.s32 %s17, 1
      %s429 = smul.u32 16, %s27
      %p430 = scmp.lt.s32.totalorder %s429, 31
      %s431 = scalar_select %p430, %s429, 31
      %s432 = smul.addr %s431, 4
      %s433 = scalar_lea.vmem %s0, %s432
      %p434 = pneg %p55
      %p435 = pneg %p52
      %s436 = smul.u32 16, %s27
      %p437 = scmp.lt.s32.totalorder %s436, 31
      %s438 = scalar_select %p437, %s436, 31
      %s439 = smul.addr %s438, 2
      %s440 = smul.addr %s439, 4
      %s441 = scalar_lea.vmem %s1, %s440
      %p442 = pneg %p81
      %p443 = pneg %p78
      %s444 = smul.u32 16, %s27
      %p445 = scmp.lt.s32.totalorder %s444, 31
      %s446 = scalar_select %p445, %s444, 31
      %s447 = smul.addr %s446, 2
      %s448 = smul.addr %s447, 4
      %s449 = scalar_lea.vmem %s2, %s448
      %p450 = pneg %p107
      %p451 = pneg %p104
      %p452 = scmp.lt.s32.totalorder %s27, 1
      %s453 = scalar_select %p452, %s27, 1
      %s454 = scalar_lea.vmem %s3, %s453
      %p455 = pneg %p133
      %p456 = pneg %p130
      %p457 = scmp.lt.s32.totalorder %s27, 1
      %s458 = scalar_select %p457, %s27, 1
      %s459 = scalar_lea.vmem %s4, %s458
      %p460 = pneg %p159
      %p461 = pneg %p156
      %s462 = smul.u32 8, %s26
      %p463 = scmp.lt.s32.totalorder %s462, 15
      %s464 = scalar_select %p463, %s462, 15
      %s465 = smul.addr %s464, 4
      %s466 = scalar_lea.vmem %s5, %s465
      %p467 = pneg %p185
      %p468 = pneg %p182
      %p469 = pneg %p206
      %p470 = pneg %p203
      %p471 = pneg %p227
      %p472 = pneg %p224
      %p473 = pneg %p248
      %p474 = pneg %p245
      %s475 = smul.u32 8, %s26
      %p476 = scmp.lt.s32.totalorder %s475, 15
      %s477 = scalar_select %p476, %s475, 15
      %s478 = smul.addr %s477, 8
      %s479 = scalar_lea.vmem %s9, %s478
      %p480 = pneg %p274
      %p481 = pneg %p271
      %s482 = smul.u32 8, %s26
      %p483 = scmp.lt.s32.totalorder %s482, 15
      %s484 = scalar_select %p483, %s482, 15
      %s485 = smul.addr %s484, 8
      %s486 = scalar_lea.vmem %s10, %s485
      %p487 = pneg %p300
      %p488 = pneg %p297
      %p489 = pneg %p326
      %p490 = pneg %p323
      %s491 = smul.u32 8, %s26
      %p492 = scmp.lt.s32.totalorder %s491, 15
      %s493 = scalar_select %p492, %s491, 15
      %s494 = smul.addr %s493, 8
      %s495 = scalar_lea.vmem %s11, %s494
      %s496 = smul.u32 16, %s27
      %p497 = scmp.lt.s32.totalorder %s496, 31
      %s498 = scalar_select %p497, %s496, 31
      %s499 = smul.addr %s498, 4
      %s500 = scalar_lea.vmem %s0, %s499
      %s501 = smul.u32 16, %s27
      %s502 = smul.u32 16, %s27
      %p503 = scmp.lt.s32.totalorder %s502, 31
      %s504 = scalar_select %p503, %s502, 31
      %s505 = smul.addr %s504, 2
      %s506 = smul.addr %s505, 4
      %s507 = scalar_lea.vmem %s1, %s506
      %s508 = smul.u32 16, %s27
      %s509 = smul.u32 16, %s27
      %p510 = scmp.lt.s32.totalorder %s509, 31
      %s511 = scalar_select %p510, %s509, 31
      %s512 = smul.addr %s511, 2
      %s513 = smul.addr %s512, 4
      %s514 = scalar_lea.vmem %s2, %s513
      %s515 = smul.u32 16, %s27
      %p516 = scmp.lt.s32.totalorder %s27, 1
      %s517 = scalar_select %p516, %s27, 1
      %s518 = scalar_lea.vmem %s3, %s517
      %p519 = scmp.lt.s32.totalorder %s27, 1
      %s520 = scalar_select %p519, %s27, 1
      %s521 = scalar_lea.vmem %s4, %s520
      %s522 = smul.u32 8, %s26
      %p523 = scmp.lt.s32.totalorder %s522, 15
      %s524 = scalar_select %p523, %s522, 15
      %s525 = smul.addr %s524, 4
      %s526 = scalar_lea.vmem %s5, %s525
      %s527 = smul.u32 8, %s26
      %s528 = smul.u32 8, %s26
      %p529 = scmp.lt.s32.totalorder %s528, 15
      %s530 = scalar_select %p529, %s528, 15
      %s531 = smul.addr %s530, 8
      %s532 = scalar_lea.vmem %s9, %s531
      %s533 = smul.u32 8, %s26
      %s534 = smul.u32 8, %s26
      %p535 = scmp.lt.s32.totalorder %s534, 15
      %s536 = scalar_select %p535, %s534, 15
      %s537 = smul.addr %s536, 8
      %s538 = scalar_lea.vmem %s10, %s537
      %s539 = smul.u32 8, %s26
      %s540 = smul.u32 8, %s26
      %p541 = scmp.lt.s32.totalorder %s540, 15
      %s542 = scalar_select %p541, %s540, 15
      %s543 = smul.addr %s542, 8
      %s544 = scalar_lea.vmem %s11, %s543
      %s545 = smul.u32 8, %s26
      %p546 = scmp.eq.s32.totalorder %s27, 0
      // Predicated region
      $region65: #{rgcn_forward.5} parent=63 // pred_check
        %p547 = pneg %p546
      $region66: #{rgcn_forward.5} parent=63 // pred_check_branch
        %549 = sbr.rel (%p547) target = $region68
      $region67: #{rgcn_forward.5} parent=63 // pred_region
        %550 = vst [vmem:[#allocation2] sm:$0xff] 0.0
        %551 = vst [vmem:[#allocation2 + $0x8] sm:$0xff] 0.0
        %552 = vst [vmem:[#allocation2 + $0x10] sm:$0xff] 0.0
        %553 = vst [vmem:[#allocation2 + $0x18] sm:$0xff] 0.0
        %554 = vst [vmem:[#allocation2 + $0x20] sm:$0xff] 0.0
        %555 = vst [vmem:[#allocation2 + $0x28] sm:$0xff] 0.0
        %556 = vst [vmem:[#allocation2 + $0x30] sm:$0xff] 0.0
        %557 = vst [vmem:[#allocation2 + $0x38] sm:$0xff] 0.0
        %558 = vst [vmem:[#allocation3] sm:$0xff] 0.0
        %559 = vst [vmem:[#allocation3 + $0x8] sm:$0xff] 0.0
        %560 = vst [vmem:[#allocation3 + $0x10] sm:$0xff] 0.0
        %561 = vst [vmem:[#allocation3 + $0x18] sm:$0xff] 0.0
        %562 = vst [vmem:[#allocation3 + $0x20] sm:$0xff] 0.0
        %563 = vst [vmem:[#allocation3 + $0x28] sm:$0xff] 0.0
        %564 = vst [vmem:[#allocation3 + $0x30] sm:$0xff] 0.0
        %565 = vst [vmem:[#allocation3 + $0x38] sm:$0xff] 0.0
      $region68: #{rgcn_forward.5} parent=63 // pred_fallthru
        _
      %v566 = vld [vmem:[%s500] sm:$0xf]
      %v567 = vld [vmem:[%s500 + $0x4] sm:$0xf]
      %v568 = vld [vmem:[%s500 + $0x8] sm:$0xf]
      %v569 = vld [vmem:[%s500 + $0xc] sm:$0xf]
      %v570 = vld [vmem:[%s500 + $0x10] sm:$0xf]
      %v571 = vld [vmem:[%s500 + $0x14] sm:$0xf]
      %v572 = vld [vmem:[%s500 + $0x18] sm:$0xf]
      %v573 = vld [vmem:[%s500 + $0x1c] sm:$0xf]
      %v574 = vld [vmem:[%s500 + $0x20] sm:$0xf]
      %v575 = vld [vmem:[%s500 + $0x24] sm:$0xf]
      %v576 = vld [vmem:[%s500 + $0x28] sm:$0xf]
      %v577 = vld [vmem:[%s500 + $0x2c] sm:$0xf]
      %v578 = vld [vmem:[%s500 + $0x30] sm:$0xf]
      %v579 = vld [vmem:[%s500 + $0x34] sm:$0xf]
      %v580 = vld [vmem:[%s500 + $0x38] sm:$0xf]
      %v581 = vld [vmem:[%s500 + $0x3c] sm:$0xf]
      %v582 = vld [vmem:[%s6] sm:$0xf]
      %v583 = vld [vmem:[%s6 + $0x4] sm:$0xf]
      %v584 = vld [vmem:[%s6 + $0x8] sm:$0xf]
      %v585 = vld [vmem:[%s6 + $0xc] sm:$0xf]
      %v586 = vld [vmem:[%s6 + $0x10] sm:$0xf]
      %v587 = vld [vmem:[%s6 + $0x14] sm:$0xf]
      %v588 = vld [vmem:[%s6 + $0x18] sm:$0xf]
      %v589 = vld [vmem:[%s6 + $0x1c] sm:$0xf]
      %v590 = vld [vmem:[%s6 + $0x20] sm:$0xf]
      %v591 = vld [vmem:[%s6 + $0x24] sm:$0xf]
      %v592 = vld [vmem:[%s6 + $0x28] sm:$0xf]
      %v593 = vld [vmem:[%s6 + $0x2c] sm:$0xf]
      %v594 = vld [vmem:[%s6 + $0x30] sm:$0xf]
      %v595 = vld [vmem:[%s6 + $0x34] sm:$0xf]
      %v596 = vld [vmem:[%s6 + $0x38] sm:$0xf]
      %v597 = vld [vmem:[%s6 + $0x3c] sm:$0xf]
      %v614 = vunpack.c.l.b16 %v566
      %v615 = vunpack.c.l.b16 %v567
      %v616 = vunpack.c.l.b16 %v568
      %v617 = vunpack.c.l.b16 %v569
      %v618 = vunpack.c.l.b16 %v570
      %v619 = vunpack.c.l.b16 %v571
      %v620 = vunpack.c.l.b16 %v572
      %v621 = vunpack.c.l.b16 %v573
      %v622 = vunpack.c.l.b16 %v574
      %v623 = vunpack.c.l.b16 %v575
      %v624 = vunpack.c.l.b16 %v576
      %v625 = vunpack.c.l.b16 %v577
      %v626 = vunpack.c.l.b16 %v578
      %v627 = vunpack.c.l.b16 %v579
      %v628 = vunpack.c.l.b16 %v580
      %v629 = vunpack.c.l.b16 %v581
      %v630 = vpack.c.b16 %v615, %v614
      %v631 = vpack.c.b16 %v617, %v616
      %v632 = vpack.c.b16 %v619, %v618
      %v633 = vpack.c.b16 %v621, %v620
      %v634 = vpack.c.b16 %v623, %v622
      %v635 = vpack.c.b16 %v625, %v624
      %v636 = vpack.c.b16 %v627, %v626
      %v637 = vpack.c.b16 %v629, %v628
      %v662 = vunpack.c.l.b16 %v582
      %v663 = vunpack.c.l.b16 %v583
      %v664 = vunpack.c.l.b16 %v584
      %v665 = vunpack.c.l.b16 %v585
      %v666 = vunpack.c.l.b16 %v586
      %v667 = vunpack.c.l.b16 %v587
      %v668 = vunpack.c.l.b16 %v588
      %v669 = vunpack.c.l.b16 %v589
      %v670 = vunpack.c.l.b16 %v590
      %v671 = vunpack.c.l.b16 %v591
      %v672 = vunpack.c.l.b16 %v592
      %v673 = vunpack.c.l.b16 %v593
      %v674 = vunpack.c.l.b16 %v594
      %v675 = vunpack.c.l.b16 %v595
      %v676 = vunpack.c.l.b16 %v596
      %v677 = vunpack.c.l.b16 %v597
      %v678 = vpack.c.b16 %v663, %v662
      %v679 = vpack.c.b16 %v665, %v664
      %v680 = vpack.c.b16 %v667, %v666
      %v681 = vpack.c.b16 %v669, %v668
      %v682 = vpack.c.b16 %v671, %v670
      %v683 = vpack.c.b16 %v673, %v672
      %v684 = vpack.c.b16 %v675, %v674
      %v685 = vpack.c.b16 %v677, %v676
      %694 = vmatpush.bf16.msra.mxu0 %v685
      %695 = vmatpush.bf16.msra.mxu0 %v684
      %696 = vmatpush.bf16.msra.mxu0 %v683
      %697 = vmatpush.bf16.msra.mxu0 %v682
      %698 = vmatpush.bf16.msra.mxu0 %v681
      %699 = vmatpush.bf16.msra.mxu0 %v680
      %700 = vmatpush.bf16.msra.mxu0 %v679
      %701 = vmatpush.bf16.msra.mxu0 %v678
      %702 = vmatmul.bf16.gmra.mxu0 %v630
      %v703 = vpop.f32.mrf.mxu0
      %v704 = vadd.f32 0.0, %v703
      %v705 = vpop.f32.mrf.mxu0
      %v706 = vadd.f32 0.0, %v705
      %707 = vmatmul.bf16.gmra.mxu0 %v631
      %v708 = vpop.f32.mrf.mxu0
      %v709 = vadd.f32 0.0, %v708
      %v710 = vpop.f32.mrf.mxu0
      %v711 = vadd.f32 0.0, %v710
      %712 = vmatmul.bf16.gmra.mxu0 %v632
      %v713 = vpop.f32.mrf.mxu0
      %v714 = vadd.f32 0.0, %v713
      %v715 = vpop.f32.mrf.mxu0
      %v716 = vadd.f32 0.0, %v715
      %717 = vmatmul.bf16.gmra.mxu0 %v633
      %v718 = vpop.f32.mrf.mxu0
      %v719 = vadd.f32 0.0, %v718
      %v720 = vpop.f32.mrf.mxu0
      %v721 = vadd.f32 0.0, %v720
      %722 = vmatmul.bf16.gmra.mxu0 %v634
      %v723 = vpop.f32.mrf.mxu0
      %v724 = vadd.f32 0.0, %v723
      %v725 = vpop.f32.mrf.mxu0
      %v726 = vadd.f32 0.0, %v725
      %727 = vmatmul.bf16.gmra.mxu0 %v635
      %v728 = vpop.f32.mrf.mxu0
      %v729 = vadd.f32 0.0, %v728
      %v730 = vpop.f32.mrf.mxu0
      %v731 = vadd.f32 0.0, %v730
      %732 = vmatmul.bf16.gmra.mxu0 %v636
      %v733 = vpop.f32.mrf.mxu0
      %v734 = vadd.f32 0.0, %v733
      %v735 = vpop.f32.mrf.mxu0
      %v736 = vadd.f32 0.0, %v735
      %737 = vmatmul.bf16.gmra.mxu0 %v637
      %v738 = vpop.f32.mrf.mxu0
      %v739 = vadd.f32 0.0, %v738
      %v740 = vpop.f32.mrf.mxu0
      %v741 = vadd.f32 0.0, %v740
      %742 = vdwg.mxu0
      %v743 = vld [vmem:[%s507] sm:$0xff]
      %v744 = vld [vmem:[%s507 + $0x8] sm:$0xff]
      %v745 = vld [vmem:[%s507 + $0x10] sm:$0xff]
      %v746 = vld [vmem:[%s507 + $0x18] sm:$0xff]
      %v747 = vld [vmem:[%s507 + $0x20] sm:$0xff]
      %v748 = vld [vmem:[%s507 + $0x28] sm:$0xff]
      %v749 = vld [vmem:[%s507 + $0x30] sm:$0xff]
      %v750 = vld [vmem:[%s507 + $0x38] sm:$0xff]
      %v751 = vld [vmem:[%s507 + $0x40] sm:$0xff]
      %v752 = vld [vmem:[%s507 + $0x48] sm:$0xff]
      %v753 = vld [vmem:[%s507 + $0x50] sm:$0xff]
      %v754 = vld [vmem:[%s507 + $0x58] sm:$0xff]
      %v755 = vld [vmem:[%s507 + $0x60] sm:$0xff]
      %v756 = vld [vmem:[%s507 + $0x68] sm:$0xff]
      %v757 = vld [vmem:[%s507 + $0x70] sm:$0xff]
      %v758 = vld [vmem:[%s507 + $0x78] sm:$0xff]
      %v759 = vunpack.c.l.bf16 %v743
      %v760 = vunpack.c.h.bf16 %v743
      %v761 = vunpack.c.l.bf16 %v744
      %v762 = vunpack.c.h.bf16 %v744
      %v763 = vunpack.c.l.bf16 %v745
      %v764 = vunpack.c.h.bf16 %v745
      %v765 = vunpack.c.l.bf16 %v746
      %v766 = vunpack.c.h.bf16 %v746
      %v767 = vunpack.c.l.bf16 %v747
      %v768 = vunpack.c.h.bf16 %v747
      %v769 = vunpack.c.l.bf16 %v748
      %v770 = vunpack.c.h.bf16 %v748
      %v771 = vunpack.c.l.bf16 %v749
      %v772 = vunpack.c.h.bf16 %v749
      %v773 = vunpack.c.l.bf16 %v750
      %v774 = vunpack.c.h.bf16 %v750
      %v775 = vunpack.c.l.bf16 %v751
      %v776 = vunpack.c.h.bf16 %v751
      %v777 = vunpack.c.l.bf16 %v752
      %v778 = vunpack.c.h.bf16 %v752
      %v779 = vunpack.c.l.bf16 %v753
      %v780 = vunpack.c.h.bf16 %v753
      %v781 = vunpack.c.l.bf16 %v754
      %v782 = vunpack.c.h.bf16 %v754
      %v783 = vunpack.c.l.bf16 %v755
      %v784 = vunpack.c.h.bf16 %v755
      %v785 = vunpack.c.l.bf16 %v756
      %v786 = vunpack.c.h.bf16 %v756
      %v787 = vunpack.c.l.bf16 %v757
      %v788 = vunpack.c.h.bf16 %v757
      %v789 = vunpack.c.l.bf16 %v758
      %v790 = vunpack.c.h.bf16 %v758
      %v791 = vld [vmem:[%s514] sm:$0xff]
      %v792 = vld [vmem:[%s514 + $0x8] sm:$0xff]
      %v793 = vld [vmem:[%s514 + $0x10] sm:$0xff]
      %v794 = vld [vmem:[%s514 + $0x18] sm:$0xff]
      %v795 = vld [vmem:[%s514 + $0x20] sm:$0xff]
      %v796 = vld [vmem:[%s514 + $0x28] sm:$0xff]
      %v797 = vld [vmem:[%s514 + $0x30] sm:$0xff]
      %v798 = vld [vmem:[%s514 + $0x38] sm:$0xff]
      %v799 = vld [vmem:[%s514 + $0x40] sm:$0xff]
      %v800 = vld [vmem:[%s514 + $0x48] sm:$0xff]
      %v801 = vld [vmem:[%s514 + $0x50] sm:$0xff]
      %v802 = vld [vmem:[%s514 + $0x58] sm:$0xff]
      %v803 = vld [vmem:[%s514 + $0x60] sm:$0xff]
      %v804 = vld [vmem:[%s514 + $0x68] sm:$0xff]
      %v805 = vld [vmem:[%s514 + $0x70] sm:$0xff]
      %v806 = vld [vmem:[%s514 + $0x78] sm:$0xff]
      %v807 = vunpack.c.l.bf16 %v791
      %v808 = vunpack.c.h.bf16 %v791
      %v809 = vunpack.c.l.bf16 %v792
      %v810 = vunpack.c.h.bf16 %v792
      %v811 = vunpack.c.l.bf16 %v793
      %v812 = vunpack.c.h.bf16 %v793
      %v813 = vunpack.c.l.bf16 %v794
      %v814 = vunpack.c.h.bf16 %v794
      %v815 = vunpack.c.l.bf16 %v795
      %v816 = vunpack.c.h.bf16 %v795
      %v817 = vunpack.c.l.bf16 %v796
      %v818 = vunpack.c.h.bf16 %v796
      %v819 = vunpack.c.l.bf16 %v797
      %v820 = vunpack.c.h.bf16 %v797
      %v821 = vunpack.c.l.bf16 %v798
      %v822 = vunpack.c.h.bf16 %v798
      %v823 = vunpack.c.l.bf16 %v799
      %v824 = vunpack.c.h.bf16 %v799
      %v825 = vunpack.c.l.bf16 %v800
      %v826 = vunpack.c.h.bf16 %v800
      %v827 = vunpack.c.l.bf16 %v801
      %v828 = vunpack.c.h.bf16 %v801
      %v829 = vunpack.c.l.bf16 %v802
      %v830 = vunpack.c.h.bf16 %v802
      %v831 = vunpack.c.l.bf16 %v803
      %v832 = vunpack.c.h.bf16 %v803
      %v833 = vunpack.c.l.bf16 %v804
      %v834 = vunpack.c.h.bf16 %v804
      %v835 = vunpack.c.l.bf16 %v805
      %v836 = vunpack.c.h.bf16 %v805
      %v837 = vunpack.c.l.bf16 %v806
      %v838 = vunpack.c.h.bf16 %v806
      %840 = vset.pattern.permute.xlu0 0
      %841 = vperm.xlu0 %840, %v704
      %v842 = vpop.permute.xlu0 %841
      %845 = vset.pattern.permute.xlu0 0
      %846 = vperm.xlu0 %845, %v706
      %v847 = vpop.permute.xlu0 %846
      %850 = vset.pattern.permute.xlu0 0
      %851 = vperm.xlu0 %850, %v709
      %v852 = vpop.permute.xlu0 %851
      %855 = vset.pattern.permute.xlu0 0
      %856 = vperm.xlu0 %855, %v711
      %v857 = vpop.permute.xlu0 %856
      %860 = vset.pattern.permute.xlu0 0
      %861 = vperm.xlu0 %860, %v714
      %v862 = vpop.permute.xlu0 %861
      %865 = vset.pattern.permute.xlu0 0
      %866 = vperm.xlu0 %865, %v716
      %v867 = vpop.permute.xlu0 %866
      %870 = vset.pattern.permute.xlu0 0
      %871 = vperm.xlu0 %870, %v719
      %v872 = vpop.permute.xlu0 %871
      %875 = vset.pattern.permute.xlu0 0
      %876 = vperm.xlu0 %875, %v721
      %v877 = vpop.permute.xlu0 %876
      %880 = vset.pattern.permute.xlu0 0
      %881 = vperm.xlu0 %880, %v724
      %v882 = vpop.permute.xlu0 %881
      %885 = vset.pattern.permute.xlu0 0
      %886 = vperm.xlu0 %885, %v726
      %v887 = vpop.permute.xlu0 %886
      %890 = vset.pattern.permute.xlu0 0
      %891 = vperm.xlu0 %890, %v729
      %v892 = vpop.permute.xlu0 %891
      %895 = vset.pattern.permute.xlu0 0
      %896 = vperm.xlu0 %895, %v731
      %v897 = vpop.permute.xlu0 %896
      %900 = vset.pattern.permute.xlu0 0
      %901 = vperm.xlu0 %900, %v734
      %v902 = vpop.permute.xlu0 %901
      %905 = vset.pattern.permute.xlu0 0
      %906 = vperm.xlu0 %905, %v736
      %v907 = vpop.permute.xlu0 %906
      %910 = vset.pattern.permute.xlu0 0
      %911 = vperm.xlu0 %910, %v739
      %v912 = vpop.permute.xlu0 %911
      %915 = vset.pattern.permute.xlu0 0
      %916 = vperm.xlu0 %915, %v741
      %v917 = vpop.permute.xlu0 %916
      %v919 = vmul.f32 %v842, %v759
      %v920 = vmul.f32 %v847, %v761
      %v921 = vmul.f32 %v852, %v763
      %v922 = vmul.f32 %v857, %v765
      %v923 = vmul.f32 %v862, %v767
      %v924 = vmul.f32 %v867, %v769
      %v925 = vmul.f32 %v872, %v771
      %v926 = vmul.f32 %v877, %v773
      %v927 = vmul.f32 %v882, %v775
      %v928 = vmul.f32 %v887, %v777
      %v929 = vmul.f32 %v892, %v779
      %v930 = vmul.f32 %v897, %v781
      %v931 = vmul.f32 %v902, %v783
      %v932 = vmul.f32 %v907, %v785
      %v933 = vmul.f32 %v912, %v787
      %v934 = vmul.f32 %v917, %v789
      %v935 = vadd.f32 %v919, 0.0
      %v936 = vadd.f32 %v920, 0.0
      %v937 = vadd.f32 %v921, 0.0
      %v938 = vadd.f32 %v922, 0.0
      %v939 = vadd.f32 %v923, 0.0
      %v940 = vadd.f32 %v924, 0.0
      %v941 = vadd.f32 %v925, 0.0
      %v942 = vadd.f32 %v926, 0.0
      %v943 = vadd.f32 %v927, 0.0
      %v944 = vadd.f32 %v928, 0.0
      %v945 = vadd.f32 %v929, 0.0
      %v946 = vadd.f32 %v930, 0.0
      %v947 = vadd.f32 %v931, 0.0
      %v948 = vadd.f32 %v932, 0.0
      %v949 = vadd.f32 %v933, 0.0
      %v950 = vadd.f32 %v934, 0.0
      %951 = vset.pattern.permute.xlu0 2
      %952 = vperm.xlu0 %951, %v704
      %v953 = vpop.permute.xlu0 %952
      %955 = vset.pattern.permute.xlu0 2
      %956 = vperm.xlu0 %955, %v706
      %v957 = vpop.permute.xlu0 %956
      %959 = vset.pattern.permute.xlu0 2
      %960 = vperm.xlu0 %959, %v709
      %v961 = vpop.permute.xlu0 %960
      %963 = vset.pattern.permute.xlu0 2
      %964 = vperm.xlu0 %963, %v711
      %v965 = vpop.permute.xlu0 %964
      %967 = vset.pattern.permute.xlu0 2
      %968 = vperm.xlu0 %967, %v714
      %v969 = vpop.permute.xlu0 %968
      %971 = vset.pattern.permute.xlu0 2
      %972 = vperm.xlu0 %971, %v716
      %v973 = vpop.permute.xlu0 %972
      %975 = vset.pattern.permute.xlu0 2
      %976 = vperm.xlu0 %975, %v719
      %v977 = vpop.permute.xlu0 %976
      %979 = vset.pattern.permute.xlu0 2
      %980 = vperm.xlu0 %979, %v721
      %v981 = vpop.permute.xlu0 %980
      %983 = vset.pattern.permute.xlu0 2
      %984 = vperm.xlu0 %983, %v724
      %v985 = vpop.permute.xlu0 %984
      %987 = vset.pattern.permute.xlu0 2
      %988 = vperm.xlu0 %987, %v726
      %v989 = vpop.permute.xlu0 %988
      %991 = vset.pattern.permute.xlu0 2
      %992 = vperm.xlu0 %991, %v729
      %v993 = vpop.permute.xlu0 %992
      %995 = vset.pattern.permute.xlu0 2
      %996 = vperm.xlu0 %995, %v731
      %v997 = vpop.permute.xlu0 %996
      %999 = vset.pattern.permute.xlu0 2
      %1000 = vperm.xlu0 %999, %v734
      %v1001 = vpop.permute.xlu0 %1000
      %1003 = vset.pattern.permute.xlu0 2
      %1004 = vperm.xlu0 %1003, %v736
      %v1005 = vpop.permute.xlu0 %1004
      %1007 = vset.pattern.permute.xlu0 2
      %1008 = vperm.xlu0 %1007, %v739
      %v1009 = vpop.permute.xlu0 %1008
      %1011 = vset.pattern.permute.xlu0 2
      %1012 = vperm.xlu0 %1011, %v741
      %v1013 = vpop.permute.xlu0 %1012
      %v1015 = vmul.f32 %v953, %v807
      %v1016 = vmul.f32 %v957, %v809
      %v1017 = vmul.f32 %v961, %v811
      %v1018 = vmul.f32 %v965, %v813
      %v1019 = vmul.f32 %v969, %v815
      %v1020 = vmul.f32 %v973, %v817
      %v1021 = vmul.f32 %v977, %v819
      %v1022 = vmul.f32 %v981, %v821
      %v1023 = vmul.f32 %v985, %v823
      %v1024 = vmul.f32 %v989, %v825
      %v1025 = vmul.f32 %v993, %v827
      %v1026 = vmul.f32 %v997, %v829
      %v1027 = vmul.f32 %v1001, %v831
      %v1028 = vmul.f32 %v1005, %v833
      %v1029 = vmul.f32 %v1009, %v835
      %v1030 = vmul.f32 %v1013, %v837
      %v1031 = vadd.f32 %v1015, 0.0
      %v1032 = vadd.f32 %v1016, 0.0
      %v1033 = vadd.f32 %v1017, 0.0
      %v1034 = vadd.f32 %v1018, 0.0
      %v1035 = vadd.f32 %v1019, 0.0
      %v1036 = vadd.f32 %v1020, 0.0
      %v1037 = vadd.f32 %v1021, 0.0
      %v1038 = vadd.f32 %v1022, 0.0
      %v1039 = vadd.f32 %v1023, 0.0
      %v1040 = vadd.f32 %v1024, 0.0
      %v1041 = vadd.f32 %v1025, 0.0
      %v1042 = vadd.f32 %v1026, 0.0
      %v1043 = vadd.f32 %v1027, 0.0
      %v1044 = vadd.f32 %v1028, 0.0
      %v1045 = vadd.f32 %v1029, 0.0
      %v1046 = vadd.f32 %v1030, 0.0
      %1047 = vset.pattern.permute.xlu0 1
      %1048 = vperm.xlu0 %1047, %v704
      %v1049 = vpop.permute.xlu0 %1048
      %1051 = vset.pattern.permute.xlu0 1
      %1052 = vperm.xlu0 %1051, %v706
      %v1053 = vpop.permute.xlu0 %1052
      %1055 = vset.pattern.permute.xlu0 1
      %1056 = vperm.xlu0 %1055, %v709
      %v1057 = vpop.permute.xlu0 %1056
      %1059 = vset.pattern.permute.xlu0 1
      %1060 = vperm.xlu0 %1059, %v711
      %v1061 = vpop.permute.xlu0 %1060
      %1063 = vset.pattern.permute.xlu0 1
      %1064 = vperm.xlu0 %1063, %v714
      %v1065 = vpop.permute.xlu0 %1064
      %1067 = vset.pattern.permute.xlu0 1
      %1068 = vperm.xlu0 %1067, %v716
      %v1069 = vpop.permute.xlu0 %1068
      %1071 = vset.pattern.permute.xlu0 1
      %1072 = vperm.xlu0 %1071, %v719
      %v1073 = vpop.permute.xlu0 %1072
      %1075 = vset.pattern.permute.xlu0 1
      %1076 = vperm.xlu0 %1075, %v721
      %v1077 = vpop.permute.xlu0 %1076
      %1079 = vset.pattern.permute.xlu0 1
      %1080 = vperm.xlu0 %1079, %v724
      %v1081 = vpop.permute.xlu0 %1080
      %1083 = vset.pattern.permute.xlu0 1
      %1084 = vperm.xlu0 %1083, %v726
      %v1085 = vpop.permute.xlu0 %1084
      %1087 = vset.pattern.permute.xlu0 1
      %1088 = vperm.xlu0 %1087, %v729
      %v1089 = vpop.permute.xlu0 %1088
      %1091 = vset.pattern.permute.xlu0 1
      %1092 = vperm.xlu0 %1091, %v731
      %v1093 = vpop.permute.xlu0 %1092
      %1095 = vset.pattern.permute.xlu0 1
      %1096 = vperm.xlu0 %1095, %v734
      %v1097 = vpop.permute.xlu0 %1096
      %1099 = vset.pattern.permute.xlu0 1
      %1100 = vperm.xlu0 %1099, %v736
      %v1101 = vpop.permute.xlu0 %1100
      %1103 = vset.pattern.permute.xlu0 1
      %1104 = vperm.xlu0 %1103, %v739
      %v1105 = vpop.permute.xlu0 %1104
      %1107 = vset.pattern.permute.xlu0 1
      %1108 = vperm.xlu0 %1107, %v741
      %v1109 = vpop.permute.xlu0 %1108
      %v1111 = vmul.f32 %v1049, %v760
      %v1112 = vmul.f32 %v1053, %v762
      %v1113 = vmul.f32 %v1057, %v764
      %v1114 = vmul.f32 %v1061, %v766
      %v1115 = vmul.f32 %v1065, %v768
      %v1116 = vmul.f32 %v1069, %v770
      %v1117 = vmul.f32 %v1073, %v772
      %v1118 = vmul.f32 %v1077, %v774
      %v1119 = vmul.f32 %v1081, %v776
      %v1120 = vmul.f32 %v1085, %v778
      %v1121 = vmul.f32 %v1089, %v780
      %v1122 = vmul.f32 %v1093, %v782
      %v1123 = vmul.f32 %v1097, %v784
      %v1124 = vmul.f32 %v1101, %v786
      %v1125 = vmul.f32 %v1105, %v788
      %v1126 = vmul.f32 %v1109, %v790
      %v1127 = vadd.f32 %v935, %v1111
      %v1128 = vadd.f32 %v936, %v1112
      %v1129 = vadd.f32 %v937, %v1113
      %v1130 = vadd.f32 %v938, %v1114
      %v1131 = vadd.f32 %v939, %v1115
      %v1132 = vadd.f32 %v940, %v1116
      %v1133 = vadd.f32 %v941, %v1117
      %v1134 = vadd.f32 %v942, %v1118
      %v1135 = vadd.f32 %v943, %v1119
      %v1136 = vadd.f32 %v944, %v1120
      %v1137 = vadd.f32 %v945, %v1121
      %v1138 = vadd.f32 %v946, %v1122
      %v1139 = vadd.f32 %v947, %v1123
      %v1140 = vadd.f32 %v948, %v1124
      %v1141 = vadd.f32 %v949, %v1125
      %v1142 = vadd.f32 %v950, %v1126
      %1143 = vset.pattern.permute.xlu0 3
      %1144 = vperm.xlu0 %1143, %v704
      %v1145 = vpop.permute.xlu0 %1144
      %1147 = vset.pattern.permute.xlu0 3
      %1148 = vperm.xlu0 %1147, %v706
      %v1149 = vpop.permute.xlu0 %1148
      %1151 = vset.pattern.permute.xlu0 3
      %1152 = vperm.xlu0 %1151, %v709
      %v1153 = vpop.permute.xlu0 %1152
      %1155 = vset.pattern.permute.xlu0 3
      %1156 = vperm.xlu0 %1155, %v711
      %v1157 = vpop.permute.xlu0 %1156
      %1159 = vset.pattern.permute.xlu0 3
      %1160 = vperm.xlu0 %1159, %v714
      %v1161 = vpop.permute.xlu0 %1160
      %1163 = vset.pattern.permute.xlu0 3
      %1164 = vperm.xlu0 %1163, %v716
      %v1165 = vpop.permute.xlu0 %1164
      %1167 = vset.pattern.permute.xlu0 3
      %1168 = vperm.xlu0 %1167, %v719
      %v1169 = vpop.permute.xlu0 %1168
      %1171 = vset.pattern.permute.xlu0 3
      %1172 = vperm.xlu0 %1171, %v721
      %v1173 = vpop.permute.xlu0 %1172
      %1175 = vset.pattern.permute.xlu0 3
      %1176 = vperm.xlu0 %1175, %v724
      %v1177 = vpop.permute.xlu0 %1176
      %1179 = vset.pattern.permute.xlu0 3
      %1180 = vperm.xlu0 %1179, %v726
      %v1181 = vpop.permute.xlu0 %1180
      %1183 = vset.pattern.permute.xlu0 3
      %1184 = vperm.xlu0 %1183, %v729
      %v1185 = vpop.permute.xlu0 %1184
      %1187 = vset.pattern.permute.xlu0 3
      %1188 = vperm.xlu0 %1187, %v731
      %v1189 = vpop.permute.xlu0 %1188
      %1191 = vset.pattern.permute.xlu0 3
      %1192 = vperm.xlu0 %1191, %v734
      %v1193 = vpop.permute.xlu0 %1192
      %1195 = vset.pattern.permute.xlu0 3
      %1196 = vperm.xlu0 %1195, %v736
      %v1197 = vpop.permute.xlu0 %1196
      %1199 = vset.pattern.permute.xlu0 3
      %1200 = vperm.xlu0 %1199, %v739
      %v1201 = vpop.permute.xlu0 %1200
      %1203 = vset.pattern.permute.xlu0 3
      %1204 = vperm.xlu0 %1203, %v741
      %v1205 = vpop.permute.xlu0 %1204
      %v1207 = vmul.f32 %v1145, %v808
      %v1208 = vmul.f32 %v1149, %v810
      %v1209 = vmul.f32 %v1153, %v812
      %v1210 = vmul.f32 %v1157, %v814
      %v1211 = vmul.f32 %v1161, %v816
      %v1212 = vmul.f32 %v1165, %v818
      %v1213 = vmul.f32 %v1169, %v820
      %v1214 = vmul.f32 %v1173, %v822
      %v1215 = vmul.f32 %v1177, %v824
      %v1216 = vmul.f32 %v1181, %v826
      %v1217 = vmul.f32 %v1185, %v828
      %v1218 = vmul.f32 %v1189, %v830
      %v1219 = vmul.f32 %v1193, %v832
      %v1220 = vmul.f32 %v1197, %v834
      %v1221 = vmul.f32 %v1201, %v836
      %v1222 = vmul.f32 %v1205, %v838
      %v1223 = vadd.f32 %v1031, %v1207
      %v1224 = vadd.f32 %v1032, %v1208
      %v1225 = vadd.f32 %v1033, %v1209
      %v1226 = vadd.f32 %v1034, %v1210
      %v1227 = vadd.f32 %v1035, %v1211
      %v1228 = vadd.f32 %v1036, %v1212
      %v1229 = vadd.f32 %v1037, %v1213
      %v1230 = vadd.f32 %v1038, %v1214
      %v1231 = vadd.f32 %v1039, %v1215
      %v1232 = vadd.f32 %v1040, %v1216
      %v1233 = vadd.f32 %v1041, %v1217
      %v1234 = vadd.f32 %v1042, %v1218
      %v1235 = vadd.f32 %v1043, %v1219
      %v1236 = vadd.f32 %v1044, %v1220
      %v1237 = vadd.f32 %v1045, %v1221
      %v1238 = vadd.f32 %v1046, %v1222
      %s1239 = smul.u32 %s26, 64
      %v1240 = vlaneseq
      %v1241 = vshrl.u32 %v1240, 7
      %v1242 = vadd.s32 %v1241, 8
      %v1243 = vadd.s32 %v1241, 16
      %v1244 = vadd.s32 %v1241, 24
      %v1245 = vadd.s32 %v1241, 32
      %v1246 = vadd.s32 %v1241, 40
      %v1247 = vadd.s32 %v1241, 48
      %v1248 = vadd.s32 %v1241, 56
      %v1249 = vstv %s1239
      %v1250 = vadd.s32 %v1249, %v1241
      %v1251 = vadd.s32 %v1249, %v1242
      %v1252 = vadd.s32 %v1249, %v1243
      %v1253 = vadd.s32 %v1249, %v1244
      %v1254 = vadd.s32 %v1249, %v1245
      %v1255 = vadd.s32 %v1249, %v1246
      %v1256 = vadd.s32 %v1249, %v1247
      %v1257 = vadd.s32 %v1249, %v1248
      %v1258 = vld [vmem:[%s518] sm:$0x1]
      %v1259 = vperm.slane %v1258, 0
      %vm1260 = vcmp.eq.s32.totalorder %v1259, %v1250
      %vm1261 = vcmp.eq.s32.totalorder %v1259, %v1251
      %vm1262 = vcmp.eq.s32.totalorder %v1259, %v1252
      %vm1263 = vcmp.eq.s32.totalorder %v1259, %v1253
      %vm1264 = vcmp.eq.s32.totalorder %v1259, %v1254
      %vm1265 = vcmp.eq.s32.totalorder %v1259, %v1255
      %vm1266 = vcmp.eq.s32.totalorder %v1259, %v1256
      %vm1267 = vcmp.eq.s32.totalorder %v1259, %v1257
      %v1268 = vsel %vm1260, 1.0, 0.0
      %v1269 = vsel %vm1261, 1.0, 0.0
      %v1270 = vsel %vm1262, 1.0, 0.0
      %v1271 = vsel %vm1263, 1.0, 0.0
      %v1272 = vsel %vm1264, 1.0, 0.0
      %v1273 = vsel %vm1265, 1.0, 0.0
      %v1274 = vsel %vm1266, 1.0, 0.0
      %v1275 = vsel %vm1267, 1.0, 0.0
      %v1276 = vpack.c.bf16 %v1269, %v1268
      %v1277 = vpack.c.bf16 %v1271, %v1270
      %v1278 = vpack.c.bf16 %v1273, %v1272
      %v1279 = vpack.c.bf16 %v1275, %v1274
      %v1280 = vld [vmem:[%s521] sm:$0x1]
      %v1281 = vperm.slane %v1280, 0
      %vm1282 = vcmp.eq.s32.totalorder %v1281, %v1250
      %vm1283 = vcmp.eq.s32.totalorder %v1281, %v1251
      %vm1284 = vcmp.eq.s32.totalorder %v1281, %v1252
      %vm1285 = vcmp.eq.s32.totalorder %v1281, %v1253
      %vm1286 = vcmp.eq.s32.totalorder %v1281, %v1254
      %vm1287 = vcmp.eq.s32.totalorder %v1281, %v1255
      %vm1288 = vcmp.eq.s32.totalorder %v1281, %v1256
      %vm1289 = vcmp.eq.s32.totalorder %v1281, %v1257
      %v1290 = vsel %vm1282, 1.0, 0.0
      %v1291 = vsel %vm1283, 1.0, 0.0
      %v1292 = vsel %vm1284, 1.0, 0.0
      %v1293 = vsel %vm1285, 1.0, 0.0
      %v1294 = vsel %vm1286, 1.0, 0.0
      %v1295 = vsel %vm1287, 1.0, 0.0
      %v1296 = vsel %vm1288, 1.0, 0.0
      %v1297 = vsel %vm1289, 1.0, 0.0
      %v1298 = vpack.c.bf16 %v1291, %v1290
      %v1299 = vpack.c.bf16 %v1293, %v1292
      %v1300 = vpack.c.bf16 %v1295, %v1294
      %v1301 = vpack.c.bf16 %v1297, %v1296
      %v1302 = vld [vmem:[#allocation2] sm:$0xff]
      %v1303 = vld [vmem:[#allocation2 + $0x8] sm:$0xff]
      %v1304 = vld [vmem:[#allocation2 + $0x10] sm:$0xff]
      %v1305 = vld [vmem:[#allocation2 + $0x18] sm:$0xff]
      %v1306 = vld [vmem:[#allocation2 + $0x20] sm:$0xff]
      %v1307 = vld [vmem:[#allocation2 + $0x28] sm:$0xff]
      %v1308 = vld [vmem:[#allocation2 + $0x30] sm:$0xff]
      %v1309 = vld [vmem:[#allocation2 + $0x38] sm:$0xff]
      %v1310 = vpack.c.bf16 %v1128, %v1127
      %v1311 = vpack.c.bf16 %v1130, %v1129
      %v1312 = vpack.c.bf16 %v1132, %v1131
      %v1313 = vpack.c.bf16 %v1134, %v1133
      %v1314 = vpack.c.bf16 %v1136, %v1135
      %v1315 = vpack.c.bf16 %v1138, %v1137
      %v1316 = vpack.c.bf16 %v1140, %v1139
      %v1317 = vpack.c.bf16 %v1142, %v1141
      %1318 = vmatpush.bf16.msra.mxu0 %v1317
      %1319 = vmatpush.bf16.msra.mxu0 %v1316
      %1320 = vmatpush.bf16.msra.mxu0 %v1315
      %1321 = vmatpush.bf16.msra.mxu0 %v1314
      %1322 = vmatpush.bf16.msra.mxu0 %v1313
      %1323 = vmatpush.bf16.msra.mxu0 %v1312
      %1324 = vmatpush.bf16.msra.mxu0 %v1311
      %1325 = vmatpush.bf16.msra.mxu0 %v1310
      %1326 = vmatmul.bf16.gmra.mxu0 %v1276
      %v1327 = vpop.f32.mrf.mxu0
      %v1328 = vadd.f32 0.0, %v1327
      %v1329 = vpop.f32.mrf.mxu0
      %v1330 = vadd.f32 0.0, %v1329
      %1331 = vmatmul.bf16.gmra.mxu0 %v1277
      %v1332 = vpop.f32.mrf.mxu0
      %v1333 = vadd.f32 0.0, %v1332
      %v1334 = vpop.f32.mrf.mxu0
      %v1335 = vadd.f32 0.0, %v1334
      %1336 = vmatmul.bf16.gmra.mxu0 %v1278
      %v1337 = vpop.f32.mrf.mxu0
      %v1338 = vadd.f32 0.0, %v1337
      %v1339 = vpop.f32.mrf.mxu0
      %v1340 = vadd.f32 0.0, %v1339
      %1341 = vmatmul.bf16.gmra.mxu0 %v1279
      %v1342 = vpop.f32.mrf.mxu0
      %v1343 = vadd.f32 0.0, %v1342
      %v1344 = vpop.f32.mrf.mxu0
      %v1345 = vadd.f32 0.0, %v1344
      %1346 = vdwg.mxu0
      %v1347 = vadd.f32 %v1302, %v1328
      %v1348 = vadd.f32 %v1303, %v1330
      %v1349 = vadd.f32 %v1304, %v1333
      %v1350 = vadd.f32 %v1305, %v1335
      %v1351 = vadd.f32 %v1306, %v1338
      %v1352 = vadd.f32 %v1307, %v1340
      %v1353 = vadd.f32 %v1308, %v1343
      %v1354 = vadd.f32 %v1309, %v1345
      %1355 = vst [vmem:[#allocation2] sm:$0xff] %v1347
      %1356 = vst [vmem:[#allocation2 + $0x8] sm:$0xff] %v1348
      %1357 = vst [vmem:[#allocation2 + $0x10] sm:$0xff] %v1349
      %1358 = vst [vmem:[#allocation2 + $0x18] sm:$0xff] %v1350
      %1359 = vst [vmem:[#allocation2 + $0x20] sm:$0xff] %v1351
      %1360 = vst [vmem:[#allocation2 + $0x28] sm:$0xff] %v1352
      %1361 = vst [vmem:[#allocation2 + $0x30] sm:$0xff] %v1353
      %1362 = vst [vmem:[#allocation2 + $0x38] sm:$0xff] %v1354
      %v1363 = vld [vmem:[#allocation3] sm:$0xff]
      %v1364 = vld [vmem:[#allocation3 + $0x8] sm:$0xff]
      %v1365 = vld [vmem:[#allocation3 + $0x10] sm:$0xff]
      %v1366 = vld [vmem:[#allocation3 + $0x18] sm:$0xff]
      %v1367 = vld [vmem:[#allocation3 + $0x20] sm:$0xff]
      %v1368 = vld [vmem:[#allocation3 + $0x28] sm:$0xff]
      %v1369 = vld [vmem:[#allocation3 + $0x30] sm:$0xff]
      %v1370 = vld [vmem:[#allocation3 + $0x38] sm:$0xff]
      %v1371 = vpack.c.bf16 %v1224, %v1223
      %v1372 = vpack.c.bf16 %v1226, %v1225
      %v1373 = vpack.c.bf16 %v1228, %v1227
      %v1374 = vpack.c.bf16 %v1230, %v1229
      %v1375 = vpack.c.bf16 %v1232, %v1231
      %v1376 = vpack.c.bf16 %v1234, %v1233
      %v1377 = vpack.c.bf16 %v1236, %v1235
      %v1378 = vpack.c.bf16 %v1238, %v1237
      %1379 = vmatpush.bf16.msra.mxu0 %v1378
      %1380 = vmatpush.bf16.msra.mxu0 %v1377
      %1381 = vmatpush.bf16.msra.mxu0 %v1376
      %1382 = vmatpush.bf16.msra.mxu0 %v1375
      %1383 = vmatpush.bf16.msra.mxu0 %v1374
      %1384 = vmatpush.bf16.msra.mxu0 %v1373
      %1385 = vmatpush.bf16.msra.mxu0 %v1372
      %1386 = vmatpush.bf16.msra.mxu0 %v1371
      %1387 = vmatmul.bf16.gmra.mxu0 %v1298
      %v1388 = vpop.f32.mrf.mxu0
      %v1389 = vadd.f32 0.0, %v1388
      %v1390 = vpop.f32.mrf.mxu0
      %v1391 = vadd.f32 0.0, %v1390
      %1392 = vmatmul.bf16.gmra.mxu0 %v1299
      %v1393 = vpop.f32.mrf.mxu0
      %v1394 = vadd.f32 0.0, %v1393
      %v1395 = vpop.f32.mrf.mxu0
      %v1396 = vadd.f32 0.0, %v1395
      %1397 = vmatmul.bf16.gmra.mxu0 %v1300
      %v1398 = vpop.f32.mrf.mxu0
      %v1399 = vadd.f32 0.0, %v1398
      %v1400 = vpop.f32.mrf.mxu0
      %v1401 = vadd.f32 0.0, %v1400
      %1402 = vmatmul.bf16.gmra.mxu0 %v1301
      %v1403 = vpop.f32.mrf.mxu0
      %v1404 = vadd.f32 0.0, %v1403
      %v1405 = vpop.f32.mrf.mxu0
      %v1406 = vadd.f32 0.0, %v1405
      %1407 = vdwg.mxu0
      %v1408 = vadd.f32 %v1363, %v1389
      %v1409 = vadd.f32 %v1364, %v1391
      %v1410 = vadd.f32 %v1365, %v1394
      %v1411 = vadd.f32 %v1366, %v1396
      %v1412 = vadd.f32 %v1367, %v1399
      %v1413 = vadd.f32 %v1368, %v1401
      %v1414 = vadd.f32 %v1369, %v1404
      %v1415 = vadd.f32 %v1370, %v1406
      %1416 = vst [vmem:[#allocation3] sm:$0xff] %v1408
      %1417 = vst [vmem:[#allocation3 + $0x8] sm:$0xff] %v1409
      %1418 = vst [vmem:[#allocation3 + $0x10] sm:$0xff] %v1410
      %1419 = vst [vmem:[#allocation3 + $0x18] sm:$0xff] %v1411
      %1420 = vst [vmem:[#allocation3 + $0x20] sm:$0xff] %v1412
      %1421 = vst [vmem:[#allocation3 + $0x28] sm:$0xff] %v1413
      %1422 = vst [vmem:[#allocation3 + $0x30] sm:$0xff] %v1414
      %1423 = vst [vmem:[#allocation3 + $0x38] sm:$0xff] %v1415
      %p1424 = scmp.eq.s32.totalorder %s27, 1
      // Predicated region
      $region69: #{rgcn_forward.5} parent=63 // pred_check
        %p1425 = pneg %p1424
      $region70: #{rgcn_forward.5} parent=63 // pred_check_branch
        %1427 = sbr.rel (%p1425) target = $region72
      $region71: #{rgcn_forward.5} parent=63 // pred_region
        %v1428 = vld [vmem:[%s526] sm:$0xf]
        %v1429 = vld [vmem:[%s526 + $0x4] sm:$0xf]
        %v1430 = vld [vmem:[%s526 + $0x8] sm:$0xf]
        %v1431 = vld [vmem:[%s526 + $0xc] sm:$0xf]
        %v1432 = vld [vmem:[%s526 + $0x10] sm:$0xf]
        %v1433 = vld [vmem:[%s526 + $0x14] sm:$0xf]
        %v1434 = vld [vmem:[%s526 + $0x18] sm:$0xf]
        %v1435 = vld [vmem:[%s526 + $0x1c] sm:$0xf]
        %v1436 = vld [vmem:[%s7] sm:$0xf]
        %v1437 = vld [vmem:[%s7 + $0x4] sm:$0xf]
        %v1438 = vld [vmem:[%s7 + $0x8] sm:$0xf]
        %v1439 = vld [vmem:[%s7 + $0xc] sm:$0xf]
        %v1440 = vld [vmem:[%s7 + $0x10] sm:$0xf]
        %v1441 = vld [vmem:[%s7 + $0x14] sm:$0xf]
        %v1442 = vld [vmem:[%s7 + $0x18] sm:$0xf]
        %v1443 = vld [vmem:[%s7 + $0x1c] sm:$0xf]
        %v1444 = vld [vmem:[%s7 + $0x20] sm:$0xf]
        %v1445 = vld [vmem:[%s7 + $0x24] sm:$0xf]
        %v1446 = vld [vmem:[%s7 + $0x28] sm:$0xf]
        %v1447 = vld [vmem:[%s7 + $0x2c] sm:$0xf]
        %v1448 = vld [vmem:[%s7 + $0x30] sm:$0xf]
        %v1449 = vld [vmem:[%s7 + $0x34] sm:$0xf]
        %v1450 = vld [vmem:[%s7 + $0x38] sm:$0xf]
        %v1451 = vld [vmem:[%s7 + $0x3c] sm:$0xf]
        %v1452 = vld [vmem:[%s8] sm:$0x1]
        %v1454 = vperm.slane %v1452, 0
        %v1464 = vunpack.c.l.b16 %v1428
        %v1465 = vunpack.c.l.b16 %v1429
        %v1466 = vunpack.c.l.b16 %v1430
        %v1467 = vunpack.c.l.b16 %v1431
        %v1468 = vunpack.c.l.b16 %v1432
        %v1469 = vunpack.c.l.b16 %v1433
        %v1470 = vunpack.c.l.b16 %v1434
        %v1471 = vunpack.c.l.b16 %v1435
        %v1472 = vpack.c.b16 %v1465, %v1464
        %v1473 = vpack.c.b16 %v1467, %v1466
        %v1474 = vpack.c.b16 %v1469, %v1468
        %v1475 = vpack.c.b16 %v1471, %v1470
        %v1496 = vunpack.c.l.b16 %v1436
        %v1497 = vunpack.c.l.b16 %v1437
        %v1498 = vunpack.c.l.b16 %v1438
        %v1499 = vunpack.c.l.b16 %v1439
        %v1500 = vunpack.c.l.b16 %v1440
        %v1501 = vunpack.c.l.b16 %v1441
        %v1502 = vunpack.c.l.b16 %v1442
        %v1503 = vunpack.c.l.b16 %v1443
        %v1504 = vunpack.c.l.b16 %v1444
        %v1505 = vunpack.c.l.b16 %v1445
        %v1506 = vunpack.c.l.b16 %v1446
        %v1507 = vunpack.c.l.b16 %v1447
        %v1508 = vunpack.c.l.b16 %v1448
        %v1509 = vunpack.c.l.b16 %v1449
        %v1510 = vunpack.c.l.b16 %v1450
        %v1511 = vunpack.c.l.b16 %v1451
        %v1512 = vpack.c.b16 %v1497, %v1496
        %v1513 = vpack.c.b16 %v1499, %v1498
        %v1514 = vpack.c.b16 %v1501, %v1500
        %v1515 = vpack.c.b16 %v1503, %v1502
        %v1516 = vpack.c.b16 %v1505, %v1504
        %v1517 = vpack.c.b16 %v1507, %v1506
        %v1518 = vpack.c.b16 %v1509, %v1508
        %v1519 = vpack.c.b16 %v1511, %v1510
        %1528 = vmatpush.bf16.msra.mxu0 %v1519
        %1529 = vmatpush.bf16.msra.mxu0 %v1518
        %1530 = vmatpush.bf16.msra.mxu0 %v1517
        %1531 = vmatpush.bf16.msra.mxu0 %v1516
        %1532 = vmatpush.bf16.msra.mxu0 %v1515
        %1533 = vmatpush.bf16.msra.mxu0 %v1514
        %1534 = vmatpush.bf16.msra.mxu0 %v1513
        %1535 = vmatpush.bf16.msra.mxu0 %v1512
        %1536 = vmatmul.bf16.gmra.mxu0 %v1472
        %v1537 = vpop.f32.mrf.mxu0
        %v1538 = vadd.f32 %v1454, %v1537
        %v1539 = vpop.f32.mrf.mxu0
        %v1540 = vadd.f32 %v1454, %v1539
        %1541 = vmatmul.bf16.gmra.mxu0 %v1473
        %v1542 = vpop.f32.mrf.mxu0
        %v1543 = vadd.f32 %v1454, %v1542
        %v1544 = vpop.f32.mrf.mxu0
        %v1545 = vadd.f32 %v1454, %v1544
        %1546 = vmatmul.bf16.gmra.mxu0 %v1474
        %v1547 = vpop.f32.mrf.mxu0
        %v1548 = vadd.f32 %v1454, %v1547
        %v1549 = vpop.f32.mrf.mxu0
        %v1550 = vadd.f32 %v1454, %v1549
        %1551 = vmatmul.bf16.gmra.mxu0 %v1475
        %v1552 = vpop.f32.mrf.mxu0
        %v1553 = vadd.f32 %v1454, %v1552
        %v1554 = vpop.f32.mrf.mxu0
        %v1555 = vadd.f32 %v1454, %v1554
        %1556 = vdwg.mxu0
        %v1557 = vld [vmem:[#allocation2] sm:$0xff]
        %v1558 = vld [vmem:[#allocation2 + $0x8] sm:$0xff]
        %v1559 = vld [vmem:[#allocation2 + $0x10] sm:$0xff]
        %v1560 = vld [vmem:[#allocation2 + $0x18] sm:$0xff]
        %v1561 = vld [vmem:[#allocation2 + $0x20] sm:$0xff]
        %v1562 = vld [vmem:[#allocation2 + $0x28] sm:$0xff]
        %v1563 = vld [vmem:[#allocation2 + $0x30] sm:$0xff]
        %v1564 = vld [vmem:[#allocation2 + $0x38] sm:$0xff]
        %v1565 = vld [vmem:[%s532] sm:$0xff]
        %v1566 = vld [vmem:[%s532 + $0x8] sm:$0xff]
        %v1567 = vld [vmem:[%s532 + $0x10] sm:$0xff]
        %v1568 = vld [vmem:[%s532 + $0x18] sm:$0xff]
        %v1569 = vld [vmem:[%s532 + $0x20] sm:$0xff]
        %v1570 = vld [vmem:[%s532 + $0x28] sm:$0xff]
        %v1571 = vld [vmem:[%s532 + $0x30] sm:$0xff]
        %v1572 = vld [vmem:[%s532 + $0x38] sm:$0xff]
        %1574 = vset.pattern.permute.xlu0 0
        %1575 = vperm.xlu0 %1574, %v1565
        %v1576 = vpop.permute.xlu0 %1575
        %1579 = vset.pattern.permute.xlu0 0
        %1580 = vperm.xlu0 %1579, %v1566
        %v1581 = vpop.permute.xlu0 %1580
        %1584 = vset.pattern.permute.xlu0 0
        %1585 = vperm.xlu0 %1584, %v1567
        %v1586 = vpop.permute.xlu0 %1585
        %1589 = vset.pattern.permute.xlu0 0
        %1590 = vperm.xlu0 %1589, %v1568
        %v1591 = vpop.permute.xlu0 %1590
        %1594 = vset.pattern.permute.xlu0 0
        %1595 = vperm.xlu0 %1594, %v1569
        %v1596 = vpop.permute.xlu0 %1595
        %1599 = vset.pattern.permute.xlu0 0
        %1600 = vperm.xlu0 %1599, %v1570
        %v1601 = vpop.permute.xlu0 %1600
        %1604 = vset.pattern.permute.xlu0 0
        %1605 = vperm.xlu0 %1604, %v1571
        %v1606 = vpop.permute.xlu0 %1605
        %1609 = vset.pattern.permute.xlu0 0
        %1610 = vperm.xlu0 %1609, %v1572
        %v1611 = vpop.permute.xlu0 %1610
        %v1613 = vmul.f32 %v1557, %v1576
        %v1614 = vmul.f32 %v1558, %v1581
        %v1615 = vmul.f32 %v1559, %v1586
        %v1616 = vmul.f32 %v1560, %v1591
        %v1617 = vmul.f32 %v1561, %v1596
        %v1618 = vmul.f32 %v1562, %v1601
        %v1619 = vmul.f32 %v1563, %v1606
        %v1620 = vmul.f32 %v1564, %v1611
        %v1621 = vld [vmem:[#allocation3] sm:$0xff]
        %v1622 = vld [vmem:[#allocation3 + $0x8] sm:$0xff]
        %v1623 = vld [vmem:[#allocation3 + $0x10] sm:$0xff]
        %v1624 = vld [vmem:[#allocation3 + $0x18] sm:$0xff]
        %v1625 = vld [vmem:[#allocation3 + $0x20] sm:$0xff]
        %v1626 = vld [vmem:[#allocation3 + $0x28] sm:$0xff]
        %v1627 = vld [vmem:[#allocation3 + $0x30] sm:$0xff]
        %v1628 = vld [vmem:[#allocation3 + $0x38] sm:$0xff]
        %v1629 = vld [vmem:[%s538] sm:$0xff]
        %v1630 = vld [vmem:[%s538 + $0x8] sm:$0xff]
        %v1631 = vld [vmem:[%s538 + $0x10] sm:$0xff]
        %v1632 = vld [vmem:[%s538 + $0x18] sm:$0xff]
        %v1633 = vld [vmem:[%s538 + $0x20] sm:$0xff]
        %v1634 = vld [vmem:[%s538 + $0x28] sm:$0xff]
        %v1635 = vld [vmem:[%s538 + $0x30] sm:$0xff]
        %v1636 = vld [vmem:[%s538 + $0x38] sm:$0xff]
        %1638 = vset.pattern.permute.xlu0 0
        %1639 = vperm.xlu0 %1638, %v1629
        %v1640 = vpop.permute.xlu0 %1639
        %1643 = vset.pattern.permute.xlu0 0
        %1644 = vperm.xlu0 %1643, %v1630
        %v1645 = vpop.permute.xlu0 %1644
        %1648 = vset.pattern.permute.xlu0 0
        %1649 = vperm.xlu0 %1648, %v1631
        %v1650 = vpop.permute.xlu0 %1649
        %1653 = vset.pattern.permute.xlu0 0
        %1654 = vperm.xlu0 %1653, %v1632
        %v1655 = vpop.permute.xlu0 %1654
        %1658 = vset.pattern.permute.xlu0 0
        %1659 = vperm.xlu0 %1658, %v1633
        %v1660 = vpop.permute.xlu0 %1659
        %1663 = vset.pattern.permute.xlu0 0
        %1664 = vperm.xlu0 %1663, %v1634
        %v1665 = vpop.permute.xlu0 %1664
        %1668 = vset.pattern.permute.xlu0 0
        %1669 = vperm.xlu0 %1668, %v1635
        %v1670 = vpop.permute.xlu0 %1669
        %1673 = vset.pattern.permute.xlu0 0
        %1674 = vperm.xlu0 %1673, %v1636
        %v1675 = vpop.permute.xlu0 %1674
        %v1677 = vmul.f32 %v1621, %v1640
        %v1678 = vmul.f32 %v1622, %v1645
        %v1679 = vmul.f32 %v1623, %v1650
        %v1680 = vmul.f32 %v1624, %v1655
        %v1681 = vmul.f32 %v1625, %v1660
        %v1682 = vmul.f32 %v1626, %v1665
        %v1683 = vmul.f32 %v1627, %v1670
        %v1684 = vmul.f32 %v1628, %v1675
        %v1685 = vadd.f32 %v1613, %v1677
        %v1686 = vadd.f32 %v1614, %v1678
        %v1687 = vadd.f32 %v1615, %v1679
        %v1688 = vadd.f32 %v1616, %v1680
        %v1689 = vadd.f32 %v1617, %v1681
        %v1690 = vadd.f32 %v1618, %v1682
        %v1691 = vadd.f32 %v1619, %v1683
        %v1692 = vadd.f32 %v1620, %v1684
        %v1693 = vadd.f32 %v1685, %v1538
        %v1694 = vadd.f32 %v1686, %v1540
        %v1695 = vadd.f32 %v1687, %v1543
        %v1696 = vadd.f32 %v1688, %v1545
        %v1697 = vadd.f32 %v1689, %v1548
        %v1698 = vadd.f32 %v1690, %v1550
        %v1699 = vadd.f32 %v1691, %v1553
        %v1700 = vadd.f32 %v1692, %v1555
        %v1701 = vmax.f32 %v1693, 0.0
        %v1702 = vmax.f32 %v1694, 0.0
        %v1703 = vmax.f32 %v1695, 0.0
        %v1704 = vmax.f32 %v1696, 0.0
        %v1705 = vmax.f32 %v1697, 0.0
        %v1706 = vmax.f32 %v1698, 0.0
        %v1707 = vmax.f32 %v1699, 0.0
        %v1708 = vmax.f32 %v1700, 0.0
        %1709 = vst [vmem:[%s544] sm:$0xff] %v1701
        %1710 = vst [vmem:[%s544 + $0x8] sm:$0xff] %v1702
        %1711 = vst [vmem:[%s544 + $0x10] sm:$0xff] %v1703
        %1712 = vst [vmem:[%s544 + $0x18] sm:$0xff] %v1704
        %1713 = vst [vmem:[%s544 + $0x20] sm:$0xff] %v1705
        %1714 = vst [vmem:[%s544 + $0x28] sm:$0xff] %v1706
        %1715 = vst [vmem:[%s544 + $0x30] sm:$0xff] %v1707
        %1716 = vst [vmem:[%s544 + $0x38] sm:$0xff] %v1708
      $region72: #{rgcn_forward.5} parent=63 // pred_fallthru
        _
      %s1717 = smul.u32 8, %s26
      %p1718 = scmp.lt.s32.totalorder %s1717, 15
      %s1719 = scalar_select %p1718, %s1717, 15
      %s1720 = smul.addr %s1719, 8
      %s1721 = scalar_lea.vmem %s11, %s1720
      // Predicated region
      $region73: #{rgcn_forward.5} parent=63 // pred_check
        %p1722 = pneg %p323
      $region74: #{rgcn_forward.5} parent=63 // pred_check_branch
        %1724 = sbr.rel (%p1722) target = $region76
      $region75: #{rgcn_forward.5} parent=63 // pred_region
        %s1725 = smul.u32 8, %s26
      $region76: #{rgcn_forward.5} parent=63 // pred_fallthru
        _
    $region64: #{rgcn_forward.5} parent=5 // pred_fallthru
      _
    %p1726 = scmp.le.s32.totalorder 2, %s17
    // Predicated region
    $region77: #{rgcn_forward.5} parent=5 // pred_check
      %p1727 = pneg %p1726
    $region78: #{rgcn_forward.5} parent=5 // pred_check_branch
      %1729 = sbr.rel (%p1727) target = $region80
    $region79: #{rgcn_forward.5} parent=5 // pred_region
      %s1730 = ssub.s32 %s17, 2
      // Predicated region
      $region81: #{rgcn_forward.5} parent=79 // pred_check
        %p1731 = pneg %p329
      $region82: #{rgcn_forward.5} parent=79 // pred_check_branch
        %1733 = sbr.rel (%p1731) target = $region84
      $region83: #{rgcn_forward.5} parent=79 // pred_region
        %s1734 = smul.u32 8, %s28
        %p1735 = scmp.lt.s32.totalorder %s1734, 15
        %s1736 = scalar_select %p1735, %s1734, 15
        %s1737 = smul.addr %s1736, 8
        %s1738 = scalar_lea.vmem %s11, %s1737
      $region84: #{rgcn_forward.5} parent=79 // pred_fallthru
        _
    $region80: #{rgcn_forward.5} parent=5 // pred_fallthru
      _
  $region6: #{rgcn_forward.5} parent=0 // loop_footer
    %s21 = sadd.s32 1, %s17
  $region7: #{rgcn_forward.5} parent=0 // loop_footer_branch
    %16 = sbr.rel target = $region3
  $region8: #{rgcn_forward.5} parent=0 // loop_exit
    _

</llo_original>
